<compile_context>
chip_gen: v6e
topology: v6e:2x2x1
jax: 0.10.0
libtpu: 0.0.40
codegen_flags: <defaults>
</compile_context>

<pallas_src>
import functools
import math

import jax
import jax.numpy as jnp
from jax import lax
from jax.experimental import pallas as pl
from jax.experimental.pallas import tpu as pltpu

LANE = 128  # dense lane width used for the channel axis


# ---------------------------------------------------------------------------
# Fused whole-model Pallas kernel
# ---------------------------------------------------------------------------

def _s4_model_kernel(x_ref, ew_ref, eb_ref, dw_ref, db_ref,
                     kl_ref, pfr_ref, pfi_ref, ere_ref, eim_ref,
                     gre_ref, gim_ref, dsk_ref, wo_ref, bo_ref, gm_ref, bt_ref,
                     o_ref,
                     h_ref, y_ref,
                     *, nlayers, n_state, d_real, tc, rb):
    f32 = jnp.float32
    L, Dp = h_ref.shape
    N = n_state
    num_chunks = L // tc
    num_rblocks = L // rb
    inv_d = 1.0 / float(d_real)

    # Time-reversal (exchange) matrix for the in-chunk correlation; built once,
    # applied on the (otherwise idle) MXU once per chunk.
    ri = lax.broadcasted_iota(jnp.int32, (tc, tc), 0)
    ci = lax.broadcasted_iota(jnp.int32, (tc, tc), 1)
    jrev = jnp.where(ri + ci == tc - 1, 1.0, 0.0).astype(f32)

    # ---- embedding: h = x @ W_emb + b_emb  (MXU, rb-row blocks) ------------
    def embed_body(r, carry):
        r0 = pl.multiple_of(r * rb, 8)
        h_ref[pl.ds(r0, rb), :] = (
            jnp.dot(x_ref[pl.ds(r0, rb), :], ew_ref[...],
                    preferred_element_type=f32) + eb_ref[...])
        return carry

    lax.fori_loop(0, num_rblocks, embed_body, 0)

    # ---- S4 layers (fori_loop over stacked per-layer params) ---------------
    def layer_body(li, carry):
        # small (N, Dp) per-mode constants: cheap to hoist across the chunk loop
        ere = ere_ref[li]
        eim = eim_ref[li]
        gre = gre_ref[li]
        gim = gim_ref[li]

        # -- pass 1: chunked causal S4D conv; y (conv + carry) -> y_ref ------
        def chunk_body(c, state):
            sre, sim = state                       # tuples of N (1, Dp) rows
            t0 = pl.multiple_of(c * tc, 8)
            u = h_ref[pl.ds(t0, tc), :]            # (tc, Dp) layer input chunk
            u_rev = jnp.dot(jrev, u, preferred_element_type=f32)  # time-rev

            # (a) within-chunk causal conv: zero-padded window built once as a
            #     value, per-tap shift via pltpu.roll (XLU), aligned slices.
            kloc = kl_ref[li]                      # (tc, Dp) local conv taps
            win = jnp.concatenate(
                [jnp.zeros((tc, Dp), f32), u], axis=0)            # (2tc, Dp)
            y = kloc[0:1, :] * u
            for k in range(1, tc):
                sh = pltpu.roll(win, shift=k, axis=0)
                y = y + kloc[k:k + 1, :] * sh[tc:2 * tc, :]

            # (b) contribution of all earlier chunks via the per-mode state
            #     s'_n (= 2*coef_n*lam_n * classic state), and
            # (c) in-chunk correlation a_n = sum_j lam^(tc-1-j) u[j].
            new_re = []
            new_im = []
            for n in range(N):
                p_re = pfr_ref[li * N + n]         # (tc, Dp) = Re(lam^k)
                p_im = pfi_ref[li * N + n]         # (tc, Dp) = Im(lam^k)
                y = y + (p_re * sre[n] - p_im * sim[n])
                a_re = jnp.sum(p_re * u_rev, axis=0, keepdims=True)  # (1, Dp)
                a_im = jnp.sum(p_im * u_rev, axis=0, keepdims=True)
                e_re = ere[n:n + 1, :]
                e_im = eim[n:n + 1, :]
                g_re = gre[n:n + 1, :]
                g_im = gim[n:n + 1, :]
                new_re.append(e_re * sre[n] - e_im * sim[n]
                              + g_re * a_re - g_im * a_im)
                new_im.append(e_re * sim[n] + e_im * sre[n]
                              + g_re * a_im + g_im * a_re)

            y_ref[pl.ds(t0, tc), :] = y
            return (tuple(new_re), tuple(new_im))

        zero_rows = tuple(jnp.zeros((1, Dp), f32) for _ in range(N))
        lax.fori_loop(0, num_chunks, chunk_body, (zero_rows, zero_rows))

        # -- pass 2: D-skip + GELU + output linear + GLU + residual + LN -----
        dsk = dsk_ref[li]                          # (1, Dp)
        bo = bo_ref[li]                            # (1, 2*Dp)
        gm = gm_ref[li]                            # (1, Dp)
        bt = bt_ref[li]                            # (1, Dp)

        def post_body(r, carry2):
            r0 = pl.multiple_of(r * rb, 8)
            u = h_ref[pl.ds(r0, rb), :]            # layer input block
            y = y_ref[pl.ds(r0, rb), :]            # conv+carry output block
            # TODO(synk): PyTorch nn.GELU defaults to exact erf GELU; the tanh
            # approximation is used here (and in the reference) for portability.
            y = jax.nn.gelu(y + dsk * u)
            # position-wise output linear (H -> 2H) on the MXU, big-M block.
            v = jnp.dot(y, wo_ref[li], preferred_element_type=f32) + bo
            z = v[:, :Dp] * jax.nn.sigmoid(v[:, Dp:])
            # residual + post-norm LayerNorm over the *real* channel dim.
            # Padded lanes are exactly zero, so Dp-lane sums equal d_real sums.
            xr = z + u
            mean = jnp.sum(xr, axis=-1, keepdims=True) * inv_d
            msq = jnp.sum(xr * xr, axis=-1, keepdims=True) * inv_d
            var = jnp.maximum(msq - mean * mean, 0.0)
            xn = (xr - mean) * lax.rsqrt(var + 1e-5)
            h_ref[pl.ds(r0, rb), :] = xn * gm + bt   # gamma/beta pads are 0
            return carry2

        lax.fori_loop(0, num_rblocks, post_body, 0)
        return carry

    lax.fori_loop(0, nlayers, layer_body, 0)

    # ---- decoder: out = h @ W_dec + b_dec  (MXU, lane-dense output) --------
    def dec_body(r, carry):
        r0 = pl.multiple_of(r * rb, 8)
        o_ref[pl.ds(r0, rb), :] = (
            jnp.dot(h_ref[pl.ds(r0, rb), :], dw_ref[...],
                    preferred_element_type=f32) + db_ref[...])
        return carry

    lax.fori_loop(0, num_rblocks, dec_body, 0)


# ---------------------------------------------------------------------------
# S4D parameter materialization for the chunked conv (plain-JAX glue)
# ---------------------------------------------------------------------------

def _s4d_chunk_tensors(log_dt, C_re, C_im, tc):
    """Real tensors for the chunked S4D conv (single lam^k power table)."""
    D, N = C_re.shape
    dt = jnp.exp(log_dt)[:, None]                          # (D, 1)
    A = -0.5 + 1j * jnp.pi * jnp.arange(N)                 # (N,)  S4D-Lin
    C = C_re + 1j * C_im                                   # (D, N)
    dtA = dt * A                                           # (D, N)
    lam = jnp.exp(dtA)                                     # (D, N)
    coef = C * (lam - 1.0) / A                             # (D, N)
    k = jnp.arange(tc)

    lam_pow = jnp.exp(dtA[None, :, :] * k[:, None, None])             # (tc,D,N)
    # local conv taps K[k, d] = 2 Re(sum_n coef * lam^k), k = 0..tc-1
    k_local = 2.0 * jnp.real(jnp.einsum("dn,kdn->kd", coef, lam_pow))  # (tc, D)
    # single complex power table P[n, k, d] = lam^k
    P = jnp.transpose(lam_pow, (2, 0, 1))                              # (N,tc,D)
    # per-mode constants: state decay E = lam^tc, input scale G = 2*coef*lam
    E = jnp.exp(dtA * tc).T                                            # (N, D)
    G = (2.0 * coef * lam).T                                           # (N, D)
    return (k_local, jnp.real(P), jnp.imag(P),
            jnp.real(E), jnp.imag(E), jnp.real(G), jnp.imag(G))


def s4d_ssm_kernel(log_dt, C_re, C_im, L):
    """Full-length S4D-Lin convolution kernel (L, D) -- reference path."""
    D, N = C_re.shape
    dt = jnp.exp(log_dt)[:, None]
    A = -0.5 + 1j * jnp.pi * jnp.arange(N)
    C = C_re + 1j * C_im
    dtA = dt * A
    coef = C * (jnp.exp(dtA) - 1.0) / A
    pos = jnp.arange(L)
    vander = jnp.exp(dtA[:, :, None] * pos[None, None, :])
    K = 2.0 * jnp.einsum("dn,dnl->dl", coef, vander).real
    return K.astype(jnp.float32).T                         # (L, D)


# ---------------------------------------------------------------------------
# Wrapper: padding, stacking, pallas_call
# ---------------------------------------------------------------------------

def s4_model_forward(params, x, *, time_chunk=None):
    B, L, input_dim = x.shape
    D = params["embed_w"].shape[1]
    output_dim = params["dec_w"].shape[1]
    nlayers = len(params["layers"])
    N = params["layers"][0]["C_re"].shape[1]
    Dp = LANE
    assert max(D, input_dim, output_dim) <= Dp, "channel dims > 128 need tiling"

    tc = time_chunk if time_chunk is not None else (16 if L % 16 == 0 else 8)
    assert tc % 8 == 0 and L % tc == 0, (L, tc)
    rb = math.gcd(L, 128)                       # row block for MXU/LN passes
    assert rb % 8 == 0

    f32 = jnp.float32

    def pad_last(a, target=Dp):
        a = a.astype(f32)
        return jnp.pad(a, [(0, 0)] * (a.ndim - 1) + [(0, target - a.shape[-1])])

    # lane-dense, zero-padded operands (pads MUST stay zero: correctness of the
    # in-kernel LayerNorm and of the zero padded-lane invariant relies on it).
    x_p = pad_last(x)                                                 # (B,L,Dp)
    ew = jnp.zeros((Dp, Dp), f32).at[:input_dim, :D].set(
        params["embed_w"].astype(f32))
    eb = pad_last(params["embed_b"].reshape(1, -1))
    dw = jnp.zeros((Dp, Dp), f32).at[:D, :output_dim].set(
        params["dec_w"].astype(f32))
    db = pad_last(params["dec_b"].reshape(1, -1))

    kl, pre_l, pim_l = [], [], []
    ere_l, eim_l, gre_l, gim_l = [], [], [], []
    dsk, wo, bo, gm, bt = [], [], [], [], []
    for lp in params["layers"]:
        t = _s4d_chunk_tensors(lp["log_dt"], lp["C_re"], lp["C_im"], tc)
        kl.append(pad_last(t[0]))
        pre_l.append(pad_last(t[1])); pim_l.append(pad_last(t[2]))
        ere_l.append(pad_last(t[3])); eim_l.append(pad_last(t[4]))
        gre_l.append(pad_last(t[5])); gim_l.append(pad_last(t[6]))
        dsk.append(pad_last(lp["D_skip"].reshape(1, -1)))
        w1, w2 = lp["w_out"][:, :D], lp["w_out"][:, D:]
        wo.append(jnp.zeros((Dp, 2 * Dp), f32)
                  .at[:D, :D].set(w1.astype(f32))
                  .at[:D, Dp:Dp + D].set(w2.astype(f32)))
        b1, b2 = lp["b_out"][:D], lp["b_out"][D:]
        bo.append(jnp.zeros((1, 2 * Dp), f32)
                  .at[0, :D].set(b1.astype(f32))
                  .at[0, Dp:Dp + D].set(b2.astype(f32)))
        gm.append(pad_last(lp["gamma"].reshape(1, -1)))  # pad=0 keeps pads 0
        bt.append(pad_last(lp["beta"].reshape(1, -1)))

    stack = lambda xs: jnp.stack(xs, 0)
    kl = stack(kl)                                            # (nl, tc, Dp)
    pre = stack(pre_l).reshape(nlayers * N, tc, Dp)           # (nl*N, tc, Dp)
    pim = stack(pim_l).reshape(nlayers * N, tc, Dp)
    ere, eim = stack(ere_l), stack(eim_l)                     # (nl, N, Dp)
    gre, gim = stack(gre_l), stack(gim_l)
    dsk, wo, bo, gm, bt = map(stack, (dsk, wo, bo, gm, bt))

    operands = (x_p, ew, eb, dw, db, kl, pre, pim, ere, eim, gre, gim,
                dsk, wo, bo, gm, bt)

    def full_spec(a):
        nd = a.ndim
        return pl.BlockSpec(a.shape, lambda i, nd=nd: (0,) * nd)

    in_specs = [pl.BlockSpec((None, L, Dp), lambda i: (i, 0, 0))]
    in_specs += [full_spec(a) for a in operands[1:]]
    out_spec = pl.BlockSpec((None, L, Dp), lambda i: (i, 0, 0))

    scratch = [pltpu.VMEM((L, Dp), f32),          # resident activation h
               pltpu.VMEM((L, Dp), f32)]          # per-layer conv output y

    # explicit VMEM budget derived from the actual block / scratch sizes
    param_bytes = sum(int(a.size) * 4 for a in operands[1:])
    block_bytes = 2 * L * Dp * 4                  # x block + out block
    scratch_bytes = 2 * L * Dp * 4
    vmem_need = 2 * (param_bytes + block_bytes) + scratch_bytes + (4 << 20)
    vmem_limit = int(min(max(vmem_need, 16 << 20), 64 << 20))  # fits v7x too

    kernel = functools.partial(_s4_model_kernel, nlayers=nlayers, n_state=N,
                               d_real=D, tc=tc, rb=rb)
    out_p = pl.pallas_call(
        kernel,
        out_shape=jax.ShapeDtypeStruct((B, L, Dp), f32),
        grid=(B,),
        in_specs=in_specs,
        out_specs=out_spec,
        scratch_shapes=scratch,
        compiler_params=pltpu.CompilerParams(
            dimension_semantics=("parallel",),
            vmem_limit_bytes=vmem_limit),
    )(*operands)
    return out_p[..., :output_dim]


# ---------------------------------------------------------------------------
# Parameters & pure-JAX reference
# ---------------------------------------------------------------------------

def init_params(key, input_dim, output_dim, model_dim, nlayers, state_dim=8):
    keys = jax.random.split(key, 2 + nlayers)
    params = {
        "embed_w": 0.1 * jax.random.normal(keys[0], (input_dim, model_dim), jnp.float32),
        "embed_b": jnp.zeros((model_dim,), jnp.float32),
        "dec_w": 0.1 * jax.random.normal(keys[1], (model_dim, output_dim), jnp.float32),
        "dec_b": jnp.zeros((output_dim,), jnp.float32),
        "layers": [],
    }
    for i in range(nlayers):
        lk = jax.random.split(keys[2 + i], 5)
        params["layers"].append(dict(
            log_dt=jax.random.uniform(lk[0], (model_dim,), jnp.float32,
                                      minval=jnp.log(0.001), maxval=jnp.log(0.1)),
            C_re=0.5 * jax.random.normal(lk[1], (model_dim, state_dim), jnp.float32),
            C_im=0.5 * jax.random.normal(lk[2], (model_dim, state_dim), jnp.float32),
            D_skip=jax.random.normal(lk[3], (model_dim,), jnp.float32),
            w_out=0.1 * jax.random.normal(lk[4], (model_dim, 2 * model_dim), jnp.float32),
            b_out=jnp.zeros((2 * model_dim,), jnp.float32),
            gamma=jnp.ones((model_dim,), jnp.float32),
            beta=jnp.zeros((model_dim,), jnp.float32),
        ))
    return params


def reference_forward(params, x):
    h = x @ params["embed_w"] + params["embed_b"]
    B, L, D = h.shape
    for lp in params["layers"]:
        K = s4d_ssm_kernel(lp["log_dt"], lp["C_re"], lp["C_im"], L)  # (L, D)
        u = h
        y = jnp.zeros_like(u)
        for k in range(L):
            y = y.at[:, k:, :].add(K[k][None, None, :] * u[:, : L - k, :])
        y = y + lp["D_skip"][None, None, :] * u
        y = jax.nn.gelu(y)
        v = jnp.einsum("bld,de->ble", y, lp["w_out"]) + lp["b_out"]
        z = v[..., :D] * jax.nn.sigmoid(v[..., D:])
        xr = z + u
        mean = jnp.mean(xr, axis=-1, keepdims=True)
        var = jnp.mean((xr - mean) ** 2, axis=-1, keepdims=True)
        xn = (xr - mean) / jnp.sqrt(var + 1e-5)
        h = xn * lp["gamma"] + lp["beta"]
    return h @ params["dec_w"] + params["dec_b"]


if __name__ == "__main__":
    B, L = 2, 32
    input_dim, model_dim, output_dim, nlayers = 4, 32, 8, 4

    key = jax.random.PRNGKey(0)
    kx, kp = jax.random.split(key)
    x = jax.random.normal(kx, (B, L, input_dim), jnp.float32)
    params = init_params(kp, input_dim, output_dim, model_dim, nlayers)

    # default tc=16 -> 2 chunks per sequence: exercises the cross-chunk SSM
    # state-carry path as well as the within-chunk rolled-window conv.
    out = s4_model_forward(params, x)
    out = jax.block_until_ready(out)

    ref = reference_forward(params, x)
    assert out.shape == (B, L, output_dim), out.shape
    err = float(jnp.max(jnp.abs(out - ref)))
    assert jnp.allclose(out, ref, atol=1e-3, rtol=1e-3), err

    print("KERNEL_OK")
</pallas_src>

<mosaic_0001>
module attributes {stable_mosaic.version = 11 : i64} {
  func.func @_s4_model_kernel(%arg0: i32, %arg1: memref<1x32x128xf32, #tpu.memory_space<vmem>>, %arg2: memref<128x128xf32, #tpu.memory_space<vmem>>, %arg3: memref<1x128xf32, #tpu.memory_space<vmem>>, %arg4: memref<128x128xf32, #tpu.memory_space<vmem>>, %arg5: memref<1x128xf32, #tpu.memory_space<vmem>>, %arg6: memref<4x16x128xf32, #tpu.memory_space<vmem>>, %arg7: memref<32x16x128xf32, #tpu.memory_space<vmem>>, %arg8: memref<32x16x128xf32, #tpu.memory_space<vmem>>, %arg9: memref<4x8x128xf32, #tpu.memory_space<vmem>>, %arg10: memref<4x8x128xf32, #tpu.memory_space<vmem>>, %arg11: memref<4x8x128xf32, #tpu.memory_space<vmem>>, %arg12: memref<4x8x128xf32, #tpu.memory_space<vmem>>, %arg13: memref<4x1x128xf32, #tpu.memory_space<vmem>>, %arg14: memref<4x128x256xf32, #tpu.memory_space<vmem>>, %arg15: memref<4x1x256xf32, #tpu.memory_space<vmem>>, %arg16: memref<4x1x128xf32, #tpu.memory_space<vmem>>, %arg17: memref<4x1x128xf32, #tpu.memory_space<vmem>>, %arg18: memref<1x32x128xf32, #tpu.memory_space<vmem>>, %arg19: memref<32x128xf32, #tpu.memory_space<vmem>>, %arg20: memref<32x128xf32, #tpu.memory_space<vmem>>) attributes {dimension_semantics = [#tpu.dimension_semantics<parallel>], iteration_bounds = array<i64: 2>, scalar_prefetch = 0 : i64, scratch_operands = 2 : i64, tpu.core_type = #tpu.core_type<tc>, window_params = [{transform_indices = @transform_0, window_bounds = array<i64: 1, 32, 128>}, {pipeline_mode = #tpu.pipeline_mode<synchronous>, transform_indices = @transform_1, window_bounds = array<i64: 128, 128>}, {pipeline_mode = #tpu.pipeline_mode<synchronous>, transform_indices = @transform_2, window_bounds = array<i64: 1, 128>}, {pipeline_mode = #tpu.pipeline_mode<synchronous>, transform_indices = @transform_3, window_bounds = array<i64: 128, 128>}, {pipeline_mode = #tpu.pipeline_mode<synchronous>, transform_indices = @transform_4, window_bounds = array<i64: 1, 128>}, {pipeline_mode = #tpu.pipeline_mode<synchronous>, transform_indices = @transform_5, window_bounds = array<i64: 4, 16, 128>}, {pipeline_mode = #tpu.pipeline_mode<synchronous>, transform_indices = @transform_6, window_bounds = array<i64: 32, 16, 128>}, {pipeline_mode = #tpu.pipeline_mode<synchronous>, transform_indices = @transform_7, window_bounds = array<i64: 32, 16, 128>}, {pipeline_mode = #tpu.pipeline_mode<synchronous>, transform_indices = @transform_8, window_bounds = array<i64: 4, 8, 128>}, {pipeline_mode = #tpu.pipeline_mode<synchronous>, transform_indices = @transform_9, window_bounds = array<i64: 4, 8, 128>}, {pipeline_mode = #tpu.pipeline_mode<synchronous>, transform_indices = @transform_10, window_bounds = array<i64: 4, 8, 128>}, {pipeline_mode = #tpu.pipeline_mode<synchronous>, transform_indices = @transform_11, window_bounds = array<i64: 4, 8, 128>}, {pipeline_mode = #tpu.pipeline_mode<synchronous>, transform_indices = @transform_12, window_bounds = array<i64: 4, 1, 128>}, {pipeline_mode = #tpu.pipeline_mode<synchronous>, transform_indices = @transform_13, window_bounds = array<i64: 4, 128, 256>}, {pipeline_mode = #tpu.pipeline_mode<synchronous>, transform_indices = @transform_14, window_bounds = array<i64: 4, 1, 256>}, {pipeline_mode = #tpu.pipeline_mode<synchronous>, transform_indices = @transform_15, window_bounds = array<i64: 4, 1, 128>}, {pipeline_mode = #tpu.pipeline_mode<synchronous>, transform_indices = @transform_16, window_bounds = array<i64: 4, 1, 128>}, {transform_indices = @transform_17, window_bounds = array<i64: 1, 32, 128>}]} {
    %0 = tpu.iota {dimensions = array<i32: 0>} : vector<16x16xi32>
    %1 = tpu.iota {dimensions = array<i32: 1>} : vector<16x16xi32>
    %2 = arith.addi %0, %1 : vector<16x16xi32>
    %c15_i32 = arith.constant 15 : i32
    %3 = vector.broadcast %c15_i32 : i32 to vector<16x16xi32>
    %4 = arith.cmpi eq, %2, %3 : vector<16x16xi32>
    %cst = arith.constant 1.000000e+00 : f32
    %cst_0 = arith.constant 0.000000e+00 : f32
    %5 = vector.broadcast %cst : f32 to vector<16x16xf32>
    %6 = vector.broadcast %cst_0 : f32 to vector<16x16xf32>
    %7 = arith.select %4, %5, %6 : vector<16x16xi1>, vector<16x16xf32>
    %c0_i32 = arith.constant 0 : i32
    %c32_i32 = arith.constant 32 : i32
    %8 = arith.muli %c0_i32, %c32_i32 : i32
    %9 = tpu.assume_multiple %8, 8 : i32
    %c0 = arith.constant 0 : index
    %10 = arith.index_cast %9 : i32 to index
    %c0_1 = arith.constant 0 : index
    %11 = vector.load %arg1[%c0, %10, %c0_1] : memref<1x32x128xf32, #tpu.memory_space<vmem>>, vector<1x32x128xf32>
    %12 = vector.shape_cast %11 : vector<1x32x128xf32> to vector<32x128xf32>
    %c0_2 = arith.constant 0 : index
    %c0_3 = arith.constant 0 : index
    %13 = vector.load %arg2[%c0_2, %c0_3] : memref<128x128xf32, #tpu.memory_space<vmem>>, vector<128x128xf32>
    %cst_4 = arith.constant dense<0.000000e+00> : vector<32x128xf32>
    %14 = tpu.matmul %12, %13, %cst_4 {dimension_numbers = #tpu.dot_dimension_numbers<[1], [0], [0], [1], [0, 0, 1, 1], [], []>} : vector<32x128xf32>, vector<128x128xf32>, vector<32x128xf32> -> vector<32x128xf32>
    %c0_5 = arith.constant 0 : index
    %c0_6 = arith.constant 0 : index
    %15 = vector.load %arg3[%c0_5, %c0_6] : memref<1x128xf32, #tpu.memory_space<vmem>>, vector<1x128xf32>
    %16 = vector.broadcast %15 : vector<1x128xf32> to vector<32x128xf32>
    %17 = arith.addf %14, %16 : vector<32x128xf32>
    %18 = arith.index_cast %9 : i32 to index
    %c0_7 = arith.constant 0 : index
    %19 = vector.load %arg19[%18, %c0_7] : memref<32x128xf32, #tpu.memory_space<vmem>>, vector<32x128xf32>
    tpu.vector_store %arg19[%18, %c0_7], %17 {strides = array<i32>} : memref<32x128xf32, #tpu.memory_space<vmem>>, vector<32x128xf32>,
    %c1_i32 = arith.constant 1 : i32
    %c0_i32_8 = arith.constant 0 : i32
    %c4_i32 = arith.constant 4 : i32
    %20 = arith.addi %c0_i32_8, %c4_i32 : i32
    %c1_i32_9 = arith.constant 1 : i32
    scf.for %arg21 = %c0_i32_8 to %20 step %c1_i32_9  : i32 {
      %34 = arith.index_cast %arg21 : i32 to index
      %c0_22 = arith.constant 0 : index
      %c0_23 = arith.constant 0 : index
      %35 = vector.load %arg9[%34, %c0_22, %c0_23] : memref<4x8x128xf32, #tpu.memory_space<vmem>>, vector<1x8x128xf32>
      %36 = vector.shape_cast %35 : vector<1x8x128xf32> to vector<8x128xf32>
      %37 = arith.index_cast %arg21 : i32 to index
      %c0_24 = arith.constant 0 : index
      %c0_25 = arith.constant 0 : index
      %38 = vector.load %arg10[%37, %c0_24, %c0_25] : memref<4x8x128xf32, #tpu.memory_space<vmem>>, vector<1x8x128xf32>
      %39 = vector.shape_cast %38 : vector<1x8x128xf32> to vector<8x128xf32>
      %40 = arith.index_cast %arg21 : i32 to index
      %c0_26 = arith.constant 0 : index
      %c0_27 = arith.constant 0 : index
      %41 = vector.load %arg11[%40, %c0_26, %c0_27] : memref<4x8x128xf32, #tpu.memory_space<vmem>>, vector<1x8x128xf32>
      %42 = vector.shape_cast %41 : vector<1x8x128xf32> to vector<8x128xf32>
      %43 = arith.index_cast %arg21 : i32 to index
      %c0_28 = arith.constant 0 : index
      %c0_29 = arith.constant 0 : index
      %44 = vector.load %arg12[%43, %c0_28, %c0_29] : memref<4x8x128xf32, #tpu.memory_space<vmem>>, vector<1x8x128xf32>
      %45 = vector.shape_cast %44 : vector<1x8x128xf32> to vector<8x128xf32>
      %cst_30 = arith.constant 0.000000e+00 : f32
      %46 = vector.broadcast %cst_30 : f32 to vector<1x128xf32>
      %cst_31 = arith.constant 0.000000e+00 : f32
      %47 = vector.broadcast %cst_31 : f32 to vector<1x128xf32>
      %cst_32 = arith.constant 0.000000e+00 : f32
      %48 = vector.broadcast %cst_32 : f32 to vector<1x128xf32>
      %cst_33 = arith.constant 0.000000e+00 : f32
      %49 = vector.broadcast %cst_33 : f32 to vector<1x128xf32>
      %cst_34 = arith.constant 0.000000e+00 : f32
      %50 = vector.broadcast %cst_34 : f32 to vector<1x128xf32>
      %cst_35 = arith.constant 0.000000e+00 : f32
      %51 = vector.broadcast %cst_35 : f32 to vector<1x128xf32>
      %cst_36 = arith.constant 0.000000e+00 : f32
      %52 = vector.broadcast %cst_36 : f32 to vector<1x128xf32>
      %cst_37 = arith.constant 0.000000e+00 : f32
      %53 = vector.broadcast %cst_37 : f32 to vector<1x128xf32>
      %c0_i32_38 = arith.constant 0 : i32
      %c2_i32 = arith.constant 2 : i32
      %54 = arith.addi %c0_i32_38, %c2_i32 : i32
      %c1_i32_39 = arith.constant 1 : i32
      %55:16 = scf.for %arg22 = %c0_i32_38 to %54 step %c1_i32_39 iter_args(%arg23 = %46, %arg24 = %47, %arg25 = %48, %arg26 = %49, %arg27 = %50, %arg28 = %51, %arg29 = %52, %arg30 = %53, %arg31 = %46, %arg32 = %47, %arg33 = %48, %arg34 = %49, %arg35 = %50, %arg36 = %51, %arg37 = %52, %arg38 = %53) -> (vector<1x128xf32>, vector<1x128xf32>, vector<1x128xf32>, vector<1x128xf32>, vector<1x128xf32>, vector<1x128xf32>, vector<1x128xf32>, vector<1x128xf32>, vector<1x128xf32>, vector<1x128xf32>, vector<1x128xf32>, vector<1x128xf32>, vector<1x128xf32>, vector<1x128xf32>, vector<1x128xf32>, vector<1x128xf32>)  : i32 {
        %c16_i32 = arith.constant 16 : i32
        %131 = arith.muli %arg22, %c16_i32 : i32
        %132 = tpu.assume_multiple %131, 8 : i32
        %133 = arith.index_cast %132 : i32 to index
        %c0_69 = arith.constant 0 : index
        %134 = vector.load %arg19[%133, %c0_69] : memref<32x128xf32, #tpu.memory_space<vmem>>, vector<16x128xf32>
        %cst_70 = arith.constant dense<0.000000e+00> : vector<16x128xf32>
        %135 = tpu.matmul %7, %134, %cst_70 {dimension_numbers = #tpu.dot_dimension_numbers<[1], [0], [0], [1], [0, 0, 1, 1], [], []>} : vector<16x16xf32>, vector<16x128xf32>, vector<16x128xf32> -> vector<16x128xf32>
        %136 = arith.index_cast %arg21 : i32 to index
        %c0_71 = arith.constant 0 : index
        %c0_72 = arith.constant 0 : index
        %137 = vector.load %arg6[%136, %c0_71, %c0_72] : memref<4x16x128xf32, #tpu.memory_space<vmem>>, vector<1x16x128xf32>
        %138 = vector.shape_cast %137 : vector<1x16x128xf32> to vector<16x128xf32>
        %cst_73 = arith.constant 0.000000e+00 : f32
        %139 = vector.broadcast %cst_73 : f32 to vector<16x128xf32>
        %140 = tpu.concatenate %139, %134 in 0 : vector<16x128xf32>, vector<16x128xf32> -> vector<32x128xf32>
        %141 = vector.extract_strided_slice %138 {offsets = [0, 0], sizes = [1, 128], strides = [1, 1]} : vector<16x128xf32> to vector<1x128xf32>
        %142 = vector.broadcast %141 : vector<1x128xf32> to vector<16x128xf32>
        %143 = arith.mulf %142, %134 : vector<16x128xf32>
        %c1_i32_74 = arith.constant 1 : i32
        %144 = tpu.dynamic_rotate %140 by %c1_i32_74 dim 0 : vector<32x128xf32>, i32 -> vector<32x128xf32>
        %145 = vector.extract_strided_slice %138 {offsets = [1, 0], sizes = [1, 128], strides = [1, 1]} : vector<16x128xf32> to vector<1x128xf32>
        %146 = vector.extract_strided_slice %144 {offsets = [16, 0], sizes = [16, 128], strides = [1, 1]} : vector<32x128xf32> to vector<16x128xf32>
        %147 = vector.broadcast %145 : vector<1x128xf32> to vector<16x128xf32>
        %148 = arith.mulf %147, %146 : vector<16x128xf32>
        %149 = arith.addf %143, %148 : vector<16x128xf32>
        %c2_i32_75 = arith.constant 2 : i32
        %150 = tpu.dynamic_rotate %140 by %c2_i32_75 dim 0 : vector<32x128xf32>, i32 -> vector<32x128xf32>
        %151 = vector.extract_strided_slice %138 {offsets = [2, 0], sizes = [1, 128], strides = [1, 1]} : vector<16x128xf32> to vector<1x128xf32>
        %152 = vector.extract_strided_slice %150 {offsets = [16, 0], sizes = [16, 128], strides = [1, 1]} : vector<32x128xf32> to vector<16x128xf32>
        %153 = vector.broadcast %151 : vector<1x128xf32> to vector<16x128xf32>
        %154 = arith.mulf %153, %152 : vector<16x128xf32>
        %155 = arith.addf %149, %154 : vector<16x128xf32>
        %c3_i32 = arith.constant 3 : i32
        %156 = tpu.dynamic_rotate %140 by %c3_i32 dim 0 : vector<32x128xf32>, i32 -> vector<32x128xf32>
        %157 = vector.extract_strided_slice %138 {offsets = [3, 0], sizes = [1, 128], strides = [1, 1]} : vector<16x128xf32> to vector<1x128xf32>
        %158 = vector.extract_strided_slice %156 {offsets = [16, 0], sizes = [16, 128], strides = [1, 1]} : vector<32x128xf32> to vector<16x128xf32>
        %159 = vector.broadcast %157 : vector<1x128xf32> to vector<16x128xf32>
        %160 = arith.mulf %159, %158 : vector<16x128xf32>
        %161 = arith.addf %155, %160 : vector<16x128xf32>
        %c4_i32_76 = arith.constant 4 : i32
        %162 = tpu.dynamic_rotate %140 by %c4_i32_76 dim 0 : vector<32x128xf32>, i32 -> vector<32x128xf32>
        %163 = vector.extract_strided_slice %138 {offsets = [4, 0], sizes = [1, 128], strides = [1, 1]} : vector<16x128xf32> to vector<1x128xf32>
        %164 = vector.extract_strided_slice %162 {offsets = [16, 0], sizes = [16, 128], strides = [1, 1]} : vector<32x128xf32> to vector<16x128xf32>
        %165 = vector.broadcast %163 : vector<1x128xf32> to vector<16x128xf32>
        %166 = arith.mulf %165, %164 : vector<16x128xf32>
        %167 = arith.addf %161, %166 : vector<16x128xf32>
        %c5_i32 = arith.constant 5 : i32
        %168 = tpu.dynamic_rotate %140 by %c5_i32 dim 0 : vector<32x128xf32>, i32 -> vector<32x128xf32>
        %169 = vector.extract_strided_slice %138 {offsets = [5, 0], sizes = [1, 128], strides = [1, 1]} : vector<16x128xf32> to vector<1x128xf32>
        %170 = vector.extract_strided_slice %168 {offsets = [16, 0], sizes = [16, 128], strides = [1, 1]} : vector<32x128xf32> to vector<16x128xf32>
        %171 = vector.broadcast %169 : vector<1x128xf32> to vector<16x128xf32>
        %172 = arith.mulf %171, %170 : vector<16x128xf32>
        %173 = arith.addf %167, %172 : vector<16x128xf32>
        %c6_i32 = arith.constant 6 : i32
        %174 = tpu.dynamic_rotate %140 by %c6_i32 dim 0 : vector<32x128xf32>, i32 -> vector<32x128xf32>
        %175 = vector.extract_strided_slice %138 {offsets = [6, 0], sizes = [1, 128], strides = [1, 1]} : vector<16x128xf32> to vector<1x128xf32>
        %176 = vector.extract_strided_slice %174 {offsets = [16, 0], sizes = [16, 128], strides = [1, 1]} : vector<32x128xf32> to vector<16x128xf32>
        %177 = vector.broadcast %175 : vector<1x128xf32> to vector<16x128xf32>
        %178 = arith.mulf %177, %176 : vector<16x128xf32>
        %179 = arith.addf %173, %178 : vector<16x128xf32>
        %c7_i32 = arith.constant 7 : i32
        %180 = tpu.dynamic_rotate %140 by %c7_i32 dim 0 : vector<32x128xf32>, i32 -> vector<32x128xf32>
        %181 = vector.extract_strided_slice %138 {offsets = [7, 0], sizes = [1, 128], strides = [1, 1]} : vector<16x128xf32> to vector<1x128xf32>
        %182 = vector.extract_strided_slice %180 {offsets = [16, 0], sizes = [16, 128], strides = [1, 1]} : vector<32x128xf32> to vector<16x128xf32>
        %183 = vector.broadcast %181 : vector<1x128xf32> to vector<16x128xf32>
        %184 = arith.mulf %183, %182 : vector<16x128xf32>
        %185 = arith.addf %179, %184 : vector<16x128xf32>
        %c8_i32 = arith.constant 8 : i32
        %186 = tpu.dynamic_rotate %140 by %c8_i32 dim 0 : vector<32x128xf32>, i32 -> vector<32x128xf32>
        %187 = vector.extract_strided_slice %138 {offsets = [8, 0], sizes = [1, 128], strides = [1, 1]} : vector<16x128xf32> to vector<1x128xf32>
        %188 = vector.extract_strided_slice %186 {offsets = [16, 0], sizes = [16, 128], strides = [1, 1]} : vector<32x128xf32> to vector<16x128xf32>
        %189 = vector.broadcast %187 : vector<1x128xf32> to vector<16x128xf32>
        %190 = arith.mulf %189, %188 : vector<16x128xf32>
        %191 = arith.addf %185, %190 : vector<16x128xf32>
        %c9_i32 = arith.constant 9 : i32
        %192 = tpu.dynamic_rotate %140 by %c9_i32 dim 0 : vector<32x128xf32>, i32 -> vector<32x128xf32>
        %193 = vector.extract_strided_slice %138 {offsets = [9, 0], sizes = [1, 128], strides = [1, 1]} : vector<16x128xf32> to vector<1x128xf32>
        %194 = vector.extract_strided_slice %192 {offsets = [16, 0], sizes = [16, 128], strides = [1, 1]} : vector<32x128xf32> to vector<16x128xf32>
        %195 = vector.broadcast %193 : vector<1x128xf32> to vector<16x128xf32>
        %196 = arith.mulf %195, %194 : vector<16x128xf32>
        %197 = arith.addf %191, %196 : vector<16x128xf32>
        %c10_i32 = arith.constant 10 : i32
        %198 = tpu.dynamic_rotate %140 by %c10_i32 dim 0 : vector<32x128xf32>, i32 -> vector<32x128xf32>
        %199 = vector.extract_strided_slice %138 {offsets = [10, 0], sizes = [1, 128], strides = [1, 1]} : vector<16x128xf32> to vector<1x128xf32>
        %200 = vector.extract_strided_slice %198 {offsets = [16, 0], sizes = [16, 128], strides = [1, 1]} : vector<32x128xf32> to vector<16x128xf32>
        %201 = vector.broadcast %199 : vector<1x128xf32> to vector<16x128xf32>
        %202 = arith.mulf %201, %200 : vector<16x128xf32>
        %203 = arith.addf %197, %202 : vector<16x128xf32>
        %c11_i32 = arith.constant 11 : i32
        %204 = tpu.dynamic_rotate %140 by %c11_i32 dim 0 : vector<32x128xf32>, i32 -> vector<32x128xf32>
        %205 = vector.extract_strided_slice %138 {offsets = [11, 0], sizes = [1, 128], strides = [1, 1]} : vector<16x128xf32> to vector<1x128xf32>
        %206 = vector.extract_strided_slice %204 {offsets = [16, 0], sizes = [16, 128], strides = [1, 1]} : vector<32x128xf32> to vector<16x128xf32>
        %207 = vector.broadcast %205 : vector<1x128xf32> to vector<16x128xf32>
        %208 = arith.mulf %207, %206 : vector<16x128xf32>
        %209 = arith.addf %203, %208 : vector<16x128xf32>
        %c12_i32 = arith.constant 12 : i32
        %210 = tpu.dynamic_rotate %140 by %c12_i32 dim 0 : vector<32x128xf32>, i32 -> vector<32x128xf32>
        %211 = vector.extract_strided_slice %138 {offsets = [12, 0], sizes = [1, 128], strides = [1, 1]} : vector<16x128xf32> to vector<1x128xf32>
        %212 = vector.extract_strided_slice %210 {offsets = [16, 0], sizes = [16, 128], strides = [1, 1]} : vector<32x128xf32> to vector<16x128xf32>
        %213 = vector.broadcast %211 : vector<1x128xf32> to vector<16x128xf32>
        %214 = arith.mulf %213, %212 : vector<16x128xf32>
        %215 = arith.addf %209, %214 : vector<16x128xf32>
        %c13_i32 = arith.constant 13 : i32
        %216 = tpu.dynamic_rotate %140 by %c13_i32 dim 0 : vector<32x128xf32>, i32 -> vector<32x128xf32>
        %217 = vector.extract_strided_slice %138 {offsets = [13, 0], sizes = [1, 128], strides = [1, 1]} : vector<16x128xf32> to vector<1x128xf32>
        %218 = vector.extract_strided_slice %216 {offsets = [16, 0], sizes = [16, 128], strides = [1, 1]} : vector<32x128xf32> to vector<16x128xf32>
        %219 = vector.broadcast %217 : vector<1x128xf32> to vector<16x128xf32>
        %220 = arith.mulf %219, %218 : vector<16x128xf32>
        %221 = arith.addf %215, %220 : vector<16x128xf32>
        %c14_i32 = arith.constant 14 : i32
        %222 = tpu.dynamic_rotate %140 by %c14_i32 dim 0 : vector<32x128xf32>, i32 -> vector<32x128xf32>
        %223 = vector.extract_strided_slice %138 {offsets = [14, 0], sizes = [1, 128], strides = [1, 1]} : vector<16x128xf32> to vector<1x128xf32>
        %224 = vector.extract_strided_slice %222 {offsets = [16, 0], sizes = [16, 128], strides = [1, 1]} : vector<32x128xf32> to vector<16x128xf32>
        %225 = vector.broadcast %223 : vector<1x128xf32> to vector<16x128xf32>
        %226 = arith.mulf %225, %224 : vector<16x128xf32>
        %227 = arith.addf %221, %226 : vector<16x128xf32>
        %c15_i32_77 = arith.constant 15 : i32
        %228 = tpu.dynamic_rotate %140 by %c15_i32_77 dim 0 : vector<32x128xf32>, i32 -> vector<32x128xf32>
        %229 = vector.extract_strided_slice %138 {offsets = [15, 0], sizes = [1, 128], strides = [1, 1]} : vector<16x128xf32> to vector<1x128xf32>
        %230 = vector.extract_strided_slice %228 {offsets = [16, 0], sizes = [16, 128], strides = [1, 1]} : vector<32x128xf32> to vector<16x128xf32>
        %231 = vector.broadcast %229 : vector<1x128xf32> to vector<16x128xf32>
        %232 = arith.mulf %231, %230 : vector<16x128xf32>
        %233 = arith.addf %227, %232 : vector<16x128xf32>
        %c8_i32_78 = arith.constant 8 : i32
        %234 = arith.muli %arg21, %c8_i32_78 : i32
        %c0_i32_79 = arith.constant 0 : i32
        %235 = arith.addi %234, %c0_i32_79 : i32
        %236 = arith.index_cast %235 : i32 to index
        %c0_80 = arith.constant 0 : index
        %c0_81 = arith.constant 0 : index
        %237 = vector.load %arg7[%236, %c0_80, %c0_81] : memref<32x16x128xf32, #tpu.memory_space<vmem>>, vector<1x16x128xf32>
        %238 = vector.shape_cast %237 : vector<1x16x128xf32> to vector<16x128xf32>
        %c8_i32_82 = arith.constant 8 : i32
        %239 = arith.muli %arg21, %c8_i32_82 : i32
        %c0_i32_83 = arith.constant 0 : i32
        %240 = arith.addi %239, %c0_i32_83 : i32
        %241 = arith.index_cast %240 : i32 to index
        %c0_84 = arith.constant 0 : index
        %c0_85 = arith.constant 0 : index
        %242 = vector.load %arg8[%241, %c0_84, %c0_85] : memref<32x16x128xf32, #tpu.memory_space<vmem>>, vector<1x16x128xf32>
        %243 = vector.shape_cast %242 : vector<1x16x128xf32> to vector<16x128xf32>
        %244 = vector.broadcast %arg23 : vector<1x128xf32> to vector<16x128xf32>
        %245 = arith.mulf %238, %244 : vector<16x128xf32>
        %246 = vector.broadcast %arg31 : vector<1x128xf32> to vector<16x128xf32>
        %247 = arith.mulf %243, %246 : vector<16x128xf32>
        %248 = arith.subf %245, %247 : vector<16x128xf32>
        %249 = arith.addf %233, %248 : vector<16x128xf32>
        %250 = arith.mulf %238, %135 : vector<16x128xf32>
        %cst_86 = arith.constant dense<0.000000e+00> : vector<128xf32>
        %251 = vector.multi_reduction <add>, %250, %cst_86 [0] : vector<16x128xf32> to vector<128xf32>
        %252 = vector.shape_cast %251 : vector<128xf32> to vector<1x128xf32>
        %253 = arith.mulf %243, %135 : vector<16x128xf32>
        %cst_87 = arith.constant dense<0.000000e+00> : vector<128xf32>
        %254 = vector.multi_reduction <add>, %253, %cst_87 [0] : vector<16x128xf32> to vector<128xf32>
        %255 = vector.shape_cast %254 : vector<128xf32> to vector<1x128xf32>
        %256 = vector.extract_strided_slice %36 {offsets = [0, 0], sizes = [1, 128], strides = [1, 1]} : vector<8x128xf32> to vector<1x128xf32>
        %257 = vector.extract_strided_slice %39 {offsets = [0, 0], sizes = [1, 128], strides = [1, 1]} : vector<8x128xf32> to vector<1x128xf32>
        %258 = vector.extract_strided_slice %42 {offsets = [0, 0], sizes = [1, 128], strides = [1, 1]} : vector<8x128xf32> to vector<1x128xf32>
        %259 = vector.extract_strided_slice %45 {offsets = [0, 0], sizes = [1, 128], strides = [1, 1]} : vector<8x128xf32> to vector<1x128xf32>
        %260 = arith.mulf %256, %arg23 : vector<1x128xf32>
        %261 = arith.mulf %257, %arg31 : vector<1x128xf32>
        %262 = arith.subf %260, %261 : vector<1x128xf32>
        %263 = arith.mulf %258, %252 : vector<1x128xf32>
        %264 = arith.addf %262, %263 : vector<1x128xf32>
        %265 = arith.mulf %259, %255 : vector<1x128xf32>
        %266 = arith.subf %264, %265 : vector<1x128xf32>
        %267 = arith.mulf %256, %arg31 : vector<1x128xf32>
        %268 = arith.mulf %257, %arg23 : vector<1x128xf32>
        %269 = arith.addf %267, %268 : vector<1x128xf32>
        %270 = arith.mulf %258, %255 : vector<1x128xf32>
        %271 = arith.addf %269, %270 : vector<1x128xf32>
        %272 = arith.mulf %259, %252 : vector<1x128xf32>
        %273 = arith.addf %271, %272 : vector<1x128xf32>
        %c8_i32_88 = arith.constant 8 : i32
        %274 = arith.muli %arg21, %c8_i32_88 : i32
        %c1_i32_89 = arith.constant 1 : i32
        %275 = arith.addi %274, %c1_i32_89 : i32
        %276 = arith.index_cast %275 : i32 to index
        %c0_90 = arith.constant 0 : index
        %c0_91 = arith.constant 0 : index
        %277 = vector.load %arg7[%276, %c0_90, %c0_91] : memref<32x16x128xf32, #tpu.memory_space<vmem>>, vector<1x16x128xf32>
        %278 = vector.shape_cast %277 : vector<1x16x128xf32> to vector<16x128xf32>
        %c8_i32_92 = arith.constant 8 : i32
        %279 = arith.muli %arg21, %c8_i32_92 : i32
        %c1_i32_93 = arith.constant 1 : i32
        %280 = arith.addi %279, %c1_i32_93 : i32
        %281 = arith.index_cast %280 : i32 to index
        %c0_94 = arith.constant 0 : index
        %c0_95 = arith.constant 0 : index
        %282 = vector.load %arg8[%281, %c0_94, %c0_95] : memref<32x16x128xf32, #tpu.memory_space<vmem>>, vector<1x16x128xf32>
        %283 = vector.shape_cast %282 : vector<1x16x128xf32> to vector<16x128xf32>
        %284 = vector.broadcast %arg24 : vector<1x128xf32> to vector<16x128xf32>
        %285 = arith.mulf %278, %284 : vector<16x128xf32>
        %286 = vector.broadcast %arg32 : vector<1x128xf32> to vector<16x128xf32>
        %287 = arith.mulf %283, %286 : vector<16x128xf32>
        %288 = arith.subf %285, %287 : vector<16x128xf32>
        %289 = arith.addf %249, %288 : vector<16x128xf32>
        %290 = arith.mulf %278, %135 : vector<16x128xf32>
        %cst_96 = arith.constant dense<0.000000e+00> : vector<128xf32>
        %291 = vector.multi_reduction <add>, %290, %cst_96 [0] : vector<16x128xf32> to vector<128xf32>
        %292 = vector.shape_cast %291 : vector<128xf32> to vector<1x128xf32>
        %293 = arith.mulf %283, %135 : vector<16x128xf32>
        %cst_97 = arith.constant dense<0.000000e+00> : vector<128xf32>
        %294 = vector.multi_reduction <add>, %293, %cst_97 [0] : vector<16x128xf32> to vector<128xf32>
        %295 = vector.shape_cast %294 : vector<128xf32> to vector<1x128xf32>
        %296 = vector.extract_strided_slice %36 {offsets = [1, 0], sizes = [1, 128], strides = [1, 1]} : vector<8x128xf32> to vector<1x128xf32>
        %297 = vector.extract_strided_slice %39 {offsets = [1, 0], sizes = [1, 128], strides = [1, 1]} : vector<8x128xf32> to vector<1x128xf32>
        %298 = vector.extract_strided_slice %42 {offsets = [1, 0], sizes = [1, 128], strides = [1, 1]} : vector<8x128xf32> to vector<1x128xf32>
        %299 = vector.extract_strided_slice %45 {offsets = [1, 0], sizes = [1, 128], strides = [1, 1]} : vector<8x128xf32> to vector<1x128xf32>
        %300 = arith.mulf %296, %arg24 : vector<1x128xf32>
        %301 = arith.mulf %297, %arg32 : vector<1x128xf32>
        %302 = arith.subf %300, %301 : vector<1x128xf32>
        %303 = arith.mulf %298, %292 : vector<1x128xf32>
        %304 = arith.addf %302, %303 : vector<1x128xf32>
        %305 = arith.mulf %299, %295 : vector<1x128xf32>
        %306 = arith.subf %304, %305 : vector<1x128xf32>
        %307 = arith.mulf %296, %arg32 : vector<1x128xf32>
        %308 = arith.mulf %297, %arg24 : vector<1x128xf32>
        %309 = arith.addf %307, %308 : vector<1x128xf32>
        %310 = arith.mulf %298, %295 : vector<1x128xf32>
        %311 = arith.addf %309, %310 : vector<1x128xf32>
        %312 = arith.mulf %299, %292 : vector<1x128xf32>
        %313 = arith.addf %311, %312 : vector<1x128xf32>
        %c8_i32_98 = arith.constant 8 : i32
        %314 = arith.muli %arg21, %c8_i32_98 : i32
        %c2_i32_99 = arith.constant 2 : i32
        %315 = arith.addi %314, %c2_i32_99 : i32
        %316 = arith.index_cast %315 : i32 to index
        %c0_100 = arith.constant 0 : index
        %c0_101 = arith.constant 0 : index
        %317 = vector.load %arg7[%316, %c0_100, %c0_101] : memref<32x16x128xf32, #tpu.memory_space<vmem>>, vector<1x16x128xf32>
        %318 = vector.shape_cast %317 : vector<1x16x128xf32> to vector<16x128xf32>
        %c8_i32_102 = arith.constant 8 : i32
        %319 = arith.muli %arg21, %c8_i32_102 : i32
        %c2_i32_103 = arith.constant 2 : i32
        %320 = arith.addi %319, %c2_i32_103 : i32
        %321 = arith.index_cast %320 : i32 to index
        %c0_104 = arith.constant 0 : index
        %c0_105 = arith.constant 0 : index
        %322 = vector.load %arg8[%321, %c0_104, %c0_105] : memref<32x16x128xf32, #tpu.memory_space<vmem>>, vector<1x16x128xf32>
        %323 = vector.shape_cast %322 : vector<1x16x128xf32> to vector<16x128xf32>
        %324 = vector.broadcast %arg25 : vector<1x128xf32> to vector<16x128xf32>
        %325 = arith.mulf %318, %324 : vector<16x128xf32>
        %326 = vector.broadcast %arg33 : vector<1x128xf32> to vector<16x128xf32>
        %327 = arith.mulf %323, %326 : vector<16x128xf32>
        %328 = arith.subf %325, %327 : vector<16x128xf32>
        %329 = arith.addf %289, %328 : vector<16x128xf32>
        %330 = arith.mulf %318, %135 : vector<16x128xf32>
        %cst_106 = arith.constant dense<0.000000e+00> : vector<128xf32>
        %331 = vector.multi_reduction <add>, %330, %cst_106 [0] : vector<16x128xf32> to vector<128xf32>
        %332 = vector.shape_cast %331 : vector<128xf32> to vector<1x128xf32>
        %333 = arith.mulf %323, %135 : vector<16x128xf32>
        %cst_107 = arith.constant dense<0.000000e+00> : vector<128xf32>
        %334 = vector.multi_reduction <add>, %333, %cst_107 [0] : vector<16x128xf32> to vector<128xf32>
        %335 = vector.shape_cast %334 : vector<128xf32> to vector<1x128xf32>
        %336 = vector.extract_strided_slice %36 {offsets = [2, 0], sizes = [1, 128], strides = [1, 1]} : vector<8x128xf32> to vector<1x128xf32>
        %337 = vector.extract_strided_slice %39 {offsets = [2, 0], sizes = [1, 128], strides = [1, 1]} : vector<8x128xf32> to vector<1x128xf32>
        %338 = vector.extract_strided_slice %42 {offsets = [2, 0], sizes = [1, 128], strides = [1, 1]} : vector<8x128xf32> to vector<1x128xf32>
        %339 = vector.extract_strided_slice %45 {offsets = [2, 0], sizes = [1, 128], strides = [1, 1]} : vector<8x128xf32> to vector<1x128xf32>
        %340 = arith.mulf %336, %arg25 : vector<1x128xf32>
        %341 = arith.mulf %337, %arg33 : vector<1x128xf32>
        %342 = arith.subf %340, %341 : vector<1x128xf32>
        %343 = arith.mulf %338, %332 : vector<1x128xf32>
        %344 = arith.addf %342, %343 : vector<1x128xf32>
        %345 = arith.mulf %339, %335 : vector<1x128xf32>
        %346 = arith.subf %344, %345 : vector<1x128xf32>
        %347 = arith.mulf %336, %arg33 : vector<1x128xf32>
        %348 = arith.mulf %337, %arg25 : vector<1x128xf32>
        %349 = arith.addf %347, %348 : vector<1x128xf32>
        %350 = arith.mulf %338, %335 : vector<1x128xf32>
        %351 = arith.addf %349, %350 : vector<1x128xf32>
        %352 = arith.mulf %339, %332 : vector<1x128xf32>
        %353 = arith.addf %351, %352 : vector<1x128xf32>
        %c8_i32_108 = arith.constant 8 : i32
        %354 = arith.muli %arg21, %c8_i32_108 : i32
        %c3_i32_109 = arith.constant 3 : i32
        %355 = arith.addi %354, %c3_i32_109 : i32
        %356 = arith.index_cast %355 : i32 to index
        %c0_110 = arith.constant 0 : index
        %c0_111 = arith.constant 0 : index
        %357 = vector.load %arg7[%356, %c0_110, %c0_111] : memref<32x16x128xf32, #tpu.memory_space<vmem>>, vector<1x16x128xf32>
        %358 = vector.shape_cast %357 : vector<1x16x128xf32> to vector<16x128xf32>
        %c8_i32_112 = arith.constant 8 : i32
        %359 = arith.muli %arg21, %c8_i32_112 : i32
        %c3_i32_113 = arith.constant 3 : i32
        %360 = arith.addi %359, %c3_i32_113 : i32
        %361 = arith.index_cast %360 : i32 to index
        %c0_114 = arith.constant 0 : index
        %c0_115 = arith.constant 0 : index
        %362 = vector.load %arg8[%361, %c0_114, %c0_115] : memref<32x16x128xf32, #tpu.memory_space<vmem>>, vector<1x16x128xf32>
        %363 = vector.shape_cast %362 : vector<1x16x128xf32> to vector<16x128xf32>
        %364 = vector.broadcast %arg26 : vector<1x128xf32> to vector<16x128xf32>
        %365 = arith.mulf %358, %364 : vector<16x128xf32>
        %366 = vector.broadcast %arg34 : vector<1x128xf32> to vector<16x128xf32>
        %367 = arith.mulf %363, %366 : vector<16x128xf32>
        %368 = arith.subf %365, %367 : vector<16x128xf32>
        %369 = arith.addf %329, %368 : vector<16x128xf32>
        %370 = arith.mulf %358, %135 : vector<16x128xf32>
        %cst_116 = arith.constant dense<0.000000e+00> : vector<128xf32>
        %371 = vector.multi_reduction <add>, %370, %cst_116 [0] : vector<16x128xf32> to vector<128xf32>
        %372 = vector.shape_cast %371 : vector<128xf32> to vector<1x128xf32>
        %373 = arith.mulf %363, %135 : vector<16x128xf32>
        %cst_117 = arith.constant dense<0.000000e+00> : vector<128xf32>
        %374 = vector.multi_reduction <add>, %373, %cst_117 [0] : vector<16x128xf32> to vector<128xf32>
        %375 = vector.shape_cast %374 : vector<128xf32> to vector<1x128xf32>
        %376 = vector.extract_strided_slice %36 {offsets = [3, 0], sizes = [1, 128], strides = [1, 1]} : vector<8x128xf32> to vector<1x128xf32>
        %377 = vector.extract_strided_slice %39 {offsets = [3, 0], sizes = [1, 128], strides = [1, 1]} : vector<8x128xf32> to vector<1x128xf32>
        %378 = vector.extract_strided_slice %42 {offsets = [3, 0], sizes = [1, 128], strides = [1, 1]} : vector<8x128xf32> to vector<1x128xf32>
        %379 = vector.extract_strided_slice %45 {offsets = [3, 0], sizes = [1, 128], strides = [1, 1]} : vector<8x128xf32> to vector<1x128xf32>
        %380 = arith.mulf %376, %arg26 : vector<1x128xf32>
        %381 = arith.mulf %377, %arg34 : vector<1x128xf32>
        %382 = arith.subf %380, %381 : vector<1x128xf32>
        %383 = arith.mulf %378, %372 : vector<1x128xf32>
        %384 = arith.addf %382, %383 : vector<1x128xf32>
        %385 = arith.mulf %379, %375 : vector<1x128xf32>
        %386 = arith.subf %384, %385 : vector<1x128xf32>
        %387 = arith.mulf %376, %arg34 : vector<1x128xf32>
        %388 = arith.mulf %377, %arg26 : vector<1x128xf32>
        %389 = arith.addf %387, %388 : vector<1x128xf32>
        %390 = arith.mulf %378, %375 : vector<1x128xf32>
        %391 = arith.addf %389, %390 : vector<1x128xf32>
        %392 = arith.mulf %379, %372 : vector<1x128xf32>
        %393 = arith.addf %391, %392 : vector<1x128xf32>
        %c8_i32_118 = arith.constant 8 : i32
        %394 = arith.muli %arg21, %c8_i32_118 : i32
        %c4_i32_119 = arith.constant 4 : i32
        %395 = arith.addi %394, %c4_i32_119 : i32
        %396 = arith.index_cast %395 : i32 to index
        %c0_120 = arith.constant 0 : index
        %c0_121 = arith.constant 0 : index
        %397 = vector.load %arg7[%396, %c0_120, %c0_121] : memref<32x16x128xf32, #tpu.memory_space<vmem>>, vector<1x16x128xf32>
        %398 = vector.shape_cast %397 : vector<1x16x128xf32> to vector<16x128xf32>
        %c8_i32_122 = arith.constant 8 : i32
        %399 = arith.muli %arg21, %c8_i32_122 : i32
        %c4_i32_123 = arith.constant 4 : i32
        %400 = arith.addi %399, %c4_i32_123 : i32
        %401 = arith.index_cast %400 : i32 to index
        %c0_124 = arith.constant 0 : index
        %c0_125 = arith.constant 0 : index
        %402 = vector.load %arg8[%401, %c0_124, %c0_125] : memref<32x16x128xf32, #tpu.memory_space<vmem>>, vector<1x16x128xf32>
        %403 = vector.shape_cast %402 : vector<1x16x128xf32> to vector<16x128xf32>
        %404 = vector.broadcast %arg27 : vector<1x128xf32> to vector<16x128xf32>
        %405 = arith.mulf %398, %404 : vector<16x128xf32>
        %406 = vector.broadcast %arg35 : vector<1x128xf32> to vector<16x128xf32>
        %407 = arith.mulf %403, %406 : vector<16x128xf32>
        %408 = arith.subf %405, %407 : vector<16x128xf32>
        %409 = arith.addf %369, %408 : vector<16x128xf32>
        %410 = arith.mulf %398, %135 : vector<16x128xf32>
        %cst_126 = arith.constant dense<0.000000e+00> : vector<128xf32>
        %411 = vector.multi_reduction <add>, %410, %cst_126 [0] : vector<16x128xf32> to vector<128xf32>
        %412 = vector.shape_cast %411 : vector<128xf32> to vector<1x128xf32>
        %413 = arith.mulf %403, %135 : vector<16x128xf32>
        %cst_127 = arith.constant dense<0.000000e+00> : vector<128xf32>
        %414 = vector.multi_reduction <add>, %413, %cst_127 [0] : vector<16x128xf32> to vector<128xf32>
        %415 = vector.shape_cast %414 : vector<128xf32> to vector<1x128xf32>
        %416 = vector.extract_strided_slice %36 {offsets = [4, 0], sizes = [1, 128], strides = [1, 1]} : vector<8x128xf32> to vector<1x128xf32>
        %417 = vector.extract_strided_slice %39 {offsets = [4, 0], sizes = [1, 128], strides = [1, 1]} : vector<8x128xf32> to vector<1x128xf32>
        %418 = vector.extract_strided_slice %42 {offsets = [4, 0], sizes = [1, 128], strides = [1, 1]} : vector<8x128xf32> to vector<1x128xf32>
        %419 = vector.extract_strided_slice %45 {offsets = [4, 0], sizes = [1, 128], strides = [1, 1]} : vector<8x128xf32> to vector<1x128xf32>
        %420 = arith.mulf %416, %arg27 : vector<1x128xf32>
        %421 = arith.mulf %417, %arg35 : vector<1x128xf32>
        %422 = arith.subf %420, %421 : vector<1x128xf32>
        %423 = arith.mulf %418, %412 : vector<1x128xf32>
        %424 = arith.addf %422, %423 : vector<1x128xf32>
        %425 = arith.mulf %419, %415 : vector<1x128xf32>
        %426 = arith.subf %424, %425 : vector<1x128xf32>
        %427 = arith.mulf %416, %arg35 : vector<1x128xf32>
        %428 = arith.mulf %417, %arg27 : vector<1x128xf32>
        %429 = arith.addf %427, %428 : vector<1x128xf32>
        %430 = arith.mulf %418, %415 : vector<1x128xf32>
        %431 = arith.addf %429, %430 : vector<1x128xf32>
        %432 = arith.mulf %419, %412 : vector<1x128xf32>
        %433 = arith.addf %431, %432 : vector<1x128xf32>
        %c8_i32_128 = arith.constant 8 : i32
        %434 = arith.muli %arg21, %c8_i32_128 : i32
        %c5_i32_129 = arith.constant 5 : i32
        %435 = arith.addi %434, %c5_i32_129 : i32
        %436 = arith.index_cast %435 : i32 to index
        %c0_130 = arith.constant 0 : index
        %c0_131 = arith.constant 0 : index
        %437 = vector.load %arg7[%436, %c0_130, %c0_131] : memref<32x16x128xf32, #tpu.memory_space<vmem>>, vector<1x16x128xf32>
        %438 = vector.shape_cast %437 : vector<1x16x128xf32> to vector<16x128xf32>
        %c8_i32_132 = arith.constant 8 : i32
        %439 = arith.muli %arg21, %c8_i32_132 : i32
        %c5_i32_133 = arith.constant 5 : i32
        %440 = arith.addi %439, %c5_i32_133 : i32
        %441 = arith.index_cast %440 : i32 to index
        %c0_134 = arith.constant 0 : index
        %c0_135 = arith.constant 0 : index
        %442 = vector.load %arg8[%441, %c0_134, %c0_135] : memref<32x16x128xf32, #tpu.memory_space<vmem>>, vector<1x16x128xf32>
        %443 = vector.shape_cast %442 : vector<1x16x128xf32> to vector<16x128xf32>
        %444 = vector.broadcast %arg28 : vector<1x128xf32> to vector<16x128xf32>
        %445 = arith.mulf %438, %444 : vector<16x128xf32>
        %446 = vector.broadcast %arg36 : vector<1x128xf32> to vector<16x128xf32>
        %447 = arith.mulf %443, %446 : vector<16x128xf32>
        %448 = arith.subf %445, %447 : vector<16x128xf32>
        %449 = arith.addf %409, %448 : vector<16x128xf32>
        %450 = arith.mulf %438, %135 : vector<16x128xf32>
        %cst_136 = arith.constant dense<0.000000e+00> : vector<128xf32>
        %451 = vector.multi_reduction <add>, %450, %cst_136 [0] : vector<16x128xf32> to vector<128xf32>
        %452 = vector.shape_cast %451 : vector<128xf32> to vector<1x128xf32>
        %453 = arith.mulf %443, %135 : vector<16x128xf32>
        %cst_137 = arith.constant dense<0.000000e+00> : vector<128xf32>
        %454 = vector.multi_reduction <add>, %453, %cst_137 [0] : vector<16x128xf32> to vector<128xf32>
        %455 = vector.shape_cast %454 : vector<128xf32> to vector<1x128xf32>
        %456 = vector.extract_strided_slice %36 {offsets = [5, 0], sizes = [1, 128], strides = [1, 1]} : vector<8x128xf32> to vector<1x128xf32>
        %457 = vector.extract_strided_slice %39 {offsets = [5, 0], sizes = [1, 128], strides = [1, 1]} : vector<8x128xf32> to vector<1x128xf32>
        %458 = vector.extract_strided_slice %42 {offsets = [5, 0], sizes = [1, 128], strides = [1, 1]} : vector<8x128xf32> to vector<1x128xf32>
        %459 = vector.extract_strided_slice %45 {offsets = [5, 0], sizes = [1, 128], strides = [1, 1]} : vector<8x128xf32> to vector<1x128xf32>
        %460 = arith.mulf %456, %arg28 : vector<1x128xf32>
        %461 = arith.mulf %457, %arg36 : vector<1x128xf32>
        %462 = arith.subf %460, %461 : vector<1x128xf32>
        %463 = arith.mulf %458, %452 : vector<1x128xf32>
        %464 = arith.addf %462, %463 : vector<1x128xf32>
        %465 = arith.mulf %459, %455 : vector<1x128xf32>
        %466 = arith.subf %464, %465 : vector<1x128xf32>
        %467 = arith.mulf %456, %arg36 : vector<1x128xf32>
        %468 = arith.mulf %457, %arg28 : vector<1x128xf32>
        %469 = arith.addf %467, %468 : vector<1x128xf32>
        %470 = arith.mulf %458, %455 : vector<1x128xf32>
        %471 = arith.addf %469, %470 : vector<1x128xf32>
        %472 = arith.mulf %459, %452 : vector<1x128xf32>
        %473 = arith.addf %471, %472 : vector<1x128xf32>
        %c8_i32_138 = arith.constant 8 : i32
        %474 = arith.muli %arg21, %c8_i32_138 : i32
        %c6_i32_139 = arith.constant 6 : i32
        %475 = arith.addi %474, %c6_i32_139 : i32
        %476 = arith.index_cast %475 : i32 to index
        %c0_140 = arith.constant 0 : index
        %c0_141 = arith.constant 0 : index
        %477 = vector.load %arg7[%476, %c0_140, %c0_141] : memref<32x16x128xf32, #tpu.memory_space<vmem>>, vector<1x16x128xf32>
        %478 = vector.shape_cast %477 : vector<1x16x128xf32> to vector<16x128xf32>
        %c8_i32_142 = arith.constant 8 : i32
        %479 = arith.muli %arg21, %c8_i32_142 : i32
        %c6_i32_143 = arith.constant 6 : i32
        %480 = arith.addi %479, %c6_i32_143 : i32
        %481 = arith.index_cast %480 : i32 to index
        %c0_144 = arith.constant 0 : index
        %c0_145 = arith.constant 0 : index
        %482 = vector.load %arg8[%481, %c0_144, %c0_145] : memref<32x16x128xf32, #tpu.memory_space<vmem>>, vector<1x16x128xf32>
        %483 = vector.shape_cast %482 : vector<1x16x128xf32> to vector<16x128xf32>
        %484 = vector.broadcast %arg29 : vector<1x128xf32> to vector<16x128xf32>
        %485 = arith.mulf %478, %484 : vector<16x128xf32>
        %486 = vector.broadcast %arg37 : vector<1x128xf32> to vector<16x128xf32>
        %487 = arith.mulf %483, %486 : vector<16x128xf32>
        %488 = arith.subf %485, %487 : vector<16x128xf32>
        %489 = arith.addf %449, %488 : vector<16x128xf32>
        %490 = arith.mulf %478, %135 : vector<16x128xf32>
        %cst_146 = arith.constant dense<0.000000e+00> : vector<128xf32>
        %491 = vector.multi_reduction <add>, %490, %cst_146 [0] : vector<16x128xf32> to vector<128xf32>
        %492 = vector.shape_cast %491 : vector<128xf32> to vector<1x128xf32>
        %493 = arith.mulf %483, %135 : vector<16x128xf32>
        %cst_147 = arith.constant dense<0.000000e+00> : vector<128xf32>
        %494 = vector.multi_reduction <add>, %493, %cst_147 [0] : vector<16x128xf32> to vector<128xf32>
        %495 = vector.shape_cast %494 : vector<128xf32> to vector<1x128xf32>
        %496 = vector.extract_strided_slice %36 {offsets = [6, 0], sizes = [1, 128], strides = [1, 1]} : vector<8x128xf32> to vector<1x128xf32>
        %497 = vector.extract_strided_slice %39 {offsets = [6, 0], sizes = [1, 128], strides = [1, 1]} : vector<8x128xf32> to vector<1x128xf32>
        %498 = vector.extract_strided_slice %42 {offsets = [6, 0], sizes = [1, 128], strides = [1, 1]} : vector<8x128xf32> to vector<1x128xf32>
        %499 = vector.extract_strided_slice %45 {offsets = [6, 0], sizes = [1, 128], strides = [1, 1]} : vector<8x128xf32> to vector<1x128xf32>
        %500 = arith.mulf %496, %arg29 : vector<1x128xf32>
        %501 = arith.mulf %497, %arg37 : vector<1x128xf32>
        %502 = arith.subf %500, %501 : vector<1x128xf32>
        %503 = arith.mulf %498, %492 : vector<1x128xf32>
        %504 = arith.addf %502, %503 : vector<1x128xf32>
        %505 = arith.mulf %499, %495 : vector<1x128xf32>
        %506 = arith.subf %504, %505 : vector<1x128xf32>
        %507 = arith.mulf %496, %arg37 : vector<1x128xf32>
        %508 = arith.mulf %497, %arg29 : vector<1x128xf32>
        %509 = arith.addf %507, %508 : vector<1x128xf32>
        %510 = arith.mulf %498, %495 : vector<1x128xf32>
        %511 = arith.addf %509, %510 : vector<1x128xf32>
        %512 = arith.mulf %499, %492 : vector<1x128xf32>
        %513 = arith.addf %511, %512 : vector<1x128xf32>
        %c8_i32_148 = arith.constant 8 : i32
        %514 = arith.muli %arg21, %c8_i32_148 : i32
        %c7_i32_149 = arith.constant 7 : i32
        %515 = arith.addi %514, %c7_i32_149 : i32
        %516 = arith.index_cast %515 : i32 to index
        %c0_150 = arith.constant 0 : index
        %c0_151 = arith.constant 0 : index
        %517 = vector.load %arg7[%516, %c0_150, %c0_151] : memref<32x16x128xf32, #tpu.memory_space<vmem>>, vector<1x16x128xf32>
        %518 = vector.shape_cast %517 : vector<1x16x128xf32> to vector<16x128xf32>
        %c8_i32_152 = arith.constant 8 : i32
        %519 = arith.muli %arg21, %c8_i32_152 : i32
        %c7_i32_153 = arith.constant 7 : i32
        %520 = arith.addi %519, %c7_i32_153 : i32
        %521 = arith.index_cast %520 : i32 to index
        %c0_154 = arith.constant 0 : index
        %c0_155 = arith.constant 0 : index
        %522 = vector.load %arg8[%521, %c0_154, %c0_155] : memref<32x16x128xf32, #tpu.memory_space<vmem>>, vector<1x16x128xf32>
        %523 = vector.shape_cast %522 : vector<1x16x128xf32> to vector<16x128xf32>
        %524 = vector.broadcast %arg30 : vector<1x128xf32> to vector<16x128xf32>
        %525 = arith.mulf %518, %524 : vector<16x128xf32>
        %526 = vector.broadcast %arg38 : vector<1x128xf32> to vector<16x128xf32>
        %527 = arith.mulf %523, %526 : vector<16x128xf32>
        %528 = arith.subf %525, %527 : vector<16x128xf32>
        %529 = arith.addf %489, %528 : vector<16x128xf32>
        %530 = arith.mulf %518, %135 : vector<16x128xf32>
        %cst_156 = arith.constant dense<0.000000e+00> : vector<128xf32>
        %531 = vector.multi_reduction <add>, %530, %cst_156 [0] : vector<16x128xf32> to vector<128xf32>
        %532 = vector.shape_cast %531 : vector<128xf32> to vector<1x128xf32>
        %533 = arith.mulf %523, %135 : vector<16x128xf32>
        %cst_157 = arith.constant dense<0.000000e+00> : vector<128xf32>
        %534 = vector.multi_reduction <add>, %533, %cst_157 [0] : vector<16x128xf32> to vector<128xf32>
        %535 = vector.shape_cast %534 : vector<128xf32> to vector<1x128xf32>
        %536 = vector.extract_strided_slice %36 {offsets = [7, 0], sizes = [1, 128], strides = [1, 1]} : vector<8x128xf32> to vector<1x128xf32>
        %537 = vector.extract_strided_slice %39 {offsets = [7, 0], sizes = [1, 128], strides = [1, 1]} : vector<8x128xf32> to vector<1x128xf32>
        %538 = vector.extract_strided_slice %42 {offsets = [7, 0], sizes = [1, 128], strides = [1, 1]} : vector<8x128xf32> to vector<1x128xf32>
        %539 = vector.extract_strided_slice %45 {offsets = [7, 0], sizes = [1, 128], strides = [1, 1]} : vector<8x128xf32> to vector<1x128xf32>
        %540 = arith.mulf %536, %arg30 : vector<1x128xf32>
        %541 = arith.mulf %537, %arg38 : vector<1x128xf32>
        %542 = arith.subf %540, %541 : vector<1x128xf32>
        %543 = arith.mulf %538, %532 : vector<1x128xf32>
        %544 = arith.addf %542, %543 : vector<1x128xf32>
        %545 = arith.mulf %539, %535 : vector<1x128xf32>
        %546 = arith.subf %544, %545 : vector<1x128xf32>
        %547 = arith.mulf %536, %arg38 : vector<1x128xf32>
        %548 = arith.mulf %537, %arg30 : vector<1x128xf32>
        %549 = arith.addf %547, %548 : vector<1x128xf32>
        %550 = arith.mulf %538, %535 : vector<1x128xf32>
        %551 = arith.addf %549, %550 : vector<1x128xf32>
        %552 = arith.mulf %539, %532 : vector<1x128xf32>
        %553 = arith.addf %551, %552 : vector<1x128xf32>
        %554 = arith.index_cast %132 : i32 to index
        %c0_158 = arith.constant 0 : index
        %555 = vector.load %arg20[%554, %c0_158] : memref<32x128xf32, #tpu.memory_space<vmem>>, vector<16x128xf32>
        tpu.vector_store %arg20[%554, %c0_158], %529 {strides = array<i32>} : memref<32x128xf32, #tpu.memory_space<vmem>>, vector<16x128xf32>,
        scf.yield %266, %306, %346, %386, %426, %466, %506, %546, %273, %313, %353, %393, %433, %473, %513, %553 : vector<1x128xf32>, vector<1x128xf32>, vector<1x128xf32>, vector<1x128xf32>, vector<1x128xf32>, vector<1x128xf32>, vector<1x128xf32>, vector<1x128xf32>, vector<1x128xf32>, vector<1x128xf32>, vector<1x128xf32>, vector<1x128xf32>, vector<1x128xf32>, vector<1x128xf32>, vector<1x128xf32>, vector<1x128xf32>
      }
      %c2_i32_40 = arith.constant 2 : i32
      %56 = arith.index_cast %arg21 : i32 to index
      %c0_41 = arith.constant 0 : index
      %c0_42 = arith.constant 0 : index
      %57 = vector.load %arg13[%56, %c0_41, %c0_42] : memref<4x1x128xf32, #tpu.memory_space<vmem>>, vector<1x1x128xf32>
      %58 = vector.shape_cast %57 : vector<1x1x128xf32> to vector<1x128xf32>
      %59 = arith.index_cast %arg21 : i32 to index
      %c0_43 = arith.constant 0 : index
      %c0_44 = arith.constant 0 : index
      %60 = vector.load %arg15[%59, %c0_43, %c0_44] : memref<4x1x256xf32, #tpu.memory_space<vmem>>, vector<1x1x256xf32>
      %61 = vector.shape_cast %60 : vector<1x1x256xf32> to vector<1x256xf32>
      %62 = arith.index_cast %arg21 : i32 to index
      %c0_45 = arith.constant 0 : index
      %c0_46 = arith.constant 0 : index
      %63 = vector.load %arg16[%62, %c0_45, %c0_46] : memref<4x1x128xf32, #tpu.memory_space<vmem>>, vector<1x1x128xf32>
      %64 = vector.shape_cast %63 : vector<1x1x128xf32> to vector<1x128xf32>
      %65 = arith.index_cast %arg21 : i32 to index
      %c0_47 = arith.constant 0 : index
      %c0_48 = arith.constant 0 : index
      %66 = vector.load %arg17[%65, %c0_47, %c0_48] : memref<4x1x128xf32, #tpu.memory_space<vmem>>, vector<1x1x128xf32>
      %67 = vector.shape_cast %66 : vector<1x1x128xf32> to vector<1x128xf32>
      %c0_i32_49 = arith.constant 0 : i32
      %c32_i32_50 = arith.constant 32 : i32
      %68 = arith.muli %c0_i32_49, %c32_i32_50 : i32
      %69 = tpu.assume_multiple %68, 8 : i32
      %70 = arith.index_cast %69 : i32 to index
      %c0_51 = arith.constant 0 : index
      %71 = vector.load %arg19[%70, %c0_51] : memref<32x128xf32, #tpu.memory_space<vmem>>, vector<32x128xf32>
      %72 = arith.index_cast %69 : i32 to index
      %c0_52 = arith.constant 0 : index
      %73 = vector.load %arg20[%72, %c0_52] : memref<32x128xf32, #tpu.memory_space<vmem>>, vector<32x128xf32>
      %74 = vector.broadcast %58 : vector<1x128xf32> to vector<32x128xf32>
      %75 = arith.mulf %74, %71 : vector<32x128xf32>
      %76 = arith.addf %73, %75 : vector<32x128xf32>
      %77 = arith.mulf %76, %76 : vector<32x128xf32>
      %78 = arith.mulf %76, %77 : vector<32x128xf32>
      %cst_53 = arith.constant 4.471500e-02 : f32
      %79 = vector.broadcast %cst_53 : f32 to vector<32x128xf32>
      %80 = arith.mulf %79, %78 : vector<32x128xf32>
      %81 = arith.addf %76, %80 : vector<32x128xf32>
      %cst_54 = arith.constant 0.797884583 : f32
      %82 = vector.broadcast %cst_54 : f32 to vector<32x128xf32>
      %83 = arith.mulf %82, %81 : vector<32x128xf32>
      %84 = math.tanh %83 : vector<32x128xf32>
      %cst_55 = arith.constant 1.000000e+00 : f32
      %85 = vector.broadcast %cst_55 : f32 to vector<32x128xf32>
      %86 = arith.addf %85, %84 : vector<32x128xf32>
      %cst_56 = arith.constant 5.000000e-01 : f32
      %87 = vector.broadcast %cst_56 : f32 to vector<32x128xf32>
      %88 = arith.mulf %87, %86 : vector<32x128xf32>
      %89 = arith.mulf %76, %88 : vector<32x128xf32>
      %90 = arith.index_cast %arg21 : i32 to index
      %c0_57 = arith.constant 0 : index
      %c0_58 = arith.constant 0 : index
      %91 = vector.load %arg14[%90, %c0_57, %c0_58] : memref<4x128x256xf32, #tpu.memory_space<vmem>>, vector<1x128x256xf32>
      %92 = vector.shape_cast %91 : vector<1x128x256xf32> to vector<128x256xf32>
      %cst_59 = arith.constant dense<0.000000e+00> : vector<32x256xf32>
      %93 = tpu.matmul %89, %92, %cst_59 {dimension_numbers = #tpu.dot_dimension_numbers<[1], [0], [0], [1], [0, 0, 1, 1], [], []>} : vector<32x128xf32>, vector<128x256xf32>, vector<32x256xf32> -> vector<32x256xf32>
      %94 = vector.broadcast %61 : vector<1x256xf32> to vector<32x256xf32>
      %95 = arith.addf %93, %94 : vector<32x256xf32>
      %96 = vector.extract_strided_slice %95 {offsets = [0, 0], sizes = [32, 128], strides = [1, 1]} : vector<32x256xf32> to vector<32x128xf32>
      %97 = vector.extract_strided_slice %95 {offsets = [0, 128], sizes = [32, 128], strides = [1, 1]} : vector<32x256xf32> to vector<32x128xf32>
      %98 = arith.negf %97 : vector<32x128xf32>
      %99 = math.exp %98 : vector<32x128xf32>
      %cst_60 = arith.constant 1.000000e+00 : f32
      %100 = vector.broadcast %cst_60 : f32 to vector<32x128xf32>
      %101 = arith.addf %100, %99 : vector<32x128xf32>
      %102 = arith.divf %100, %101 : vector<32x128xf32>
      %103 = arith.mulf %96, %102 : vector<32x128xf32>
      %104 = arith.addf %103, %71 : vector<32x128xf32>
      %cst_61 = arith.constant dense<0.000000e+00> : vector<32xf32>
      %105 = vector.multi_reduction <add>, %104, %cst_61 [1] : vector<32x128xf32> to vector<32xf32>
      %106 = vector.shape_cast %105 : vector<32xf32> to vector<32x1xf32>
      %cst_62 = arith.constant 3.125000e-02 : f32
      %107 = vector.broadcast %cst_62 : f32 to vector<32x1xf32>
      %108 = arith.mulf %106, %107 : vector<32x1xf32>
      %109 = arith.mulf %104, %104 : vector<32x128xf32>
      %cst_63 = arith.constant dense<0.000000e+00> : vector<32xf32>
      %110 = vector.multi_reduction <add>, %109, %cst_63 [1] : vector<32x128xf32> to vector<32xf32>
      %111 = vector.shape_cast %110 : vector<32xf32> to vector<32x1xf32>
      %cst_64 = arith.constant 3.125000e-02 : f32
      %112 = vector.broadcast %cst_64 : f32 to vector<32x1xf32>
      %113 = arith.mulf %111, %112 : vector<32x1xf32>
      %114 = arith.mulf %108, %108 : vector<32x1xf32>
      %115 = arith.subf %113, %114 : vector<32x1xf32>
      %cst_65 = arith.constant 0.000000e+00 : f32
      %116 = vector.broadcast %cst_65 : f32 to vector<32x1xf32>
      %117 = arith.maximumf %115, %116 : vector<32x1xf32>
      %118 = vector.broadcast %108 : vector<32x1xf32> to vector<32x128xf32>
      %119 = arith.subf %104, %118 : vector<32x128xf32>
      %cst_66 = arith.constant 9.99999974E-6 : f32
      %120 = vector.broadcast %cst_66 : f32 to vector<32x1xf32>
      %121 = arith.addf %117, %120 : vector<32x1xf32>
      %122 = math.rsqrt %121 : vector<32x1xf32>
      %123 = vector.broadcast %122 : vector<32x1xf32> to vector<32x128xf32>
      %124 = arith.mulf %119, %123 : vector<32x128xf32>
      %125 = vector.broadcast %64 : vector<1x128xf32> to vector<32x128xf32>
      %126 = arith.mulf %124, %125 : vector<32x128xf32>
      %127 = vector.broadcast %67 : vector<1x128xf32> to vector<32x128xf32>
      %128 = arith.addf %126, %127 : vector<32x128xf32>
      %129 = arith.index_cast %69 : i32 to index
      %c0_67 = arith.constant 0 : index
      %130 = vector.load %arg19[%129, %c0_67] : memref<32x128xf32, #tpu.memory_space<vmem>>, vector<32x128xf32>
      tpu.vector_store %arg19[%129, %c0_67], %128 {strides = array<i32>} : memref<32x128xf32, #tpu.memory_space<vmem>>, vector<32x128xf32>,
      %c1_i32_68 = arith.constant 1 : i32
    }
    %c4_i32_10 = arith.constant 4 : i32
    %c0_i32_11 = arith.constant 0 : i32
    %c32_i32_12 = arith.constant 32 : i32
    %21 = arith.muli %c0_i32_11, %c32_i32_12 : i32
    %22 = tpu.assume_multiple %21, 8 : i32
    %23 = arith.index_cast %22 : i32 to index
    %c0_13 = arith.constant 0 : index
    %24 = vector.load %arg19[%23, %c0_13] : memref<32x128xf32, #tpu.memory_space<vmem>>, vector<32x128xf32>
    %c0_14 = arith.constant 0 : index
    %c0_15 = arith.constant 0 : index
    %25 = vector.load %arg4[%c0_14, %c0_15] : memref<128x128xf32, #tpu.memory_space<vmem>>, vector<128x128xf32>
    %cst_16 = arith.constant dense<0.000000e+00> : vector<32x128xf32>
    %26 = tpu.matmul %24, %25, %cst_16 {dimension_numbers = #tpu.dot_dimension_numbers<[1], [0], [0], [1], [0, 0, 1, 1], [], []>} : vector<32x128xf32>, vector<128x128xf32>, vector<32x128xf32> -> vector<32x128xf32>
    %c0_17 = arith.constant 0 : index
    %c0_18 = arith.constant 0 : index
    %27 = vector.load %arg5[%c0_17, %c0_18] : memref<1x128xf32, #tpu.memory_space<vmem>>, vector<1x128xf32>
    %28 = vector.broadcast %27 : vector<1x128xf32> to vector<32x128xf32>
    %29 = arith.addf %26, %28 : vector<32x128xf32>
    %c0_19 = arith.constant 0 : index
    %30 = arith.index_cast %22 : i32 to index
    %c0_20 = arith.constant 0 : index
    %31 = vector.load %arg18[%c0_19, %30, %c0_20] : memref<1x32x128xf32, #tpu.memory_space<vmem>>, vector<1x32x128xf32>
    %32 = vector.shape_cast %31 : vector<1x32x128xf32> to vector<32x128xf32>
    %33 = vector.shape_cast %29 : vector<32x128xf32> to vector<1x32x128xf32>
    tpu.vector_store %arg18[%c0_19, %30, %c0_20], %33 {strides = array<i32>} : memref<1x32x128xf32, #tpu.memory_space<vmem>>, vector<1x32x128xf32>,
    %c1_i32_21 = arith.constant 1 : i32
    return
  }
  func.func @transform_0(%arg0: i32) -> (i32, i32, i32) {
    %c0_i32 = arith.constant 0 : i32
    %c0_i32_0 = arith.constant 0 : i32
    %c0_i32_1 = arith.constant 0 : i32
    return %arg0, %c0_i32, %c0_i32_0 : i32, i32, i32
  }
  func.func @transform_1(%arg0: i32) -> (i32, i32) {
    %c0_i32 = arith.constant 0 : i32
    %c0_i32_0 = arith.constant 0 : i32
    %c0_i32_1 = arith.constant 0 : i32
    return %c0_i32, %c0_i32_0 : i32, i32
  }
  func.func @transform_2(%arg0: i32) -> (i32, i32) {
    %c0_i32 = arith.constant 0 : i32
    %c0_i32_0 = arith.constant 0 : i32
    %c0_i32_1 = arith.constant 0 : i32
    return %c0_i32, %c0_i32_0 : i32, i32
  }
  func.func @transform_3(%arg0: i32) -> (i32, i32) {
    %c0_i32 = arith.constant 0 : i32
    %c0_i32_0 = arith.constant 0 : i32
    %c0_i32_1 = arith.constant 0 : i32
    return %c0_i32, %c0_i32_0 : i32, i32
  }
  func.func @transform_4(%arg0: i32) -> (i32, i32) {
    %c0_i32 = arith.constant 0 : i32
    %c0_i32_0 = arith.constant 0 : i32
    %c0_i32_1 = arith.constant 0 : i32
    return %c0_i32, %c0_i32_0 : i32, i32
  }
  func.func @transform_5(%arg0: i32) -> (i32, i32, i32) {
    %c0_i32 = arith.constant 0 : i32
    %c0_i32_0 = arith.constant 0 : i32
    %c0_i32_1 = arith.constant 0 : i32
    %c0_i32_2 = arith.constant 0 : i32
    return %c0_i32, %c0_i32_0, %c0_i32_1 : i32, i32, i32
  }
  func.func @transform_6(%arg0: i32) -> (i32, i32, i32) {
    %c0_i32 = arith.constant 0 : i32
    %c0_i32_0 = arith.constant 0 : i32
    %c0_i32_1 = arith.constant 0 : i32
    %c0_i32_2 = arith.constant 0 : i32
    return %c0_i32, %c0_i32_0, %c0_i32_1 : i32, i32, i32
  }
  func.func @transform_7(%arg0: i32) -> (i32, i32, i32) {
    %c0_i32 = arith.constant 0 : i32
    %c0_i32_0 = arith.constant 0 : i32
    %c0_i32_1 = arith.constant 0 : i32
    %c0_i32_2 = arith.constant 0 : i32
    return %c0_i32, %c0_i32_0, %c0_i32_1 : i32, i32, i32
  }
  func.func @transform_8(%arg0: i32) -> (i32, i32, i32) {
    %c0_i32 = arith.constant 0 : i32
    %c0_i32_0 = arith.constant 0 : i32
    %c0_i32_1 = arith.constant 0 : i32
    %c0_i32_2 = arith.constant 0 : i32
    return %c0_i32, %c0_i32_0, %c0_i32_1 : i32, i32, i32
  }
  func.func @transform_9(%arg0: i32) -> (i32, i32, i32) {
    %c0_i32 = arith.constant 0 : i32
    %c0_i32_0 = arith.constant 0 : i32
    %c0_i32_1 = arith.constant 0 : i32
    %c0_i32_2 = arith.constant 0 : i32
    return %c0_i32, %c0_i32_0, %c0_i32_1 : i32, i32, i32
  }
  func.func @transform_10(%arg0: i32) -> (i32, i32, i32) {
    %c0_i32 = arith.constant 0 : i32
    %c0_i32_0 = arith.constant 0 : i32
    %c0_i32_1 = arith.constant 0 : i32
    %c0_i32_2 = arith.constant 0 : i32
    return %c0_i32, %c0_i32_0, %c0_i32_1 : i32, i32, i32
  }
  func.func @transform_11(%arg0: i32) -> (i32, i32, i32) {
    %c0_i32 = arith.constant 0 : i32
    %c0_i32_0 = arith.constant 0 : i32
    %c0_i32_1 = arith.constant 0 : i32
    %c0_i32_2 = arith.constant 0 : i32
    return %c0_i32, %c0_i32_0, %c0_i32_1 : i32, i32, i32
  }
  func.func @transform_12(%arg0: i32) -> (i32, i32, i32) {
    %c0_i32 = arith.constant 0 : i32
    %c0_i32_0 = arith.constant 0 : i32
    %c0_i32_1 = arith.constant 0 : i32
    %c0_i32_2 = arith.constant 0 : i32
    return %c0_i32, %c0_i32_0, %c0_i32_1 : i32, i32, i32
  }
  func.func @transform_13(%arg0: i32) -> (i32, i32, i32) {
    %c0_i32 = arith.constant 0 : i32
    %c0_i32_0 = arith.constant 0 : i32
    %c0_i32_1 = arith.constant 0 : i32
    %c0_i32_2 = arith.constant 0 : i32
    return %c0_i32, %c0_i32_0, %c0_i32_1 : i32, i32, i32
  }
  func.func @transform_14(%arg0: i32) -> (i32, i32, i32) {
    %c0_i32 = arith.constant 0 : i32
    %c0_i32_0 = arith.constant 0 : i32
    %c0_i32_1 = arith.constant 0 : i32
    %c0_i32_2 = arith.constant 0 : i32
    return %c0_i32, %c0_i32_0, %c0_i32_1 : i32, i32, i32
  }
  func.func @transform_15(%arg0: i32) -> (i32, i32, i32) {
    %c0_i32 = arith.constant 0 : i32
    %c0_i32_0 = arith.constant 0 : i32
    %c0_i32_1 = arith.constant 0 : i32
    %c0_i32_2 = arith.constant 0 : i32
    return %c0_i32, %c0_i32_0, %c0_i32_1 : i32, i32, i32
  }
  func.func @transform_16(%arg0: i32) -> (i32, i32, i32) {
    %c0_i32 = arith.constant 0 : i32
    %c0_i32_0 = arith.constant 0 : i32
    %c0_i32_1 = arith.constant 0 : i32
    %c0_i32_2 = arith.constant 0 : i32
    return %c0_i32, %c0_i32_0, %c0_i32_1 : i32, i32, i32
  }
  func.func @transform_17(%arg0: i32) -> (i32, i32, i32) {
    %c0_i32 = arith.constant 0 : i32
    %c0_i32_0 = arith.constant 0 : i32
    %c0_i32_1 = arith.constant 0 : i32
    return %arg0, %c0_i32, %c0_i32_0 : i32, i32, i32
  }
}

</mosaic_0001>

<llo_original>
// kernel: tpu_custom_call.1
$region0: #{tpu_custom_call.1}
  #allocation0 [shape = 'u32[]', space=smem, size = 0x4, offset = 0x4, fixed_abs, tag = 'smem constant byte address 0x4 - core index']
  #allocation1 [shape = 'u32[144,128]{1,0:T(1,128)}', space=vmem, size = 0x12000, scoped, tag = 'internal scratch']
  #allocation2 [shape = 'f32[32,128]{1,0:T(8,128)}', space=vmem, size = 0x4000, scoped, tag = 'scratch operand']
  #allocation3 [shape = 'f32[32,128]{1,0:T(8,128)}', space=vmem, size = 0x4000, scoped, tag = 'scratch operand']
  %s0 = inlined_call_operand.hbm [shape: f32[2,32,128], index: 0, kind: input, shape index: {}]
  %s1 = inlined_call_operand.hbm [shape: f32[128,128], index: 1, kind: input, shape index: {}]
  %s2 = inlined_call_operand.hbm [shape: f32[1,128], index: 2, kind: input, shape index: {}]
  %s3 = inlined_call_operand.hbm [shape: f32[128,128], index: 3, kind: input, shape index: {}]
  %s4 = inlined_call_operand.hbm [shape: f32[1,128], index: 4, kind: input, shape index: {}]
  %s5 = inlined_call_operand.hbm [shape: f32[4,16,128], index: 5, kind: input, shape index: {}]
  %s6 = inlined_call_operand.hbm [shape: f32[32,16,128], index: 6, kind: input, shape index: {}]
  %s7 = inlined_call_operand.hbm [shape: f32[32,16,128], index: 7, kind: input, shape index: {}]
  %s8 = inlined_call_operand.hbm [shape: f32[4,8,128], index: 8, kind: input, shape index: {}]
  %s9 = inlined_call_operand.hbm [shape: f32[4,8,128], index: 9, kind: input, shape index: {}]
  %s10 = inlined_call_operand.hbm [shape: f32[4,8,128], index: 10, kind: input, shape index: {}]
  %s11 = inlined_call_operand.hbm [shape: f32[4,8,128], index: 11, kind: input, shape index: {}]
  %s12 = inlined_call_operand.vmem [shape: f32[4,1,128], index: 12, kind: input, shape index: {}]
  %s13 = inlined_call_operand.hbm [shape: f32[4,128,256], index: 13, kind: input, shape index: {}]
  %s14 = inlined_call_operand.vmem [shape: f32[4,1,256], index: 14, kind: input, shape index: {}]
  %s15 = inlined_call_operand.vmem [shape: f32[4,1,128], index: 15, kind: input, shape index: {}]
  %s16 = inlined_call_operand.vmem [shape: f32[4,1,128], index: 16, kind: input, shape index: {}]
  %s17 = inlined_call_operand.hbm [shape: f32[2,32,128], index: 17, kind: output, shape index: {}]
  %s18 = sld [smem:[#allocation0]]
  $region167: #{tpu_custom_call.1} parent=0
    _
  %s20 = ssub.s32 1, %s18
  %s21 = scalar_select 0, %s20, %s18
  $region1: #{tpu_custom_call.1} parent=0
    #allocation4 [shape = 'u8[32768]{0}', space=vmem, size = 0x8000, scoped, tag = 'input window, operand 0']
    #allocation5 [shape = 's32[2]{0}', space=sflag, size = 0x8, scoped, tag = 'scoped memory for tpu_custom_call.1']
    #allocation6 [shape = 's32[2]{0}', space=sflag, size = 0x8, scoped, tag = 'scoped memory for tpu_custom_call.1']
    #allocation7 [shape = 'u8[65536]{0}', space=vmem, size = 0x10000, scoped, tag = 'input window, operand 1, single buffered']
    #allocation8 [shape = 's32[1]{0}', space=sflag, size = 0x4, scoped, tag = 'scoped memory for tpu_custom_call.1']
    #allocation9 [shape = 'u8[512]{0}', space=vmem, size = 0x400, scoped, tag = 'input window, operand 2, single buffered']
    #allocation10 [shape = 'u8[65536]{0}', space=vmem, size = 0x10000, scoped, tag = 'input window, operand 3, single buffered']
    #allocation11 [shape = 's32[1]{0}', space=sflag, size = 0x4, scoped, tag = 'scoped memory for tpu_custom_call.1']
    #allocation12 [shape = 'u8[512]{0}', space=vmem, size = 0x400, scoped, tag = 'input window, operand 4, single buffered']
    #allocation13 [shape = 'u8[32768]{0}', space=vmem, size = 0x8000, scoped, tag = 'input window, operand 5, single buffered']
    #allocation14 [shape = 's32[1]{0}', space=sflag, size = 0x4, scoped, tag = 'scoped memory for tpu_custom_call.1']
    #allocation15 [shape = 'u8[262144]{0}', space=vmem, size = 0x40000, scoped, tag = 'input window, operand 6, single buffered']
    #allocation16 [shape = 'u8[262144]{0}', space=vmem, size = 0x40000, scoped, tag = 'input window, operand 7, single buffered']
    #allocation17 [shape = 's32[1]{0}', space=sflag, size = 0x4, scoped, tag = 'scoped memory for tpu_custom_call.1']
    #allocation18 [shape = 'u8[16384]{0}', space=vmem, size = 0x4000, scoped, tag = 'input window, operand 8, single buffered']
    #allocation19 [shape = 'u8[16384]{0}', space=vmem, size = 0x4000, scoped, tag = 'input window, operand 9, single buffered']
    #allocation20 [shape = 's32[1]{0}', space=sflag, size = 0x4, scoped, tag = 'scoped memory for tpu_custom_call.1']
    #allocation21 [shape = 'u8[16384]{0}', space=vmem, size = 0x4000, scoped, tag = 'input window, operand 10, single buffered']
    #allocation22 [shape = 'u8[16384]{0}', space=vmem, size = 0x4000, scoped, tag = 'input window, operand 11, single buffered']
    #allocation23 [shape = 's32[1]{0}', space=sflag, size = 0x4, scoped, tag = 'scoped memory for tpu_custom_call.1']
    #allocation24 [shape = 'u8[524288]{0}', space=vmem, size = 0x80000, scoped, tag = 'input window, operand 13, single buffered']
    #allocation25 [shape = 'u8[32768]{0}', space=vmem, size = 0x8000, scoped, tag = 'output window, operand 0']
    %22 = vsyncpa [#allocation5], 0
    %s23 = scalar_lea.sflag [#allocation5], 1
    %24 = vsyncpa %s23, 0
    %25 = vsyncpa [#allocation8], 0
    %26 = vsyncpa [#allocation11], 0
    %27 = vsyncpa [#allocation14], 0
    %28 = vsyncpa [#allocation17], 0
    %29 = vsyncpa [#allocation20], 0
    %30 = vsyncpa [#allocation23], 0
    %31 = vsyncpa [#allocation6], 0
    %s32 = scalar_lea.sflag [#allocation6], 1
    %33 = vsyncpa %s32, 0
    loop: start=0, step=1, limit=4
    $region2: #{tpu_custom_call.1} parent=1 // loop_pre_header
      _
    $region3: #{tpu_custom_call.1} parent=1 // loop_header
      %s35 = sphi 0, %s39
      %p36 = scmp.ge.s32.totalorder %s35, 4
      %s45 = sphi 0, %s47
      %s48 = sphi 0, %s45
      %s49 = sphi 0, %s48
      %s65 = sphi 0, %s49
      %s69 = sphi 0, %s69
      %s71 = sphi 0, %s69
      %s72 = sphi 0, %s71
      %s86 = sphi 0, %s72
      %s90 = sphi 0, %s90
      %s92 = sphi 0, %s90
      %s93 = sphi 0, %s92
      %s107 = sphi 0, %s93
      %s111 = sphi 0, %s111
      %s113 = sphi 0, %s111
      %s114 = sphi 0, %s113
      %s128 = sphi 0, %s114
      %s132 = sphi 0, %s132
      %s134 = sphi 0, %s132
      %s135 = sphi 0, %s134
      %s149 = sphi 0, %s135
      %s153 = sphi 0, %s153
      %s155 = sphi 0, %s153
      %s156 = sphi 0, %s155
      %s170 = sphi 0, %s156
      %s174 = sphi 0, %s174
      %s176 = sphi 0, %s174
      %s177 = sphi 0, %s176
      %s191 = sphi 0, %s177
      %s195 = sphi 0, %s195
      %s197 = sphi 0, %s195
      %s198 = sphi 0, %s197
      %s212 = sphi 0, %s198
      %s216 = sphi 0, %s216
      %s218 = sphi 0, %s216
      %s219 = sphi 0, %s218
      %s233 = sphi 0, %s219
      %s237 = sphi 0, %s237
      %s239 = sphi 0, %s237
      %s240 = sphi 0, %s239
      %s254 = sphi 0, %s240
      %s258 = sphi 0, %s258
      %s260 = sphi 0, %s258
      %s261 = sphi 0, %s260
      %s275 = sphi 0, %s261
      %s279 = sphi 0, %s279
      %s281 = sphi 0, %s279
      %s282 = sphi 0, %s281
      %s296 = sphi 0, %s282
      %s300 = sphi 0, %s300
      %s302 = sphi 0, %s300
      %s303 = sphi 0, %s302
      %s317 = sphi 0, %s303
      %s321 = sphi 0, %s321
      %s323 = sphi 0, %s321
      %s324 = sphi 0, %s323
      %s338 = sphi 0, %s324
      %s342 = sphi 0, %s342
      %s344 = sphi 0, %s342
      %s345 = sphi 0, %s344
      %s359 = sphi 0, %s345
      %s363 = sphi 0, %s363
      %s365 = sphi 0, %s363
      %s366 = sphi 0, %s365
      %s380 = sphi 0, %s366
      %s384 = sphi 0, %s384
      %s386 = sphi 0, %s384
      %s387 = sphi 0, %s386
      %s401 = sphi 0, %s387
      %s407 = sphi 0, %s409
      %s410 = sphi 0, %s407
      %s411 = sphi 0, %s410
      %s427 = sphi 0, %s411
    $region4: #{tpu_custom_call.1} parent=1 // loop_header_branch
      %38 = sbr.rel (%p36) target = $region8
    $region5: #{tpu_custom_call.1} parent=1 // loop_body
      %s40 = ssub.s32 %s35, 1
      %s41 = ssub.s32 %s35, 2
      %s42 = sadd.s32 %s35, 1
      %s43 = ssub.s32 %s35, %s42
      %p44 = scmp.eq.s32.totalorder %s43, 0
      %s46 = sadd.s32 %s45, 1
      %s47 = scalar_select %p44, %s45, %s46
      %p50 = pneg %p44
      %p51 = scmp.eq.s32.totalorder %s35, 1
      %p52 = por %p50, %p51
      %p53 = scmp.ne.s32.totalorder %s45, %s48
      %p54 = scmp.eq.s32.totalorder %s35, 0
      %p55 = por %p53, %p54
      %p56 = scmp.ne.s32.totalorder %s45, %s48
      %p57 = scmp.eq.s32.totalorder %s40, 1
      %p58 = por %p56, %p57
      %p59 = scmp.ne.s32.totalorder %s48, %s49
      %p60 = scmp.eq.s32.totalorder %s40, 0
      %p61 = por %p59, %p60
      %p62 = scmp.ne.s32.totalorder %s48, %s49
      %p63 = scmp.eq.s32.totalorder %s41, 1
      %p64 = por %p62, %p63
      %p66 = scmp.ne.s32.totalorder %s49, %s65
      %p67 = scmp.eq.s32.totalorder %s41, 0
      %p68 = por %p66, %p67
      %s70 = sadd.s32 %s69, 1
      %p73 = scmp.eq.s32.totalorder %s35, 1
      %p74 = scmp.ne.s32.totalorder %s69, %s71
      %p75 = scmp.eq.s32.totalorder %s35, 0
      %p76 = por %p74, %p75
      %p77 = scmp.ne.s32.totalorder %s69, %s71
      %p78 = scmp.eq.s32.totalorder %s40, 1
      %p79 = por %p77, %p78
      %p80 = scmp.ne.s32.totalorder %s71, %s72
      %p81 = scmp.eq.s32.totalorder %s40, 0
      %p82 = por %p80, %p81
      %p83 = scmp.ne.s32.totalorder %s71, %s72
      %p84 = scmp.eq.s32.totalorder %s41, 1
      %p85 = por %p83, %p84
      %p87 = scmp.ne.s32.totalorder %s72, %s86
      %p88 = scmp.eq.s32.totalorder %s41, 0
      %p89 = por %p87, %p88
      %s91 = sadd.s32 %s90, 1
      %p94 = scmp.eq.s32.totalorder %s35, 1
      %p95 = scmp.ne.s32.totalorder %s90, %s92
      %p96 = scmp.eq.s32.totalorder %s35, 0
      %p97 = por %p95, %p96
      %p98 = scmp.ne.s32.totalorder %s90, %s92
      %p99 = scmp.eq.s32.totalorder %s40, 1
      %p100 = por %p98, %p99
      %p101 = scmp.ne.s32.totalorder %s92, %s93
      %p102 = scmp.eq.s32.totalorder %s40, 0
      %p103 = por %p101, %p102
      %p104 = scmp.ne.s32.totalorder %s92, %s93
      %p105 = scmp.eq.s32.totalorder %s41, 1
      %p106 = por %p104, %p105
      %p108 = scmp.ne.s32.totalorder %s93, %s107
      %p109 = scmp.eq.s32.totalorder %s41, 0
      %p110 = por %p108, %p109
      %s112 = sadd.s32 %s111, 1
      %p115 = scmp.eq.s32.totalorder %s35, 1
      %p116 = scmp.ne.s32.totalorder %s111, %s113
      %p117 = scmp.eq.s32.totalorder %s35, 0
      %p118 = por %p116, %p117
      %p119 = scmp.ne.s32.totalorder %s111, %s113
      %p120 = scmp.eq.s32.totalorder %s40, 1
      %p121 = por %p119, %p120
      %p122 = scmp.ne.s32.totalorder %s113, %s114
      %p123 = scmp.eq.s32.totalorder %s40, 0
      %p124 = por %p122, %p123
      %p125 = scmp.ne.s32.totalorder %s113, %s114
      %p126 = scmp.eq.s32.totalorder %s41, 1
      %p127 = por %p125, %p126
      %p129 = scmp.ne.s32.totalorder %s114, %s128
      %p130 = scmp.eq.s32.totalorder %s41, 0
      %p131 = por %p129, %p130
      %s133 = sadd.s32 %s132, 1
      %p136 = scmp.eq.s32.totalorder %s35, 1
      %p137 = scmp.ne.s32.totalorder %s132, %s134
      %p138 = scmp.eq.s32.totalorder %s35, 0
      %p139 = por %p137, %p138
      %p140 = scmp.ne.s32.totalorder %s132, %s134
      %p141 = scmp.eq.s32.totalorder %s40, 1
      %p142 = por %p140, %p141
      %p143 = scmp.ne.s32.totalorder %s134, %s135
      %p144 = scmp.eq.s32.totalorder %s40, 0
      %p145 = por %p143, %p144
      %p146 = scmp.ne.s32.totalorder %s134, %s135
      %p147 = scmp.eq.s32.totalorder %s41, 1
      %p148 = por %p146, %p147
      %p150 = scmp.ne.s32.totalorder %s135, %s149
      %p151 = scmp.eq.s32.totalorder %s41, 0
      %p152 = por %p150, %p151
      %s154 = sadd.s32 %s153, 1
      %p157 = scmp.eq.s32.totalorder %s35, 1
      %p158 = scmp.ne.s32.totalorder %s153, %s155
      %p159 = scmp.eq.s32.totalorder %s35, 0
      %p160 = por %p158, %p159
      %p161 = scmp.ne.s32.totalorder %s153, %s155
      %p162 = scmp.eq.s32.totalorder %s40, 1
      %p163 = por %p161, %p162
      %p164 = scmp.ne.s32.totalorder %s155, %s156
      %p165 = scmp.eq.s32.totalorder %s40, 0
      %p166 = por %p164, %p165
      %p167 = scmp.ne.s32.totalorder %s155, %s156
      %p168 = scmp.eq.s32.totalorder %s41, 1
      %p169 = por %p167, %p168
      %p171 = scmp.ne.s32.totalorder %s156, %s170
      %p172 = scmp.eq.s32.totalorder %s41, 0
      %p173 = por %p171, %p172
      %s175 = sadd.s32 %s174, 1
      %p178 = scmp.eq.s32.totalorder %s35, 1
      %p179 = scmp.ne.s32.totalorder %s174, %s176
      %p180 = scmp.eq.s32.totalorder %s35, 0
      %p181 = por %p179, %p180
      %p182 = scmp.ne.s32.totalorder %s174, %s176
      %p183 = scmp.eq.s32.totalorder %s40, 1
      %p184 = por %p182, %p183
      %p185 = scmp.ne.s32.totalorder %s176, %s177
      %p186 = scmp.eq.s32.totalorder %s40, 0
      %p187 = por %p185, %p186
      %p188 = scmp.ne.s32.totalorder %s176, %s177
      %p189 = scmp.eq.s32.totalorder %s41, 1
      %p190 = por %p188, %p189
      %p192 = scmp.ne.s32.totalorder %s177, %s191
      %p193 = scmp.eq.s32.totalorder %s41, 0
      %p194 = por %p192, %p193
      %s196 = sadd.s32 %s195, 1
      %p199 = scmp.eq.s32.totalorder %s35, 1
      %p200 = scmp.ne.s32.totalorder %s195, %s197
      %p201 = scmp.eq.s32.totalorder %s35, 0
      %p202 = por %p200, %p201
      %p203 = scmp.ne.s32.totalorder %s195, %s197
      %p204 = scmp.eq.s32.totalorder %s40, 1
      %p205 = por %p203, %p204
      %p206 = scmp.ne.s32.totalorder %s197, %s198
      %p207 = scmp.eq.s32.totalorder %s40, 0
      %p208 = por %p206, %p207
      %p209 = scmp.ne.s32.totalorder %s197, %s198
      %p210 = scmp.eq.s32.totalorder %s41, 1
      %p211 = por %p209, %p210
      %p213 = scmp.ne.s32.totalorder %s198, %s212
      %p214 = scmp.eq.s32.totalorder %s41, 0
      %p215 = por %p213, %p214
      %s217 = sadd.s32 %s216, 1
      %p220 = scmp.eq.s32.totalorder %s35, 1
      %p221 = scmp.ne.s32.totalorder %s216, %s218
      %p222 = scmp.eq.s32.totalorder %s35, 0
      %p223 = por %p221, %p222
      %p224 = scmp.ne.s32.totalorder %s216, %s218
      %p225 = scmp.eq.s32.totalorder %s40, 1
      %p226 = por %p224, %p225
      %p227 = scmp.ne.s32.totalorder %s218, %s219
      %p228 = scmp.eq.s32.totalorder %s40, 0
      %p229 = por %p227, %p228
      %p230 = scmp.ne.s32.totalorder %s218, %s219
      %p231 = scmp.eq.s32.totalorder %s41, 1
      %p232 = por %p230, %p231
      %p234 = scmp.ne.s32.totalorder %s219, %s233
      %p235 = scmp.eq.s32.totalorder %s41, 0
      %p236 = por %p234, %p235
      %s238 = sadd.s32 %s237, 1
      %p241 = scmp.eq.s32.totalorder %s35, 1
      %p242 = scmp.ne.s32.totalorder %s237, %s239
      %p243 = scmp.eq.s32.totalorder %s35, 0
      %p244 = por %p242, %p243
      %p245 = scmp.ne.s32.totalorder %s237, %s239
      %p246 = scmp.eq.s32.totalorder %s40, 1
      %p247 = por %p245, %p246
      %p248 = scmp.ne.s32.totalorder %s239, %s240
      %p249 = scmp.eq.s32.totalorder %s40, 0
      %p250 = por %p248, %p249
      %p251 = scmp.ne.s32.totalorder %s239, %s240
      %p252 = scmp.eq.s32.totalorder %s41, 1
      %p253 = por %p251, %p252
      %p255 = scmp.ne.s32.totalorder %s240, %s254
      %p256 = scmp.eq.s32.totalorder %s41, 0
      %p257 = por %p255, %p256
      %s259 = sadd.s32 %s258, 1
      %p262 = scmp.eq.s32.totalorder %s35, 1
      %p263 = scmp.ne.s32.totalorder %s258, %s260
      %p264 = scmp.eq.s32.totalorder %s35, 0
      %p265 = por %p263, %p264
      %p266 = scmp.ne.s32.totalorder %s258, %s260
      %p267 = scmp.eq.s32.totalorder %s40, 1
      %p268 = por %p266, %p267
      %p269 = scmp.ne.s32.totalorder %s260, %s261
      %p270 = scmp.eq.s32.totalorder %s40, 0
      %p271 = por %p269, %p270
      %p272 = scmp.ne.s32.totalorder %s260, %s261
      %p273 = scmp.eq.s32.totalorder %s41, 1
      %p274 = por %p272, %p273
      %p276 = scmp.ne.s32.totalorder %s261, %s275
      %p277 = scmp.eq.s32.totalorder %s41, 0
      %p278 = por %p276, %p277
      %s280 = sadd.s32 %s279, 1
      %p283 = scmp.eq.s32.totalorder %s35, 1
      %p284 = scmp.ne.s32.totalorder %s279, %s281
      %p285 = scmp.eq.s32.totalorder %s35, 0
      %p286 = por %p284, %p285
      %p287 = scmp.ne.s32.totalorder %s279, %s281
      %p288 = scmp.eq.s32.totalorder %s40, 1
      %p289 = por %p287, %p288
      %p290 = scmp.ne.s32.totalorder %s281, %s282
      %p291 = scmp.eq.s32.totalorder %s40, 0
      %p292 = por %p290, %p291
      %p293 = scmp.ne.s32.totalorder %s281, %s282
      %p294 = scmp.eq.s32.totalorder %s41, 1
      %p295 = por %p293, %p294
      %p297 = scmp.ne.s32.totalorder %s282, %s296
      %p298 = scmp.eq.s32.totalorder %s41, 0
      %p299 = por %p297, %p298
      %s301 = sadd.s32 %s300, 1
      %p304 = scmp.eq.s32.totalorder %s35, 1
      %p305 = scmp.ne.s32.totalorder %s300, %s302
      %p306 = scmp.eq.s32.totalorder %s35, 0
      %p307 = por %p305, %p306
      %p308 = scmp.ne.s32.totalorder %s300, %s302
      %p309 = scmp.eq.s32.totalorder %s40, 1
      %p310 = por %p308, %p309
      %p311 = scmp.ne.s32.totalorder %s302, %s303
      %p312 = scmp.eq.s32.totalorder %s40, 0
      %p313 = por %p311, %p312
      %p314 = scmp.ne.s32.totalorder %s302, %s303
      %p315 = scmp.eq.s32.totalorder %s41, 1
      %p316 = por %p314, %p315
      %p318 = scmp.ne.s32.totalorder %s303, %s317
      %p319 = scmp.eq.s32.totalorder %s41, 0
      %p320 = por %p318, %p319
      %s322 = sadd.s32 %s321, 1
      %p325 = scmp.eq.s32.totalorder %s35, 1
      %p326 = scmp.ne.s32.totalorder %s321, %s323
      %p327 = scmp.eq.s32.totalorder %s35, 0
      %p328 = por %p326, %p327
      %p329 = scmp.ne.s32.totalorder %s321, %s323
      %p330 = scmp.eq.s32.totalorder %s40, 1
      %p331 = por %p329, %p330
      %p332 = scmp.ne.s32.totalorder %s323, %s324
      %p333 = scmp.eq.s32.totalorder %s40, 0
      %p334 = por %p332, %p333
      %p335 = scmp.ne.s32.totalorder %s323, %s324
      %p336 = scmp.eq.s32.totalorder %s41, 1
      %p337 = por %p335, %p336
      %p339 = scmp.ne.s32.totalorder %s324, %s338
      %p340 = scmp.eq.s32.totalorder %s41, 0
      %p341 = por %p339, %p340
      %s343 = sadd.s32 %s342, 1
      %p346 = scmp.eq.s32.totalorder %s35, 1
      %p347 = scmp.ne.s32.totalorder %s342, %s344
      %p348 = scmp.eq.s32.totalorder %s35, 0
      %p349 = por %p347, %p348
      %p350 = scmp.ne.s32.totalorder %s342, %s344
      %p351 = scmp.eq.s32.totalorder %s40, 1
      %p352 = por %p350, %p351
      %p353 = scmp.ne.s32.totalorder %s344, %s345
      %p354 = scmp.eq.s32.totalorder %s40, 0
      %p355 = por %p353, %p354
      %p356 = scmp.ne.s32.totalorder %s344, %s345
      %p357 = scmp.eq.s32.totalorder %s41, 1
      %p358 = por %p356, %p357
      %p360 = scmp.ne.s32.totalorder %s345, %s359
      %p361 = scmp.eq.s32.totalorder %s41, 0
      %p362 = por %p360, %p361
      %s364 = sadd.s32 %s363, 1
      %p367 = scmp.eq.s32.totalorder %s35, 1
      %p368 = scmp.ne.s32.totalorder %s363, %s365
      %p369 = scmp.eq.s32.totalorder %s35, 0
      %p370 = por %p368, %p369
      %p371 = scmp.ne.s32.totalorder %s363, %s365
      %p372 = scmp.eq.s32.totalorder %s40, 1
      %p373 = por %p371, %p372
      %p374 = scmp.ne.s32.totalorder %s365, %s366
      %p375 = scmp.eq.s32.totalorder %s40, 0
      %p376 = por %p374, %p375
      %p377 = scmp.ne.s32.totalorder %s365, %s366
      %p378 = scmp.eq.s32.totalorder %s41, 1
      %p379 = por %p377, %p378
      %p381 = scmp.ne.s32.totalorder %s366, %s380
      %p382 = scmp.eq.s32.totalorder %s41, 0
      %p383 = por %p381, %p382
      %s385 = sadd.s32 %s384, 1
      %p388 = scmp.eq.s32.totalorder %s35, 1
      %p389 = scmp.ne.s32.totalorder %s384, %s386
      %p390 = scmp.eq.s32.totalorder %s35, 0
      %p391 = por %p389, %p390
      %p392 = scmp.ne.s32.totalorder %s384, %s386
      %p393 = scmp.eq.s32.totalorder %s40, 1
      %p394 = por %p392, %p393
      %p395 = scmp.ne.s32.totalorder %s386, %s387
      %p396 = scmp.eq.s32.totalorder %s40, 0
      %p397 = por %p395, %p396
      %p398 = scmp.ne.s32.totalorder %s386, %s387
      %p399 = scmp.eq.s32.totalorder %s41, 1
      %p400 = por %p398, %p399
      %p402 = scmp.ne.s32.totalorder %s387, %s401
      %p403 = scmp.eq.s32.totalorder %s41, 0
      %p404 = por %p402, %p403
      %s405 = ssub.s32 %s35, %s42
      %p406 = scmp.eq.s32.totalorder %s405, 0
      %s408 = sadd.s32 %s407, 1
      %s409 = scalar_select %p406, %s407, %s408
      %p412 = pneg %p406
      %p413 = scmp.eq.s32.totalorder %s35, 1
      %p414 = por %p412, %p413
      %p415 = scmp.ne.s32.totalorder %s407, %s410
      %p416 = scmp.eq.s32.totalorder %s35, 0
      %p417 = por %p415, %p416
      %p418 = scmp.ne.s32.totalorder %s407, %s410
      %p419 = scmp.eq.s32.totalorder %s40, 1
      %p420 = por %p418, %p419
      %p421 = scmp.ne.s32.totalorder %s410, %s411
      %p422 = scmp.eq.s32.totalorder %s40, 0
      %p423 = por %p421, %p422
      %p424 = scmp.ne.s32.totalorder %s410, %s411
      %p425 = scmp.eq.s32.totalorder %s41, 1
      %p426 = por %p424, %p425
      %p428 = scmp.ne.s32.totalorder %s411, %s427
      %p429 = scmp.eq.s32.totalorder %s41, 0
      %p430 = por %p428, %p429
      %p431 = scmp.le.s32.totalorder 1, %s35
      %p432 = scmp.lt.s32.totalorder %s35, 3
      %p433 = pnand %p431, %p432
      %p434 = pneg %p433
      // Predicated region
      $region9: #{tpu_custom_call.1} parent=5 // pred_check
        _
      $region10: #{tpu_custom_call.1} parent=5 // pred_check_branch
        %436 = sbr.rel (%p433) target = $region12
      $region11: #{tpu_custom_call.1} parent=5 // pred_region
        %s437 = ssub.s32 %s35, 1
        // Predicated region
        $region13: #{tpu_custom_call.1} parent=11 // pred_check
          %p438 = pneg %p82
        $region14: #{tpu_custom_call.1} parent=11 // pred_check_branch
          %440 = sbr.rel (%p438) target = $region16
        $region15: #{tpu_custom_call.1} parent=11 // pred_region
          %s442 = ssub.s32 2048, 2048
          %443 = vsyncadd [#allocation8], %s442
          %s444 = sshll.u32 [#allocation7], 4
          %s445 = int_to_ptr.vmem [resolvable:$true] %s444
          %450 = dma.hbm_to_vmem [thread:$0]  %s1, 2048, %s445, [#allocation8], 128, 128, 8
        $region16: #{tpu_custom_call.1} parent=11 // pred_fallthru
          _
        // Predicated region
        $region17: #{tpu_custom_call.1} parent=11 // pred_check
          %p451 = pneg %p103
        $region18: #{tpu_custom_call.1} parent=11 // pred_check_branch
          %453 = sbr.rel (%p451) target = $region20
        $region19: #{tpu_custom_call.1} parent=11 // pred_region
          %s455 = ssub.s32 16, 16
          %456 = vsyncadd [#allocation8], %s455
          %s458 = sshll.u32 [#allocation9], 4
          %s459 = int_to_ptr.vmem [resolvable:$true] %s458
          %461 = dma.hbm_to_vmem [thread:$0]  %s2, 16, %s459, [#allocation8]
        $region20: #{tpu_custom_call.1} parent=11 // pred_fallthru
          _
        // Predicated region
        $region21: #{tpu_custom_call.1} parent=11 // pred_check
          %p462 = pneg %p124
        $region22: #{tpu_custom_call.1} parent=11 // pred_check_branch
          %464 = sbr.rel (%p462) target = $region24
        $region23: #{tpu_custom_call.1} parent=11 // pred_region
          %s466 = ssub.s32 2048, 2048
          %467 = vsyncadd [#allocation11], %s466
          %s468 = sshll.u32 [#allocation10], 4
          %s469 = int_to_ptr.vmem [resolvable:$true] %s468
          %474 = dma.hbm_to_vmem [thread:$0]  %s3, 2048, %s469, [#allocation11], 128, 128, 8
        $region24: #{tpu_custom_call.1} parent=11 // pred_fallthru
          _
        // Predicated region
        $region25: #{tpu_custom_call.1} parent=11 // pred_check
          %p475 = pneg %p145
        $region26: #{tpu_custom_call.1} parent=11 // pred_check_branch
          %477 = sbr.rel (%p475) target = $region28
        $region27: #{tpu_custom_call.1} parent=11 // pred_region
          %s479 = ssub.s32 16, 16
          %480 = vsyncadd [#allocation11], %s479
          %s482 = sshll.u32 [#allocation12], 4
          %s483 = int_to_ptr.vmem [resolvable:$true] %s482
          %485 = dma.hbm_to_vmem [thread:$0]  %s4, 16, %s483, [#allocation11]
        $region28: #{tpu_custom_call.1} parent=11 // pred_fallthru
          _
        // Predicated region
        $region29: #{tpu_custom_call.1} parent=11 // pred_check
          %p486 = pneg %p166
        $region30: #{tpu_custom_call.1} parent=11 // pred_check_branch
          %488 = sbr.rel (%p486) target = $region32
        $region31: #{tpu_custom_call.1} parent=11 // pred_region
          %s490 = ssub.s32 1024, 1024
          %491 = vsyncadd [#allocation14], %s490
          %s492 = sshll.u32 [#allocation13], 4
          %s493 = int_to_ptr.vmem [resolvable:$true] %s492
          %498 = dma.hbm_to_vmem [thread:$0]  %s5, 1024, %s493, [#allocation14], 128, 128, 8
        $region32: #{tpu_custom_call.1} parent=11 // pred_fallthru
          _
        // Predicated region
        $region33: #{tpu_custom_call.1} parent=11 // pred_check
          %p499 = pneg %p187
        $region34: #{tpu_custom_call.1} parent=11 // pred_check_branch
          %501 = sbr.rel (%p499) target = $region36
        $region35: #{tpu_custom_call.1} parent=11 // pred_region
          %s503 = ssub.s32 8192, 8192
          %504 = vsyncadd [#allocation14], %s503
          %s505 = sshll.u32 [#allocation15], 4
          %s506 = int_to_ptr.vmem [resolvable:$true] %s505
          %511 = dma.hbm_to_vmem [thread:$0]  %s6, 8192, %s506, [#allocation14], 128, 128, 8
        $region36: #{tpu_custom_call.1} parent=11 // pred_fallthru
          _
        // Predicated region
        $region37: #{tpu_custom_call.1} parent=11 // pred_check
          %p512 = pneg %p208
        $region38: #{tpu_custom_call.1} parent=11 // pred_check_branch
          %514 = sbr.rel (%p512) target = $region40
        $region39: #{tpu_custom_call.1} parent=11 // pred_region
          %s516 = ssub.s32 8192, 8192
          %517 = vsyncadd [#allocation17], %s516
          %s518 = sshll.u32 [#allocation16], 4
          %s519 = int_to_ptr.vmem [resolvable:$true] %s518
          %524 = dma.hbm_to_vmem [thread:$0]  %s7, 8192, %s519, [#allocation17], 128, 128, 8
        $region40: #{tpu_custom_call.1} parent=11 // pred_fallthru
          _
        // Predicated region
        $region41: #{tpu_custom_call.1} parent=11 // pred_check
          %p525 = pneg %p229
        $region42: #{tpu_custom_call.1} parent=11 // pred_check_branch
          %527 = sbr.rel (%p525) target = $region44
        $region43: #{tpu_custom_call.1} parent=11 // pred_region
          %s529 = ssub.s32 512, 512
          %530 = vsyncadd [#allocation17], %s529
          %s531 = sshll.u32 [#allocation18], 4
          %s532 = int_to_ptr.vmem [resolvable:$true] %s531
          %537 = dma.hbm_to_vmem [thread:$0]  %s8, 512, %s532, [#allocation17], 128, 128, 8
        $region44: #{tpu_custom_call.1} parent=11 // pred_fallthru
          _
        // Predicated region
        $region45: #{tpu_custom_call.1} parent=11 // pred_check
          %p538 = pneg %p250
        $region46: #{tpu_custom_call.1} parent=11 // pred_check_branch
          %540 = sbr.rel (%p538) target = $region48
        $region47: #{tpu_custom_call.1} parent=11 // pred_region
          %s542 = ssub.s32 512, 512
          %543 = vsyncadd [#allocation20], %s542
          %s544 = sshll.u32 [#allocation19], 4
          %s545 = int_to_ptr.vmem [resolvable:$true] %s544
          %550 = dma.hbm_to_vmem [thread:$0]  %s9, 512, %s545, [#allocation20], 128, 128, 8
        $region48: #{tpu_custom_call.1} parent=11 // pred_fallthru
          _
        // Predicated region
        $region49: #{tpu_custom_call.1} parent=11 // pred_check
          %p551 = pneg %p271
        $region50: #{tpu_custom_call.1} parent=11 // pred_check_branch
          %553 = sbr.rel (%p551) target = $region52
        $region51: #{tpu_custom_call.1} parent=11 // pred_region
          %s555 = ssub.s32 512, 512
          %556 = vsyncadd [#allocation20], %s555
          %s557 = sshll.u32 [#allocation21], 4
          %s558 = int_to_ptr.vmem [resolvable:$true] %s557
          %563 = dma.hbm_to_vmem [thread:$0]  %s10, 512, %s558, [#allocation20], 128, 128, 8
        $region52: #{tpu_custom_call.1} parent=11 // pred_fallthru
          _
        // Predicated region
        $region53: #{tpu_custom_call.1} parent=11 // pred_check
          %p564 = pneg %p292
        $region54: #{tpu_custom_call.1} parent=11 // pred_check_branch
          %566 = sbr.rel (%p564) target = $region56
        $region55: #{tpu_custom_call.1} parent=11 // pred_region
          %s568 = ssub.s32 512, 512
          %569 = vsyncadd [#allocation23], %s568
          %s570 = sshll.u32 [#allocation22], 4
          %s571 = int_to_ptr.vmem [resolvable:$true] %s570
          %576 = dma.hbm_to_vmem [thread:$0]  %s11, 512, %s571, [#allocation23], 128, 128, 8
        $region56: #{tpu_custom_call.1} parent=11 // pred_fallthru
          _
        // Predicated region
        $region57: #{tpu_custom_call.1} parent=11 // pred_check
          %p577 = pneg %p313
        $region58: #{tpu_custom_call.1} parent=11 // pred_check_branch
          %579 = sbr.rel (%p577) target = $region60
        $region59: #{tpu_custom_call.1} parent=11 // pred_region
          _
        $region60: #{tpu_custom_call.1} parent=11 // pred_fallthru
          _
        // Predicated region
        $region61: #{tpu_custom_call.1} parent=11 // pred_check
          %p580 = pneg %p334
        $region62: #{tpu_custom_call.1} parent=11 // pred_check_branch
          %582 = sbr.rel (%p580) target = $region64
        $region63: #{tpu_custom_call.1} parent=11 // pred_region
          %s584 = ssub.s32 16384, 16384
          %585 = vsyncadd [#allocation23], %s584
          %s586 = sshll.u32 [#allocation24], 4
          %s587 = int_to_ptr.vmem [resolvable:$true] %s586
          %592 = dma.hbm_to_vmem [thread:$0]  %s13, 16384, %s587, [#allocation23], 256, 256, 16
        $region64: #{tpu_custom_call.1} parent=11 // pred_fallthru
          _
        // Predicated region
        $region65: #{tpu_custom_call.1} parent=11 // pred_check
          %p593 = pneg %p355
        $region66: #{tpu_custom_call.1} parent=11 // pred_check_branch
          %595 = sbr.rel (%p593) target = $region68
        $region67: #{tpu_custom_call.1} parent=11 // pred_region
          _
        $region68: #{tpu_custom_call.1} parent=11 // pred_fallthru
          _
        // Predicated region
        $region69: #{tpu_custom_call.1} parent=11 // pred_check
          %p596 = pneg %p376
        $region70: #{tpu_custom_call.1} parent=11 // pred_check_branch
          %598 = sbr.rel (%p596) target = $region72
        $region71: #{tpu_custom_call.1} parent=11 // pred_region
          _
        $region72: #{tpu_custom_call.1} parent=11 // pred_fallthru
          _
        // Predicated region
        $region73: #{tpu_custom_call.1} parent=11 // pred_check
          %p599 = pneg %p397
        $region74: #{tpu_custom_call.1} parent=11 // pred_check_branch
          %601 = sbr.rel (%p599) target = $region76
        $region75: #{tpu_custom_call.1} parent=11 // pred_region
          _
        $region76: #{tpu_custom_call.1} parent=11 // pred_fallthru
          _
      $region12: #{tpu_custom_call.1} parent=5 // pred_fallthru
        _
      %p602 = scmp.lt.s32.totalorder %s35, 2
      // Predicated region
      $region77: #{tpu_custom_call.1} parent=5 // pred_check
        %p603 = pneg %p602
      $region78: #{tpu_custom_call.1} parent=5 // pred_check_branch
        %605 = sbr.rel (%p603) target = $region80
      $region79: #{tpu_custom_call.1} parent=5 // pred_region
        // Predicated region
        $region81: #{tpu_custom_call.1} parent=79 // pred_check
          %p606 = pneg %p55
        $region82: #{tpu_custom_call.1} parent=79 // pred_check_branch
          %608 = sbr.rel (%p606) target = $region84
        $region83: #{tpu_custom_call.1} parent=79 // pred_region
          %s609 = sand.u32 %s45, 1
          %s610 = scalar_lea.sflag [#allocation5], %s609
          %s611 = sand.u32 %s45, 1
          %s612 = smul.addr %s611, 32
          %s613 = scalar_lea.vmem [#allocation4], %s612
          %s615 = ssub.s32 512, 512
          %616 = vsyncadd %s610, %s615
          %s617 = smul.addr %s35, 4
          %s618 = smul.addr %s617, 128
          %s619 = scalar_lea.hbm %s0, %s618
          %s620 = sshll.u32 %s613, 4
          %s621 = int_to_ptr.vmem [resolvable:$true] %s620
          %626 = dma.hbm_to_vmem [thread:$0]  %s619, 512, %s621, %s610, 128, 128, 8
        $region84: #{tpu_custom_call.1} parent=79 // pred_fallthru
          _
      $region80: #{tpu_custom_call.1} parent=5 // pred_fallthru
        _
      %p627 = scmp.le.s32.totalorder 1, %s35
      %p628 = scmp.lt.s32.totalorder %s35, 3
      %p629 = pnand %p627, %p628
      %p630 = pneg %p629
      // Predicated region
      $region85: #{tpu_custom_call.1} parent=5 // pred_check
        _
      $region86: #{tpu_custom_call.1} parent=5 // pred_check_branch
        %632 = sbr.rel (%p629) target = $region88
      $region87: #{tpu_custom_call.1} parent=5 // pred_region
        %s633 = ssub.s32 %s35, 1
        %s634 = sand.u32 %s48, 1
        %s635 = scalar_lea.sflag [#allocation5], %s634
        %s636 = sand.u32 %s48, 1
        %s637 = smul.addr %s636, 32
        %s638 = scalar_lea.vmem [#allocation4], %s637
        // Predicated region
        $region89: #{tpu_custom_call.1} parent=87 // pred_check
          %p639 = pneg %p61
        $region90: #{tpu_custom_call.1} parent=87 // pred_check_branch
          %641 = sbr.rel (%p639) target = $region92
        $region91: #{tpu_custom_call.1} parent=87 // pred_region
          %642 = dma.done %s635, 512
        $region92: #{tpu_custom_call.1} parent=87 // pred_fallthru
          _
        // Predicated region
        $region93: #{tpu_custom_call.1} parent=87 // pred_check
          %p643 = pneg %p82
        $region94: #{tpu_custom_call.1} parent=87 // pred_check_branch
          %645 = sbr.rel (%p643) target = $region96
        $region95: #{tpu_custom_call.1} parent=87 // pred_region
          %646 = dma.done [#allocation8], 2048
        $region96: #{tpu_custom_call.1} parent=87 // pred_fallthru
          _
        // Predicated region
        $region97: #{tpu_custom_call.1} parent=87 // pred_check
          %p647 = pneg %p103
        $region98: #{tpu_custom_call.1} parent=87 // pred_check_branch
          %649 = sbr.rel (%p647) target = $region100
        $region99: #{tpu_custom_call.1} parent=87 // pred_region
          %650 = dma.done [#allocation8], 16
        $region100: #{tpu_custom_call.1} parent=87 // pred_fallthru
          _
        // Predicated region
        $region101: #{tpu_custom_call.1} parent=87 // pred_check
          %p651 = pneg %p124
        $region102: #{tpu_custom_call.1} parent=87 // pred_check_branch
          %653 = sbr.rel (%p651) target = $region104
        $region103: #{tpu_custom_call.1} parent=87 // pred_region
          %654 = dma.done [#allocation11], 2048
        $region104: #{tpu_custom_call.1} parent=87 // pred_fallthru
          _
        // Predicated region
        $region105: #{tpu_custom_call.1} parent=87 // pred_check
          %p655 = pneg %p145
        $region106: #{tpu_custom_call.1} parent=87 // pred_check_branch
          %657 = sbr.rel (%p655) target = $region108
        $region107: #{tpu_custom_call.1} parent=87 // pred_region
          %658 = dma.done [#allocation11], 16
        $region108: #{tpu_custom_call.1} parent=87 // pred_fallthru
          _
        // Predicated region
        $region109: #{tpu_custom_call.1} parent=87 // pred_check
          %p659 = pneg %p166
        $region110: #{tpu_custom_call.1} parent=87 // pred_check_branch
          %661 = sbr.rel (%p659) target = $region112
        $region111: #{tpu_custom_call.1} parent=87 // pred_region
          %662 = dma.done [#allocation14], 1024
        $region112: #{tpu_custom_call.1} parent=87 // pred_fallthru
          _
        // Predicated region
        $region113: #{tpu_custom_call.1} parent=87 // pred_check
          %p663 = pneg %p187
        $region114: #{tpu_custom_call.1} parent=87 // pred_check_branch
          %665 = sbr.rel (%p663) target = $region116
        $region115: #{tpu_custom_call.1} parent=87 // pred_region
          %666 = dma.done [#allocation14], 8192
        $region116: #{tpu_custom_call.1} parent=87 // pred_fallthru
          _
        // Predicated region
        $region117: #{tpu_custom_call.1} parent=87 // pred_check
          %p667 = pneg %p208
        $region118: #{tpu_custom_call.1} parent=87 // pred_check_branch
          %669 = sbr.rel (%p667) target = $region120
        $region119: #{tpu_custom_call.1} parent=87 // pred_region
          %670 = dma.done [#allocation17], 8192
        $region120: #{tpu_custom_call.1} parent=87 // pred_fallthru
          _
        // Predicated region
        $region121: #{tpu_custom_call.1} parent=87 // pred_check
          %p671 = pneg %p229
        $region122: #{tpu_custom_call.1} parent=87 // pred_check_branch
          %673 = sbr.rel (%p671) target = $region124
        $region123: #{tpu_custom_call.1} parent=87 // pred_region
          %674 = dma.done [#allocation17], 512
        $region124: #{tpu_custom_call.1} parent=87 // pred_fallthru
          _
        // Predicated region
        $region125: #{tpu_custom_call.1} parent=87 // pred_check
          %p675 = pneg %p250
        $region126: #{tpu_custom_call.1} parent=87 // pred_check_branch
          %677 = sbr.rel (%p675) target = $region128
        $region127: #{tpu_custom_call.1} parent=87 // pred_region
          %678 = dma.done [#allocation20], 512
        $region128: #{tpu_custom_call.1} parent=87 // pred_fallthru
          _
        // Predicated region
        $region129: #{tpu_custom_call.1} parent=87 // pred_check
          %p679 = pneg %p271
        $region130: #{tpu_custom_call.1} parent=87 // pred_check_branch
          %681 = sbr.rel (%p679) target = $region132
        $region131: #{tpu_custom_call.1} parent=87 // pred_region
          %682 = dma.done [#allocation20], 512
        $region132: #{tpu_custom_call.1} parent=87 // pred_fallthru
          _
        // Predicated region
        $region133: #{tpu_custom_call.1} parent=87 // pred_check
          %p683 = pneg %p292
        $region134: #{tpu_custom_call.1} parent=87 // pred_check_branch
          %685 = sbr.rel (%p683) target = $region136
        $region135: #{tpu_custom_call.1} parent=87 // pred_region
          %686 = dma.done [#allocation23], 512
        $region136: #{tpu_custom_call.1} parent=87 // pred_fallthru
          _
        // Predicated region
        $region137: #{tpu_custom_call.1} parent=87 // pred_check
          %p687 = pneg %p334
        $region138: #{tpu_custom_call.1} parent=87 // pred_check_branch
          %689 = sbr.rel (%p687) target = $region140
        $region139: #{tpu_custom_call.1} parent=87 // pred_region
          %690 = dma.done [#allocation23], 16384
        $region140: #{tpu_custom_call.1} parent=87 // pred_fallthru
          _
        %s691 = sand.u32 %s48, 1
        %s692 = scalar_lea.sflag [#allocation5], %s691
        %s693 = sand.u32 %s48, 1
        %s694 = smul.addr %s693, 32
        %s695 = scalar_lea.vmem [#allocation4], %s694
        %p696 = pneg %p61
        %p697 = pneg %p58
        %p698 = pneg %p82
        %p699 = pneg %p79
        %p700 = pneg %p103
        %p701 = pneg %p100
        %p702 = pneg %p124
        %p703 = pneg %p121
        %p704 = pneg %p145
        %p705 = pneg %p142
        %p706 = pneg %p166
        %p707 = pneg %p163
        %p708 = pneg %p187
        %p709 = pneg %p184
        %p710 = pneg %p208
        %p711 = pneg %p205
        %p712 = pneg %p229
        %p713 = pneg %p226
        %p714 = pneg %p250
        %p715 = pneg %p247
        %p716 = pneg %p271
        %p717 = pneg %p268
        %p718 = pneg %p292
        %p719 = pneg %p289
        %p720 = pneg %p313
        %p721 = pneg %p310
        %p722 = pneg %p334
        %p723 = pneg %p331
        %p724 = pneg %p355
        %p725 = pneg %p352
        %p726 = pneg %p376
        %p727 = pneg %p373
        %p728 = pneg %p397
        %p729 = pneg %p394
        %p730 = pneg %p423
        %p731 = pneg %p420
        %s732 = sand.u32 %s410, 1
        %s733 = scalar_lea.sflag [#allocation6], %s732
        %s734 = sand.u32 %s410, 1
        %s735 = smul.addr %s734, 32
        %s736 = scalar_lea.vmem [#allocation25], %s735
        %v737 = vlaneseq
        %v738 = vshrl.u32 %v737, 7
        %v739 = vadd.s32 %v738, 8
        %v740 = vlaneseq
        %v741 = vand.u32 %v740, 127
        %v742 = vadd.s32 %v738, %v741
        %v743 = vadd.s32 %v739, %v741
        %vm744 = vcmp.eq.s32.totalorder %v742, 15
        %vm745 = vcmp.eq.s32.totalorder %v743, 15
        %v746 = vsel %vm744, 1.0, 0.0
        %v747 = vsel %vm745, 1.0, 0.0
        %v748 = vld [vmem:[%s638] sm:$0xff]
        %v749 = vld [vmem:[%s638 + $0x8] sm:$0xff]
        %v750 = vld [vmem:[%s638 + $0x10] sm:$0xff]
        %v751 = vld [vmem:[%s638 + $0x18] sm:$0xff]
        %v752 = vld [vmem:[#allocation7] sm:$0xff]
        %v753 = vld [vmem:[#allocation7 + $0x8] sm:$0xff]
        %v754 = vld [vmem:[#allocation7 + $0x10] sm:$0xff]
        %v755 = vld [vmem:[#allocation7 + $0x18] sm:$0xff]
        %v756 = vld [vmem:[#allocation7 + $0x20] sm:$0xff]
        %v757 = vld [vmem:[#allocation7 + $0x28] sm:$0xff]
        %v758 = vld [vmem:[#allocation7 + $0x30] sm:$0xff]
        %v759 = vld [vmem:[#allocation7 + $0x38] sm:$0xff]
        %v760 = vld [vmem:[#allocation7 + $0x40] sm:$0xff]
        %v761 = vld [vmem:[#allocation7 + $0x48] sm:$0xff]
        %v762 = vld [vmem:[#allocation7 + $0x50] sm:$0xff]
        %v763 = vld [vmem:[#allocation7 + $0x58] sm:$0xff]
        %v764 = vld [vmem:[#allocation7 + $0x60] sm:$0xff]
        %v765 = vld [vmem:[#allocation7 + $0x68] sm:$0xff]
        %v766 = vld [vmem:[#allocation7 + $0x70] sm:$0xff]
        %v767 = vld [vmem:[#allocation7 + $0x78] sm:$0xff]
        %v768 = vld [vmem:[#allocation9] sm:$0x1]
        %v770 = vlaneseq
        %v771 = vshrl.u32 %v770, 7
        %v772 = vsub.s32 0, %v771
        %v773 = vrot.slane %v768, %v772
        %775 = vmatprep.subr.mxu0 0.0
        %776 = vmatpush1.msra.mxu0 %v767
        %777 = vmatprep.subr.mxu0 0.0
        %778 = vmatpush1.msra.mxu0 %v766
        %779 = vmatprep.subr.mxu0 0.0
        %780 = vmatpush1.msra.mxu0 %v765
        %781 = vmatprep.subr.mxu0 0.0
        %782 = vmatpush1.msra.mxu0 %v764
        %783 = vmatprep.subr.mxu0 0.0
        %784 = vmatpush1.msra.mxu0 %v763
        %785 = vmatprep.subr.mxu0 0.0
        %786 = vmatpush1.msra.mxu0 %v762
        %787 = vmatprep.subr.mxu0 0.0
        %788 = vmatpush1.msra.mxu0 %v761
        %789 = vmatprep.subr.mxu0 0.0
        %790 = vmatpush1.msra.mxu0 %v760
        %791 = vmatprep.subr.mxu0 0.0
        %792 = vmatpush1.msra.mxu0 %v759
        %793 = vmatprep.subr.mxu0 0.0
        %794 = vmatpush1.msra.mxu0 %v758
        %795 = vmatprep.subr.mxu0 0.0
        %796 = vmatpush1.msra.mxu0 %v757
        %797 = vmatprep.subr.mxu0 0.0
        %798 = vmatpush1.msra.mxu0 %v756
        %799 = vmatprep.subr.mxu0 0.0
        %800 = vmatpush1.msra.mxu0 %v755
        %801 = vmatprep.subr.mxu0 0.0
        %802 = vmatpush1.msra.mxu0 %v754
        %803 = vmatprep.subr.mxu0 0.0
        %804 = vmatpush1.msra.mxu0 %v753
        %805 = vmatprep.subr.mxu0 0.0
        %806 = vmatpush1.msra.mxu0 %v752
        %807 = vmatprep.subr.mxu0 0.0
        %808 = vmatpush2.msra.mxu0 0.0
        %809 = vmatprep.subr.mxu0 0.0
        %810 = vmatpush2.msra.mxu0 0.0
        %811 = vmatprep.subr.mxu0 0.0
        %812 = vmatpush2.msra.mxu0 0.0
        %813 = vmatprep.subr.mxu0 0.0
        %814 = vmatpush2.msra.mxu0 0.0
        %815 = vmatprep.subr.mxu0 0.0
        %816 = vmatpush2.msra.mxu0 0.0
        %817 = vmatprep.subr.mxu0 0.0
        %818 = vmatpush2.msra.mxu0 0.0
        %819 = vmatprep.subr.mxu0 0.0
        %820 = vmatpush2.msra.mxu0 0.0
        %821 = vmatprep.subr.mxu0 0.0
        %822 = vmatpush2.msra.mxu0 0.0
        %823 = vmatprep.subr.mxu0 0.0
        %824 = vmatpush2.msra.mxu0 0.0
        %825 = vmatprep.subr.mxu0 0.0
        %826 = vmatpush2.msra.mxu0 0.0
        %827 = vmatprep.subr.mxu0 0.0
        %828 = vmatpush2.msra.mxu0 0.0
        %829 = vmatprep.subr.mxu0 0.0
        %830 = vmatpush2.msra.mxu0 0.0
        %831 = vmatprep.subr.mxu0 0.0
        %832 = vmatpush2.msra.mxu0 0.0
        %833 = vmatprep.subr.mxu0 0.0
        %834 = vmatpush2.msra.mxu0 0.0
        %835 = vmatprep.subr.mxu0 0.0
        %836 = vmatpush2.msra.mxu0 0.0
        %837 = vmatprep.subr.mxu0 0.0
        %838 = vmatpush2.msra.mxu0 0.0
        %839 = vmatprep.mubr.f32.mxu0 0.0
        %840 = vmatmul.mubr.f32.gmra.mxu0 %v748
        %v841 = vpop.f32.mrf.mxu0
        %v842 = vadd.f32 %v773, %v841
        %v843 = vpop.f32.mrf.mxu0
        %844 = vmatprep.mubr.f32.mxu0 0.0
        %845 = vmatmul.mubr.f32.gmra.mxu0 %v749
        %v846 = vpop.f32.mrf.mxu0
        %v847 = vadd.f32 %v773, %v846
        %v848 = vpop.f32.mrf.mxu0
        %849 = vmatprep.mubr.f32.mxu0 0.0
        %850 = vmatmul.mubr.f32.gmra.mxu0 %v750
        %v851 = vpop.f32.mrf.mxu0
        %v852 = vadd.f32 %v773, %v851
        %v853 = vpop.f32.mrf.mxu0
        %854 = vmatprep.mubr.f32.mxu0 0.0
        %855 = vmatmul.mubr.f32.gmra.mxu0 %v751
        %v856 = vpop.f32.mrf.mxu0
        %v857 = vadd.f32 %v773, %v856
        %v858 = vpop.f32.mrf.mxu0
        %859 = vdwg.mxu0
        %860 = vst [vmem:[#allocation2] sm:$0xff] %v842
        %861 = vst [vmem:[#allocation2 + $0x8] sm:$0xff] %v847
        %862 = vst [vmem:[#allocation2 + $0x10] sm:$0xff] %v852
        %863 = vst [vmem:[#allocation2 + $0x18] sm:$0xff] %v857
        loop: start=0, step=1, limit=4
        $region141: #{tpu_custom_call.1} parent=87 // loop_pre_header
          _
        $region142: #{tpu_custom_call.1} parent=87 // loop_header
          %s865 = sphi 0, %s869
          %p866 = scmp.ge.s32.totalorder %s865, 4
        $region143: #{tpu_custom_call.1} parent=87 // loop_header_branch
          %868 = sbr.rel (%p866) target = $region147
        $region144: #{tpu_custom_call.1} parent=87 // loop_body
          %s870 = smul.u32 %s865, 8
          %s871 = scalar_lea.vmem [#allocation18], %s870
          %v872 = vld [vmem:[%s871] sm:$0xff]
          %s873 = scalar_lea.vmem [#allocation19], %s870
          %v874 = vld [vmem:[%s873] sm:$0xff]
          %s875 = scalar_lea.vmem [#allocation21], %s870
          %v876 = vld [vmem:[%s875] sm:$0xff]
          %s877 = scalar_lea.vmem [#allocation22], %s870
          %v878 = vld [vmem:[%s877] sm:$0xff]
          loop: start=0, step=1, limit=2
          $region148: #{tpu_custom_call.1} parent=144 // loop_pre_header
            _
          $region149: #{tpu_custom_call.1} parent=144 // loop_header
            %s880 = sphi 0, %s884
            %p881 = scmp.ge.s32.totalorder %s880, 2
            %v885 = vphi 0.0, %v1199
            %v886 = vphi 0.0, %v1255
            %v887 = vphi 0.0, %v1311
            %v888 = vphi 0.0, %v1367
            %v889 = vphi 0.0, %v1423
            %v890 = vphi 0.0, %v1479
            %v891 = vphi 0.0, %v1535
            %v892 = vphi 0.0, %v1591
            %v893 = vphi 0.0, %v1206
            %v894 = vphi 0.0, %v1262
            %v895 = vphi 0.0, %v1318
            %v896 = vphi 0.0, %v1374
            %v897 = vphi 0.0, %v1430
            %v898 = vphi 0.0, %v1486
            %v899 = vphi 0.0, %v1542
            %v900 = vphi 0.0, %v1598
          $region150: #{tpu_custom_call.1} parent=144 // loop_header_branch
            %883 = sbr.rel (%p881) target = $region154
          $region151: #{tpu_custom_call.1} parent=144 // loop_body
            %s901 = smul.u32 %s880, 16
            %s902 = scalar_lea.vmem [#allocation2], %s901
            %v903 = vld [vmem:[%s902] sm:$0xff]
            %v904 = vld [vmem:[%s902 + $0x8] sm:$0xff]
            %vm905 = vcmask 130048
            %v907 = vsel %vm905, %v746, 0
            %v910 = vsel %vm905, %v747, 0
            %912 = vmatprep.subr.mxu0 0.0
            %913 = vmatpush1.msra.mxu0 0.0
            %914 = vmatprep.subr.mxu0 0.0
            %915 = vmatpush1.msra.mxu0 0.0
            %916 = vmatprep.subr.mxu0 0.0
            %917 = vmatpush1.msra.mxu0 0.0
            %918 = vmatprep.subr.mxu0 0.0
            %919 = vmatpush1.msra.mxu0 0.0
            %920 = vmatprep.subr.mxu0 0.0
            %921 = vmatpush1.msra.mxu0 0.0
            %922 = vmatprep.subr.mxu0 0.0
            %923 = vmatpush1.msra.mxu0 0.0
            %924 = vmatprep.subr.mxu0 0.0
            %925 = vmatpush1.msra.mxu0 0.0
            %926 = vmatprep.subr.mxu0 0.0
            %927 = vmatpush1.msra.mxu0 0.0
            %928 = vmatprep.subr.mxu0 0.0
            %929 = vmatpush1.msra.mxu0 0.0
            %930 = vmatprep.subr.mxu0 0.0
            %931 = vmatpush1.msra.mxu0 0.0
            %932 = vmatprep.subr.mxu0 0.0
            %933 = vmatpush1.msra.mxu0 0.0
            %934 = vmatprep.subr.mxu0 0.0
            %935 = vmatpush1.msra.mxu0 0.0
            %936 = vmatprep.subr.mxu0 0.0
            %937 = vmatpush1.msra.mxu0 0.0
            %938 = vmatprep.subr.mxu0 0.0
            %939 = vmatpush1.msra.mxu0 0.0
            %940 = vmatprep.subr.mxu0 0.0
            %941 = vmatpush1.msra.mxu0 %v904
            %942 = vmatprep.subr.mxu0 0.0
            %943 = vmatpush1.msra.mxu0 %v903
            %944 = vmatprep.subr.mxu0 0.0
            %945 = vmatpush2.msra.mxu0 0.0
            %946 = vmatprep.subr.mxu0 0.0
            %947 = vmatpush2.msra.mxu0 0.0
            %948 = vmatprep.subr.mxu0 0.0
            %949 = vmatpush2.msra.mxu0 0.0
            %950 = vmatprep.subr.mxu0 0.0
            %951 = vmatpush2.msra.mxu0 0.0
            %952 = vmatprep.subr.mxu0 0.0
            %953 = vmatpush2.msra.mxu0 0.0
            %954 = vmatprep.subr.mxu0 0.0
            %955 = vmatpush2.msra.mxu0 0.0
            %956 = vmatprep.subr.mxu0 0.0
            %957 = vmatpush2.msra.mxu0 0.0
            %958 = vmatprep.subr.mxu0 0.0
            %959 = vmatpush2.msra.mxu0 0.0
            %960 = vmatprep.subr.mxu0 0.0
            %961 = vmatpush2.msra.mxu0 0.0
            %962 = vmatprep.subr.mxu0 0.0
            %963 = vmatpush2.msra.mxu0 0.0
            %964 = vmatprep.subr.mxu0 0.0
            %965 = vmatpush2.msra.mxu0 0.0
            %966 = vmatprep.subr.mxu0 0.0
            %967 = vmatpush2.msra.mxu0 0.0
            %968 = vmatprep.subr.mxu0 0.0
            %969 = vmatpush2.msra.mxu0 0.0
            %970 = vmatprep.subr.mxu0 0.0
            %971 = vmatpush2.msra.mxu0 0.0
            %972 = vmatprep.subr.mxu0 0.0
            %973 = vmatpush2.msra.mxu0 0.0
            %974 = vmatprep.subr.mxu0 0.0
            %975 = vmatpush2.msra.mxu0 0.0
            %976 = vmatprep.mubr.f32.mxu0 0.0
            %977 = vmatmul.mubr.f32.gmra.mxu0 %v907
            %v978 = vpop.f32.mrf.mxu0
            %v979 = vadd.f32 0.0, %v978
            %v980 = vpop.f32.mrf.mxu0
            %981 = vmatprep.mubr.f32.mxu0 0.0
            %982 = vmatmul.mubr.f32.gmra.mxu0 %v910
            %v983 = vpop.f32.mrf.mxu0
            %v984 = vadd.f32 0.0, %v983
            %v985 = vpop.f32.mrf.mxu0
            %986 = vdwg.mxu0
            %s987 = smul.u32 %s865, 16
            %s988 = scalar_lea.vmem [#allocation13], %s987
            %v989 = vld [vmem:[%s988] sm:$0xff]
            %v990 = vld [vmem:[%s988 + $0x8] sm:$0xff]
            %v991 = vlaneseq
            %v992 = vshrl.u32 %v991, 7
            %v993 = vsub.s32 0, %v992
            %v994 = vrot.slane %v989, %v993
            %v995 = vmul.f32 %v994, %v903
            %v996 = vmul.f32 %v994, %v904
            %v997 = vrot.slane %v903, 7
            %v998 = vrot.slane %v904, 7
            %vm999 = vcmp.lt.s32.totalorder %v738, 1
            %v1000 = vsel %vm999, %v997, %v998
            %v1001 = vsel %vm999, 0.0, %v997
            %v1002 = vlaneseq
            %v1003 = vshrl.u32 %v1002, 7
            %v1004 = vsub.s32 1, %v1003
            %v1005 = vrot.slane %v989, %v1004
            %v1006 = vmul.f32 %v1005, %v1001
            %v1007 = vmul.f32 %v1005, %v1000
            %v1008 = vadd.f32 %v995, %v1006
            %v1009 = vadd.f32 %v996, %v1007
            %v1010 = vrot.slane %v903, 6
            %v1011 = vrot.slane %v904, 6
            %vm1012 = vcmp.lt.s32.totalorder %v738, 2
            %v1013 = vsel %vm1012, %v1010, %v1011
            %v1014 = vsel %vm1012, 0.0, %v1010
            %v1015 = vlaneseq
            %v1016 = vshrl.u32 %v1015, 7
            %v1017 = vsub.s32 2, %v1016
            %v1018 = vrot.slane %v989, %v1017
            %v1019 = vmul.f32 %v1018, %v1014
            %v1020 = vmul.f32 %v1018, %v1013
            %v1021 = vadd.f32 %v1008, %v1019
            %v1022 = vadd.f32 %v1009, %v1020
            %v1023 = vrot.slane %v903, 5
            %v1024 = vrot.slane %v904, 5
            %vm1025 = vcmp.lt.s32.totalorder %v738, 3
            %v1026 = vsel %vm1025, %v1023, %v1024
            %v1027 = vsel %vm1025, 0.0, %v1023
            %v1028 = vlaneseq
            %v1029 = vshrl.u32 %v1028, 7
            %v1030 = vsub.s32 3, %v1029
            %v1031 = vrot.slane %v989, %v1030
            %v1032 = vmul.f32 %v1031, %v1027
            %v1033 = vmul.f32 %v1031, %v1026
            %v1034 = vadd.f32 %v1021, %v1032
            %v1035 = vadd.f32 %v1022, %v1033
            %v1036 = vrot.slane %v903, 4
            %v1037 = vrot.slane %v904, 4
            %vm1038 = vcmp.lt.s32.totalorder %v738, 4
            %v1039 = vsel %vm1038, %v1036, %v1037
            %v1040 = vsel %vm1038, 0.0, %v1036
            %v1041 = vlaneseq
            %v1042 = vshrl.u32 %v1041, 7
            %v1043 = vsub.s32 4, %v1042
            %v1044 = vrot.slane %v989, %v1043
            %v1045 = vmul.f32 %v1044, %v1040
            %v1046 = vmul.f32 %v1044, %v1039
            %v1047 = vadd.f32 %v1034, %v1045
            %v1048 = vadd.f32 %v1035, %v1046
            %v1049 = vrot.slane %v903, 3
            %v1050 = vrot.slane %v904, 3
            %vm1051 = vcmp.lt.s32.totalorder %v738, 5
            %v1052 = vsel %vm1051, %v1049, %v1050
            %v1053 = vsel %vm1051, 0.0, %v1049
            %v1054 = vlaneseq
            %v1055 = vshrl.u32 %v1054, 7
            %v1056 = vsub.s32 5, %v1055
            %v1057 = vrot.slane %v989, %v1056
            %v1058 = vmul.f32 %v1057, %v1053
            %v1059 = vmul.f32 %v1057, %v1052
            %v1060 = vadd.f32 %v1047, %v1058
            %v1061 = vadd.f32 %v1048, %v1059
            %v1062 = vrot.slane %v903, 2
            %v1063 = vrot.slane %v904, 2
            %vm1064 = vcmp.lt.s32.totalorder %v738, 6
            %v1065 = vsel %vm1064, %v1062, %v1063
            %v1066 = vsel %vm1064, 0.0, %v1062
            %v1067 = vlaneseq
            %v1068 = vshrl.u32 %v1067, 7
            %v1069 = vsub.s32 6, %v1068
            %v1070 = vrot.slane %v989, %v1069
            %v1071 = vmul.f32 %v1070, %v1066
            %v1072 = vmul.f32 %v1070, %v1065
            %v1073 = vadd.f32 %v1060, %v1071
            %v1074 = vadd.f32 %v1061, %v1072
            %v1075 = vrot.slane %v903, 1
            %v1076 = vrot.slane %v904, 1
            %vm1077 = vcmp.lt.s32.totalorder %v738, 7
            %v1078 = vsel %vm1077, %v1075, %v1076
            %v1079 = vsel %vm1077, 0.0, %v1075
            %v1080 = vlaneseq
            %v1081 = vshrl.u32 %v1080, 7
            %v1082 = vsub.s32 7, %v1081
            %v1083 = vrot.slane %v989, %v1082
            %v1084 = vmul.f32 %v1083, %v1079
            %v1085 = vmul.f32 %v1083, %v1078
            %v1086 = vadd.f32 %v1073, %v1084
            %v1087 = vadd.f32 %v1074, %v1085
            %v1088 = vlaneseq
            %v1089 = vshrl.u32 %v1088, 7
            %v1090 = vsub.s32 0, %v1089
            %v1091 = vrot.slane %v990, %v1090
            %v1092 = vmul.f32 %v1091, 0.0
            %v1093 = vmul.f32 %v1091, %v903
            %v1094 = vadd.f32 %v1086, %v1092
            %v1095 = vadd.f32 %v1087, %v1093
            %v1096 = vlaneseq
            %v1097 = vshrl.u32 %v1096, 7
            %v1098 = vsub.s32 1, %v1097
            %v1099 = vrot.slane %v990, %v1098
            %v1100 = vmul.f32 %v1099, 0.0
            %v1101 = vmul.f32 %v1099, %v1001
            %v1102 = vadd.f32 %v1094, %v1100
            %v1103 = vadd.f32 %v1095, %v1101
            %v1104 = vlaneseq
            %v1105 = vshrl.u32 %v1104, 7
            %v1106 = vsub.s32 2, %v1105
            %v1107 = vrot.slane %v990, %v1106
            %v1108 = vmul.f32 %v1107, 0.0
            %v1109 = vmul.f32 %v1107, %v1014
            %v1110 = vadd.f32 %v1102, %v1108
            %v1111 = vadd.f32 %v1103, %v1109
            %v1112 = vlaneseq
            %v1113 = vshrl.u32 %v1112, 7
            %v1114 = vsub.s32 3, %v1113
            %v1115 = vrot.slane %v990, %v1114
            %v1116 = vmul.f32 %v1115, 0.0
            %v1117 = vmul.f32 %v1115, %v1027
            %v1118 = vadd.f32 %v1110, %v1116
            %v1119 = vadd.f32 %v1111, %v1117
            %v1120 = vlaneseq
            %v1121 = vshrl.u32 %v1120, 7
            %v1122 = vsub.s32 4, %v1121
            %v1123 = vrot.slane %v990, %v1122
            %v1124 = vmul.f32 %v1123, 0.0
            %v1125 = vmul.f32 %v1123, %v1040
            %v1126 = vadd.f32 %v1118, %v1124
            %v1127 = vadd.f32 %v1119, %v1125
            %v1128 = vlaneseq
            %v1129 = vshrl.u32 %v1128, 7
            %v1130 = vsub.s32 5, %v1129
            %v1131 = vrot.slane %v990, %v1130
            %v1132 = vmul.f32 %v1131, 0.0
            %v1133 = vmul.f32 %v1131, %v1053
            %v1134 = vadd.f32 %v1126, %v1132
            %v1135 = vadd.f32 %v1127, %v1133
            %v1136 = vlaneseq
            %v1137 = vshrl.u32 %v1136, 7
            %v1138 = vsub.s32 6, %v1137
            %v1139 = vrot.slane %v990, %v1138
            %v1140 = vmul.f32 %v1139, 0.0
            %v1141 = vmul.f32 %v1139, %v1066
            %v1142 = vadd.f32 %v1134, %v1140
            %v1143 = vadd.f32 %v1135, %v1141
            %v1144 = vlaneseq
            %v1145 = vshrl.u32 %v1144, 7
            %v1146 = vsub.s32 7, %v1145
            %v1147 = vrot.slane %v990, %v1146
            %v1148 = vmul.f32 %v1147, 0.0
            %v1149 = vmul.f32 %v1147, %v1079
            %v1150 = vadd.f32 %v1142, %v1148
            %v1151 = vadd.f32 %v1143, %v1149
            %s1152 = smul.u32 %s870, 16
            %s1153 = scalar_lea.vmem [#allocation15], %s1152
            %v1154 = vld [vmem:[%s1153] sm:$0xff]
            %v1155 = vld [vmem:[%s1153 + $0x8] sm:$0xff]
            %s1156 = scalar_lea.vmem [#allocation16], %s1152
            %v1157 = vld [vmem:[%s1156] sm:$0xff]
            %v1158 = vld [vmem:[%s1156 + $0x8] sm:$0xff]
            %v1159 = vlaneseq
            %v1160 = vshrl.u32 %v1159, 7
            %v1161 = vsub.s32 0, %v1160
            %v1162 = vrot.slane %v885, %v1161
            %v1163 = vmul.f32 %v1154, %v1162
            %v1164 = vmul.f32 %v1155, %v1162
            %v1165 = vlaneseq
            %v1166 = vshrl.u32 %v1165, 7
            %v1167 = vsub.s32 0, %v1166
            %v1168 = vrot.slane %v893, %v1167
            %v1169 = vmul.f32 %v1157, %v1168
            %v1170 = vmul.f32 %v1158, %v1168
            %v1171 = vsub.f32 %v1163, %v1169
            %v1172 = vsub.f32 %v1164, %v1170
            %v1173 = vadd.f32 %v1150, %v1171
            %v1174 = vadd.f32 %v1151, %v1172
            %v1175 = vmul.f32 %v1154, %v979
            %v1176 = vmul.f32 %v1155, %v984
            %v1177 = vadd.f32 %v1175, %v1176
            %v1178 = vrot.slane %v1177, 4
            %v1179 = vadd.f32 %v1177, %v1178
            %v1180 = vrot.slane %v1179, 2
            %v1181 = vadd.f32 %v1179, %v1180
            %v1182 = vrot.slane %v1181, 1
            %v1183 = vadd.f32 %v1181, %v1182
            %v1184 = vmul.f32 %v1157, %v979
            %v1185 = vmul.f32 %v1158, %v984
            %v1186 = vadd.f32 %v1184, %v1185
            %v1187 = vrot.slane %v1186, 4
            %v1188 = vadd.f32 %v1186, %v1187
            %v1189 = vrot.slane %v1188, 2
            %v1190 = vadd.f32 %v1188, %v1189
            %v1191 = vrot.slane %v1190, 1
            %v1192 = vadd.f32 %v1190, %v1191
            %v1193 = vmul.f32 %v872, %v885
            %v1194 = vmul.f32 %v874, %v893
            %v1195 = vsub.f32 %v1193, %v1194
            %v1196 = vmul.f32 %v876, %v1183
            %v1197 = vadd.f32 %v1195, %v1196
            %v1198 = vmul.f32 %v878, %v1192
            %v1199 = vsub.f32 %v1197, %v1198
            %v1200 = vmul.f32 %v872, %v893
            %v1201 = vmul.f32 %v874, %v885
            %v1202 = vadd.f32 %v1200, %v1201
            %v1203 = vmul.f32 %v876, %v1192
            %v1204 = vadd.f32 %v1202, %v1203
            %v1205 = vmul.f32 %v878, %v1183
            %v1206 = vadd.f32 %v1204, %v1205
            %s1207 = sadd.s32 %s870, 1
            %s1208 = smul.u32 %s1207, 16
            %s1209 = scalar_lea.vmem [#allocation15], %s1208
            %v1210 = vld [vmem:[%s1209] sm:$0xff]
            %v1211 = vld [vmem:[%s1209 + $0x8] sm:$0xff]
            %s1212 = scalar_lea.vmem [#allocation16], %s1208
            %v1213 = vld [vmem:[%s1212] sm:$0xff]
            %v1214 = vld [vmem:[%s1212 + $0x8] sm:$0xff]
            %v1215 = vlaneseq
            %v1216 = vshrl.u32 %v1215, 7
            %v1217 = vsub.s32 1, %v1216
            %v1218 = vrot.slane %v886, %v1217
            %v1219 = vmul.f32 %v1210, %v1218
            %v1220 = vmul.f32 %v1211, %v1218
            %v1221 = vlaneseq
            %v1222 = vshrl.u32 %v1221, 7
            %v1223 = vsub.s32 1, %v1222
            %v1224 = vrot.slane %v894, %v1223
            %v1225 = vmul.f32 %v1213, %v1224
            %v1226 = vmul.f32 %v1214, %v1224
            %v1227 = vsub.f32 %v1219, %v1225
            %v1228 = vsub.f32 %v1220, %v1226
            %v1229 = vadd.f32 %v1173, %v1227
            %v1230 = vadd.f32 %v1174, %v1228
            %v1231 = vmul.f32 %v1210, %v979
            %v1232 = vmul.f32 %v1211, %v984
            %v1233 = vadd.f32 %v1231, %v1232
            %v1234 = vrot.slane %v1233, 4
            %v1235 = vadd.f32 %v1233, %v1234
            %v1236 = vrot.slane %v1235, 2
            %v1237 = vadd.f32 %v1235, %v1236
            %v1238 = vrot.slane %v1237, 1
            %v1239 = vadd.f32 %v1237, %v1238
            %v1240 = vmul.f32 %v1213, %v979
            %v1241 = vmul.f32 %v1214, %v984
            %v1242 = vadd.f32 %v1240, %v1241
            %v1243 = vrot.slane %v1242, 4
            %v1244 = vadd.f32 %v1242, %v1243
            %v1245 = vrot.slane %v1244, 2
            %v1246 = vadd.f32 %v1244, %v1245
            %v1247 = vrot.slane %v1246, 1
            %v1248 = vadd.f32 %v1246, %v1247
            %v1249 = vmul.f32 %v872, %v886
            %v1250 = vmul.f32 %v874, %v894
            %v1251 = vsub.f32 %v1249, %v1250
            %v1252 = vmul.f32 %v876, %v1239
            %v1253 = vadd.f32 %v1251, %v1252
            %v1254 = vmul.f32 %v878, %v1248
            %v1255 = vsub.f32 %v1253, %v1254
            %v1256 = vmul.f32 %v872, %v894
            %v1257 = vmul.f32 %v874, %v886
            %v1258 = vadd.f32 %v1256, %v1257
            %v1259 = vmul.f32 %v876, %v1248
            %v1260 = vadd.f32 %v1258, %v1259
            %v1261 = vmul.f32 %v878, %v1239
            %v1262 = vadd.f32 %v1260, %v1261
            %s1263 = sadd.s32 %s870, 2
            %s1264 = smul.u32 %s1263, 16
            %s1265 = scalar_lea.vmem [#allocation15], %s1264
            %v1266 = vld [vmem:[%s1265] sm:$0xff]
            %v1267 = vld [vmem:[%s1265 + $0x8] sm:$0xff]
            %s1268 = scalar_lea.vmem [#allocation16], %s1264
            %v1269 = vld [vmem:[%s1268] sm:$0xff]
            %v1270 = vld [vmem:[%s1268 + $0x8] sm:$0xff]
            %v1271 = vlaneseq
            %v1272 = vshrl.u32 %v1271, 7
            %v1273 = vsub.s32 2, %v1272
            %v1274 = vrot.slane %v887, %v1273
            %v1275 = vmul.f32 %v1266, %v1274
            %v1276 = vmul.f32 %v1267, %v1274
            %v1277 = vlaneseq
            %v1278 = vshrl.u32 %v1277, 7
            %v1279 = vsub.s32 2, %v1278
            %v1280 = vrot.slane %v895, %v1279
            %v1281 = vmul.f32 %v1269, %v1280
            %v1282 = vmul.f32 %v1270, %v1280
            %v1283 = vsub.f32 %v1275, %v1281
            %v1284 = vsub.f32 %v1276, %v1282
            %v1285 = vadd.f32 %v1229, %v1283
            %v1286 = vadd.f32 %v1230, %v1284
            %v1287 = vmul.f32 %v1266, %v979
            %v1288 = vmul.f32 %v1267, %v984
            %v1289 = vadd.f32 %v1287, %v1288
            %v1290 = vrot.slane %v1289, 4
            %v1291 = vadd.f32 %v1289, %v1290
            %v1292 = vrot.slane %v1291, 2
            %v1293 = vadd.f32 %v1291, %v1292
            %v1294 = vrot.slane %v1293, 1
            %v1295 = vadd.f32 %v1293, %v1294
            %v1296 = vmul.f32 %v1269, %v979
            %v1297 = vmul.f32 %v1270, %v984
            %v1298 = vadd.f32 %v1296, %v1297
            %v1299 = vrot.slane %v1298, 4
            %v1300 = vadd.f32 %v1298, %v1299
            %v1301 = vrot.slane %v1300, 2
            %v1302 = vadd.f32 %v1300, %v1301
            %v1303 = vrot.slane %v1302, 1
            %v1304 = vadd.f32 %v1302, %v1303
            %v1305 = vmul.f32 %v872, %v887
            %v1306 = vmul.f32 %v874, %v895
            %v1307 = vsub.f32 %v1305, %v1306
            %v1308 = vmul.f32 %v876, %v1295
            %v1309 = vadd.f32 %v1307, %v1308
            %v1310 = vmul.f32 %v878, %v1304
            %v1311 = vsub.f32 %v1309, %v1310
            %v1312 = vmul.f32 %v872, %v895
            %v1313 = vmul.f32 %v874, %v887
            %v1314 = vadd.f32 %v1312, %v1313
            %v1315 = vmul.f32 %v876, %v1304
            %v1316 = vadd.f32 %v1314, %v1315
            %v1317 = vmul.f32 %v878, %v1295
            %v1318 = vadd.f32 %v1316, %v1317
            %s1319 = sadd.s32 %s870, 3
            %s1320 = smul.u32 %s1319, 16
            %s1321 = scalar_lea.vmem [#allocation15], %s1320
            %v1322 = vld [vmem:[%s1321] sm:$0xff]
            %v1323 = vld [vmem:[%s1321 + $0x8] sm:$0xff]
            %s1324 = scalar_lea.vmem [#allocation16], %s1320
            %v1325 = vld [vmem:[%s1324] sm:$0xff]
            %v1326 = vld [vmem:[%s1324 + $0x8] sm:$0xff]
            %v1327 = vlaneseq
            %v1328 = vshrl.u32 %v1327, 7
            %v1329 = vsub.s32 3, %v1328
            %v1330 = vrot.slane %v888, %v1329
            %v1331 = vmul.f32 %v1322, %v1330
            %v1332 = vmul.f32 %v1323, %v1330
            %v1333 = vlaneseq
            %v1334 = vshrl.u32 %v1333, 7
            %v1335 = vsub.s32 3, %v1334
            %v1336 = vrot.slane %v896, %v1335
            %v1337 = vmul.f32 %v1325, %v1336
            %v1338 = vmul.f32 %v1326, %v1336
            %v1339 = vsub.f32 %v1331, %v1337
            %v1340 = vsub.f32 %v1332, %v1338
            %v1341 = vadd.f32 %v1285, %v1339
            %v1342 = vadd.f32 %v1286, %v1340
            %v1343 = vmul.f32 %v1322, %v979
            %v1344 = vmul.f32 %v1323, %v984
            %v1345 = vadd.f32 %v1343, %v1344
            %v1346 = vrot.slane %v1345, 4
            %v1347 = vadd.f32 %v1345, %v1346
            %v1348 = vrot.slane %v1347, 2
            %v1349 = vadd.f32 %v1347, %v1348
            %v1350 = vrot.slane %v1349, 1
            %v1351 = vadd.f32 %v1349, %v1350
            %v1352 = vmul.f32 %v1325, %v979
            %v1353 = vmul.f32 %v1326, %v984
            %v1354 = vadd.f32 %v1352, %v1353
            %v1355 = vrot.slane %v1354, 4
            %v1356 = vadd.f32 %v1354, %v1355
            %v1357 = vrot.slane %v1356, 2
            %v1358 = vadd.f32 %v1356, %v1357
            %v1359 = vrot.slane %v1358, 1
            %v1360 = vadd.f32 %v1358, %v1359
            %v1361 = vmul.f32 %v872, %v888
            %v1362 = vmul.f32 %v874, %v896
            %v1363 = vsub.f32 %v1361, %v1362
            %v1364 = vmul.f32 %v876, %v1351
            %v1365 = vadd.f32 %v1363, %v1364
            %v1366 = vmul.f32 %v878, %v1360
            %v1367 = vsub.f32 %v1365, %v1366
            %v1368 = vmul.f32 %v872, %v896
            %v1369 = vmul.f32 %v874, %v888
            %v1370 = vadd.f32 %v1368, %v1369
            %v1371 = vmul.f32 %v876, %v1360
            %v1372 = vadd.f32 %v1370, %v1371
            %v1373 = vmul.f32 %v878, %v1351
            %v1374 = vadd.f32 %v1372, %v1373
            %s1375 = sadd.s32 %s870, 4
            %s1376 = smul.u32 %s1375, 16
            %s1377 = scalar_lea.vmem [#allocation15], %s1376
            %v1378 = vld [vmem:[%s1377] sm:$0xff]
            %v1379 = vld [vmem:[%s1377 + $0x8] sm:$0xff]
            %s1380 = scalar_lea.vmem [#allocation16], %s1376
            %v1381 = vld [vmem:[%s1380] sm:$0xff]
            %v1382 = vld [vmem:[%s1380 + $0x8] sm:$0xff]
            %v1383 = vlaneseq
            %v1384 = vshrl.u32 %v1383, 7
            %v1385 = vsub.s32 4, %v1384
            %v1386 = vrot.slane %v889, %v1385
            %v1387 = vmul.f32 %v1378, %v1386
            %v1388 = vmul.f32 %v1379, %v1386
            %v1389 = vlaneseq
            %v1390 = vshrl.u32 %v1389, 7
            %v1391 = vsub.s32 4, %v1390
            %v1392 = vrot.slane %v897, %v1391
            %v1393 = vmul.f32 %v1381, %v1392
            %v1394 = vmul.f32 %v1382, %v1392
            %v1395 = vsub.f32 %v1387, %v1393
            %v1396 = vsub.f32 %v1388, %v1394
            %v1397 = vadd.f32 %v1341, %v1395
            %v1398 = vadd.f32 %v1342, %v1396
            %v1399 = vmul.f32 %v1378, %v979
            %v1400 = vmul.f32 %v1379, %v984
            %v1401 = vadd.f32 %v1399, %v1400
            %v1402 = vrot.slane %v1401, 4
            %v1403 = vadd.f32 %v1401, %v1402
            %v1404 = vrot.slane %v1403, 2
            %v1405 = vadd.f32 %v1403, %v1404
            %v1406 = vrot.slane %v1405, 1
            %v1407 = vadd.f32 %v1405, %v1406
            %v1408 = vmul.f32 %v1381, %v979
            %v1409 = vmul.f32 %v1382, %v984
            %v1410 = vadd.f32 %v1408, %v1409
            %v1411 = vrot.slane %v1410, 4
            %v1412 = vadd.f32 %v1410, %v1411
            %v1413 = vrot.slane %v1412, 2
            %v1414 = vadd.f32 %v1412, %v1413
            %v1415 = vrot.slane %v1414, 1
            %v1416 = vadd.f32 %v1414, %v1415
            %v1417 = vmul.f32 %v872, %v889
            %v1418 = vmul.f32 %v874, %v897
            %v1419 = vsub.f32 %v1417, %v1418
            %v1420 = vmul.f32 %v876, %v1407
            %v1421 = vadd.f32 %v1419, %v1420
            %v1422 = vmul.f32 %v878, %v1416
            %v1423 = vsub.f32 %v1421, %v1422
            %v1424 = vmul.f32 %v872, %v897
            %v1425 = vmul.f32 %v874, %v889
            %v1426 = vadd.f32 %v1424, %v1425
            %v1427 = vmul.f32 %v876, %v1416
            %v1428 = vadd.f32 %v1426, %v1427
            %v1429 = vmul.f32 %v878, %v1407
            %v1430 = vadd.f32 %v1428, %v1429
            %s1431 = sadd.s32 %s870, 5
            %s1432 = smul.u32 %s1431, 16
            %s1433 = scalar_lea.vmem [#allocation15], %s1432
            %v1434 = vld [vmem:[%s1433] sm:$0xff]
            %v1435 = vld [vmem:[%s1433 + $0x8] sm:$0xff]
            %s1436 = scalar_lea.vmem [#allocation16], %s1432
            %v1437 = vld [vmem:[%s1436] sm:$0xff]
            %v1438 = vld [vmem:[%s1436 + $0x8] sm:$0xff]
            %v1439 = vlaneseq
            %v1440 = vshrl.u32 %v1439, 7
            %v1441 = vsub.s32 5, %v1440
            %v1442 = vrot.slane %v890, %v1441
            %v1443 = vmul.f32 %v1434, %v1442
            %v1444 = vmul.f32 %v1435, %v1442
            %v1445 = vlaneseq
            %v1446 = vshrl.u32 %v1445, 7
            %v1447 = vsub.s32 5, %v1446
            %v1448 = vrot.slane %v898, %v1447
            %v1449 = vmul.f32 %v1437, %v1448
            %v1450 = vmul.f32 %v1438, %v1448
            %v1451 = vsub.f32 %v1443, %v1449
            %v1452 = vsub.f32 %v1444, %v1450
            %v1453 = vadd.f32 %v1397, %v1451
            %v1454 = vadd.f32 %v1398, %v1452
            %v1455 = vmul.f32 %v1434, %v979
            %v1456 = vmul.f32 %v1435, %v984
            %v1457 = vadd.f32 %v1455, %v1456
            %v1458 = vrot.slane %v1457, 4
            %v1459 = vadd.f32 %v1457, %v1458
            %v1460 = vrot.slane %v1459, 2
            %v1461 = vadd.f32 %v1459, %v1460
            %v1462 = vrot.slane %v1461, 1
            %v1463 = vadd.f32 %v1461, %v1462
            %v1464 = vmul.f32 %v1437, %v979
            %v1465 = vmul.f32 %v1438, %v984
            %v1466 = vadd.f32 %v1464, %v1465
            %v1467 = vrot.slane %v1466, 4
            %v1468 = vadd.f32 %v1466, %v1467
            %v1469 = vrot.slane %v1468, 2
            %v1470 = vadd.f32 %v1468, %v1469
            %v1471 = vrot.slane %v1470, 1
            %v1472 = vadd.f32 %v1470, %v1471
            %v1473 = vmul.f32 %v872, %v890
            %v1474 = vmul.f32 %v874, %v898
            %v1475 = vsub.f32 %v1473, %v1474
            %v1476 = vmul.f32 %v876, %v1463
            %v1477 = vadd.f32 %v1475, %v1476
            %v1478 = vmul.f32 %v878, %v1472
            %v1479 = vsub.f32 %v1477, %v1478
            %v1480 = vmul.f32 %v872, %v898
            %v1481 = vmul.f32 %v874, %v890
            %v1482 = vadd.f32 %v1480, %v1481
            %v1483 = vmul.f32 %v876, %v1472
            %v1484 = vadd.f32 %v1482, %v1483
            %v1485 = vmul.f32 %v878, %v1463
            %v1486 = vadd.f32 %v1484, %v1485
            %s1487 = sadd.s32 %s870, 6
            %s1488 = smul.u32 %s1487, 16
            %s1489 = scalar_lea.vmem [#allocation15], %s1488
            %v1490 = vld [vmem:[%s1489] sm:$0xff]
            %v1491 = vld [vmem:[%s1489 + $0x8] sm:$0xff]
            %s1492 = scalar_lea.vmem [#allocation16], %s1488
            %v1493 = vld [vmem:[%s1492] sm:$0xff]
            %v1494 = vld [vmem:[%s1492 + $0x8] sm:$0xff]
            %v1495 = vlaneseq
            %v1496 = vshrl.u32 %v1495, 7
            %v1497 = vsub.s32 6, %v1496
            %v1498 = vrot.slane %v891, %v1497
            %v1499 = vmul.f32 %v1490, %v1498
            %v1500 = vmul.f32 %v1491, %v1498
            %v1501 = vlaneseq
            %v1502 = vshrl.u32 %v1501, 7
            %v1503 = vsub.s32 6, %v1502
            %v1504 = vrot.slane %v899, %v1503
            %v1505 = vmul.f32 %v1493, %v1504
            %v1506 = vmul.f32 %v1494, %v1504
            %v1507 = vsub.f32 %v1499, %v1505
            %v1508 = vsub.f32 %v1500, %v1506
            %v1509 = vadd.f32 %v1453, %v1507
            %v1510 = vadd.f32 %v1454, %v1508
            %v1511 = vmul.f32 %v1490, %v979
            %v1512 = vmul.f32 %v1491, %v984
            %v1513 = vadd.f32 %v1511, %v1512
            %v1514 = vrot.slane %v1513, 4
            %v1515 = vadd.f32 %v1513, %v1514
            %v1516 = vrot.slane %v1515, 2
            %v1517 = vadd.f32 %v1515, %v1516
            %v1518 = vrot.slane %v1517, 1
            %v1519 = vadd.f32 %v1517, %v1518
            %v1520 = vmul.f32 %v1493, %v979
            %v1521 = vmul.f32 %v1494, %v984
            %v1522 = vadd.f32 %v1520, %v1521
            %v1523 = vrot.slane %v1522, 4
            %v1524 = vadd.f32 %v1522, %v1523
            %v1525 = vrot.slane %v1524, 2
            %v1526 = vadd.f32 %v1524, %v1525
            %v1527 = vrot.slane %v1526, 1
            %v1528 = vadd.f32 %v1526, %v1527
            %v1529 = vmul.f32 %v872, %v891
            %v1530 = vmul.f32 %v874, %v899
            %v1531 = vsub.f32 %v1529, %v1530
            %v1532 = vmul.f32 %v876, %v1519
            %v1533 = vadd.f32 %v1531, %v1532
            %v1534 = vmul.f32 %v878, %v1528
            %v1535 = vsub.f32 %v1533, %v1534
            %v1536 = vmul.f32 %v872, %v899
            %v1537 = vmul.f32 %v874, %v891
            %v1538 = vadd.f32 %v1536, %v1537
            %v1539 = vmul.f32 %v876, %v1528
            %v1540 = vadd.f32 %v1538, %v1539
            %v1541 = vmul.f32 %v878, %v1519
            %v1542 = vadd.f32 %v1540, %v1541
            %s1543 = sadd.s32 %s870, 7
            %s1544 = smul.u32 %s1543, 16
            %s1545 = scalar_lea.vmem [#allocation15], %s1544
            %v1546 = vld [vmem:[%s1545] sm:$0xff]
            %v1547 = vld [vmem:[%s1545 + $0x8] sm:$0xff]
            %s1548 = scalar_lea.vmem [#allocation16], %s1544
            %v1549 = vld [vmem:[%s1548] sm:$0xff]
            %v1550 = vld [vmem:[%s1548 + $0x8] sm:$0xff]
            %v1551 = vlaneseq
            %v1552 = vshrl.u32 %v1551, 7
            %v1553 = vsub.s32 7, %v1552
            %v1554 = vrot.slane %v892, %v1553
            %v1555 = vmul.f32 %v1546, %v1554
            %v1556 = vmul.f32 %v1547, %v1554
            %v1557 = vlaneseq
            %v1558 = vshrl.u32 %v1557, 7
            %v1559 = vsub.s32 7, %v1558
            %v1560 = vrot.slane %v900, %v1559
            %v1561 = vmul.f32 %v1549, %v1560
            %v1562 = vmul.f32 %v1550, %v1560
            %v1563 = vsub.f32 %v1555, %v1561
            %v1564 = vsub.f32 %v1556, %v1562
            %v1565 = vadd.f32 %v1509, %v1563
            %v1566 = vadd.f32 %v1510, %v1564
            %v1567 = vmul.f32 %v1546, %v979
            %v1568 = vmul.f32 %v1547, %v984
            %v1569 = vadd.f32 %v1567, %v1568
            %v1570 = vrot.slane %v1569, 4
            %v1571 = vadd.f32 %v1569, %v1570
            %v1572 = vrot.slane %v1571, 2
            %v1573 = vadd.f32 %v1571, %v1572
            %v1574 = vrot.slane %v1573, 1
            %v1575 = vadd.f32 %v1573, %v1574
            %v1576 = vmul.f32 %v1549, %v979
            %v1577 = vmul.f32 %v1550, %v984
            %v1578 = vadd.f32 %v1576, %v1577
            %v1579 = vrot.slane %v1578, 4
            %v1580 = vadd.f32 %v1578, %v1579
            %v1581 = vrot.slane %v1580, 2
            %v1582 = vadd.f32 %v1580, %v1581
            %v1583 = vrot.slane %v1582, 1
            %v1584 = vadd.f32 %v1582, %v1583
            %v1585 = vmul.f32 %v872, %v892
            %v1586 = vmul.f32 %v874, %v900
            %v1587 = vsub.f32 %v1585, %v1586
            %v1588 = vmul.f32 %v876, %v1575
            %v1589 = vadd.f32 %v1587, %v1588
            %v1590 = vmul.f32 %v878, %v1584
            %v1591 = vsub.f32 %v1589, %v1590
            %v1592 = vmul.f32 %v872, %v900
            %v1593 = vmul.f32 %v874, %v892
            %v1594 = vadd.f32 %v1592, %v1593
            %v1595 = vmul.f32 %v876, %v1584
            %v1596 = vadd.f32 %v1594, %v1595
            %v1597 = vmul.f32 %v878, %v1575
            %v1598 = vadd.f32 %v1596, %v1597
            %s1599 = scalar_lea.vmem [#allocation3], %s901
            %1600 = vst [vmem:[%s1599] sm:$0xff] %v1565
            %1601 = vst [vmem:[%s1599 + $0x8] sm:$0xff] %v1566
          $region152: #{tpu_custom_call.1} parent=144 // loop_footer
            %s884 = sadd.s32 1, %s880
          $region153: #{tpu_custom_call.1} parent=144 // loop_footer_branch
            %879 = sbr.rel target = $region149
          $region154: #{tpu_custom_call.1} parent=144 // loop_exit
            _
          %s1602 = scalar_lea.vmem %s12, %s865
          %v1603 = vld [vmem:[%s1602] sm:$0x1]
          %s1604 = smul.u32 %s865, 2
          %s1605 = scalar_lea.vmem %s14, %s1604
          %v1606 = vld [vmem:[%s1605] sm:$0x3]
          %s1607 = scalar_lea.vmem %s15, %s865
          %v1608 = vld [vmem:[%s1607] sm:$0x1]
          %s1609 = scalar_lea.vmem %s16, %s865
          %v1610 = vld [vmem:[%s1609] sm:$0x1]
          %v1611 = vld [vmem:[#allocation2] sm:$0xff]
          %v1612 = vld [vmem:[#allocation2 + $0x8] sm:$0xff]
          %v1613 = vld [vmem:[#allocation2 + $0x10] sm:$0xff]
          %v1614 = vld [vmem:[#allocation2 + $0x18] sm:$0xff]
          %v1615 = vld [vmem:[#allocation3] sm:$0xff]
          %v1616 = vld [vmem:[#allocation3 + $0x8] sm:$0xff]
          %v1617 = vld [vmem:[#allocation3 + $0x10] sm:$0xff]
          %v1618 = vld [vmem:[#allocation3 + $0x18] sm:$0xff]
          %v1620 = vlaneseq
          %v1621 = vshrl.u32 %v1620, 7
          %v1622 = vsub.s32 0, %v1621
          %v1623 = vrot.slane %v1603, %v1622
          %v1625 = vmul.f32 %v1623, %v1611
          %v1626 = vmul.f32 %v1623, %v1612
          %v1627 = vmul.f32 %v1623, %v1613
          %v1628 = vmul.f32 %v1623, %v1614
          %v1629 = vadd.f32 %v1615, %v1625
          %v1630 = vadd.f32 %v1616, %v1626
          %v1631 = vadd.f32 %v1617, %v1627
          %v1632 = vadd.f32 %v1618, %v1628
          %v1633 = vmul.f32 %v1629, %v1629
          %v1634 = vmul.f32 %v1630, %v1630
          %v1635 = vmul.f32 %v1631, %v1631
          %v1636 = vmul.f32 %v1632, %v1632
          %v1637 = vmul.f32 %v1629, %v1633
          %v1638 = vmul.f32 %v1630, %v1634
          %v1639 = vmul.f32 %v1631, %v1635
          %v1640 = vmul.f32 %v1632, %v1636
          %v1641 = vmul.f32 %v1637, 0.044715
          %v1642 = vmul.f32 %v1638, 0.044715
          %v1643 = vmul.f32 %v1639, 0.044715
          %v1644 = vmul.f32 %v1640, 0.044715
          %v1645 = vadd.f32 %v1629, %v1641
          %v1646 = vadd.f32 %v1630, %v1642
          %v1647 = vadd.f32 %v1631, %v1643
          %v1648 = vadd.f32 %v1632, %v1644
          %v1649 = vmul.f32 %v1645, 0.7978846
          %v1650 = vmul.f32 %v1646, 0.7978846
          %v1651 = vmul.f32 %v1647, 0.7978846
          %v1652 = vmul.f32 %v1648, 0.7978846
          %v1653 = vtanh.pop %v1649
          %v1654 = vtanh.pop %v1650
          %v1655 = vtanh.pop %v1651
          %v1656 = vtanh.pop %v1652
          %v1657 = vadd.f32 %v1653, 1.0
          %v1658 = vadd.f32 %v1654, 1.0
          %v1659 = vadd.f32 %v1655, 1.0
          %v1660 = vadd.f32 %v1656, 1.0
          %v1661 = vmul.f32 %v1657, 0.5
          %v1662 = vmul.f32 %v1658, 0.5
          %v1663 = vmul.f32 %v1659, 0.5
          %v1664 = vmul.f32 %v1660, 0.5
          %v1665 = vmul.f32 %v1629, %v1661
          %v1666 = vmul.f32 %v1630, %v1662
          %v1667 = vmul.f32 %v1631, %v1663
          %v1668 = vmul.f32 %v1632, %v1664
          %s1669 = smul.u32 %s865, 32
          %s1670 = smul.addr %s1669, 8
          %s1671 = scalar_lea.vmem [#allocation24], %s1670
          %v1672 = vld [vmem:[%s1671] sm:$0xff]
          %v1673 = vld [vmem:[%s1671 + $0x8] sm:$0xff]
          %v1674 = vld [vmem:[%s1671 + $0x10] sm:$0xff]
          %v1675 = vld [vmem:[%s1671 + $0x18] sm:$0xff]
          %v1676 = vld [vmem:[%s1671 + $0x20] sm:$0xff]
          %v1677 = vld [vmem:[%s1671 + $0x28] sm:$0xff]
          %v1678 = vld [vmem:[%s1671 + $0x30] sm:$0xff]
          %v1679 = vld [vmem:[%s1671 + $0x38] sm:$0xff]
          %v1680 = vld [vmem:[%s1671 + $0x40] sm:$0xff]
          %v1681 = vld [vmem:[%s1671 + $0x48] sm:$0xff]
          %v1682 = vld [vmem:[%s1671 + $0x50] sm:$0xff]
          %v1683 = vld [vmem:[%s1671 + $0x58] sm:$0xff]
          %v1684 = vld [vmem:[%s1671 + $0x60] sm:$0xff]
          %v1685 = vld [vmem:[%s1671 + $0x68] sm:$0xff]
          %v1686 = vld [vmem:[%s1671 + $0x70] sm:$0xff]
          %v1687 = vld [vmem:[%s1671 + $0x78] sm:$0xff]
          %v1688 = vld [vmem:[%s1671 + $0x80] sm:$0xff]
          %v1689 = vld [vmem:[%s1671 + $0x88] sm:$0xff]
          %v1690 = vld [vmem:[%s1671 + $0x90] sm:$0xff]
          %v1691 = vld [vmem:[%s1671 + $0x98] sm:$0xff]
          %v1692 = vld [vmem:[%s1671 + $0xa0] sm:$0xff]
          %v1693 = vld [vmem:[%s1671 + $0xa8] sm:$0xff]
          %v1694 = vld [vmem:[%s1671 + $0xb0] sm:$0xff]
          %v1695 = vld [vmem:[%s1671 + $0xb8] sm:$0xff]
          %v1696 = vld [vmem:[%s1671 + $0xc0] sm:$0xff]
          %v1697 = vld [vmem:[%s1671 + $0xc8] sm:$0xff]
          %v1698 = vld [vmem:[%s1671 + $0xd0] sm:$0xff]
          %v1699 = vld [vmem:[%s1671 + $0xd8] sm:$0xff]
          %v1700 = vld [vmem:[%s1671 + $0xe0] sm:$0xff]
          %v1701 = vld [vmem:[%s1671 + $0xe8] sm:$0xff]
          %v1702 = vld [vmem:[%s1671 + $0xf0] sm:$0xff]
          %v1703 = vld [vmem:[%s1671 + $0xf8] sm:$0xff]
          %v1705 = vlaneseq
          %v1706 = vshrl.u32 %v1705, 7
          %v1707 = vsub.s32 0, %v1706
          %v1708 = vrot.slane %v1606, %v1707
          %v1709 = vlaneseq
          %v1710 = vshrl.u32 %v1709, 7
          %v1711 = vsub.s32 1, %v1710
          %v1712 = vrot.slane %v1606, %v1711
          %1715 = vmatprep.subr.mxu0 %v1703
          %1716 = vmatpush1.msra.mxu0 %v1702
          %1717 = vmatprep.subr.mxu0 %v1701
          %1718 = vmatpush1.msra.mxu0 %v1700
          %1719 = vmatprep.subr.mxu0 %v1699
          %1720 = vmatpush1.msra.mxu0 %v1698
          %1721 = vmatprep.subr.mxu0 %v1697
          %1722 = vmatpush1.msra.mxu0 %v1696
          %1723 = vmatprep.subr.mxu0 %v1695
          %1724 = vmatpush1.msra.mxu0 %v1694
          %1725 = vmatprep.subr.mxu0 %v1693
          %1726 = vmatpush1.msra.mxu0 %v1692
          %1727 = vmatprep.subr.mxu0 %v1691
          %1728 = vmatpush1.msra.mxu0 %v1690
          %1729 = vmatprep.subr.mxu0 %v1689
          %1730 = vmatpush1.msra.mxu0 %v1688
          %1731 = vmatprep.subr.mxu0 %v1687
          %1732 = vmatpush1.msra.mxu0 %v1686
          %1733 = vmatprep.subr.mxu0 %v1685
          %1734 = vmatpush1.msra.mxu0 %v1684
          %1735 = vmatprep.subr.mxu0 %v1683
          %1736 = vmatpush1.msra.mxu0 %v1682
          %1737 = vmatprep.subr.mxu0 %v1681
          %1738 = vmatpush1.msra.mxu0 %v1680
          %1739 = vmatprep.subr.mxu0 %v1679
          %1740 = vmatpush1.msra.mxu0 %v1678
          %1741 = vmatprep.subr.mxu0 %v1677
          %1742 = vmatpush1.msra.mxu0 %v1676
          %1743 = vmatprep.subr.mxu0 %v1675
          %1744 = vmatpush1.msra.mxu0 %v1674
          %1745 = vmatprep.subr.mxu0 %v1673
          %1746 = vmatpush1.msra.mxu0 %v1672
          %1747 = vmatprep.subr.mxu0 0.0
          %1748 = vmatpush2.msra.mxu0 0.0
          %1749 = vmatprep.subr.mxu0 0.0
          %1750 = vmatpush2.msra.mxu0 0.0
          %1751 = vmatprep.subr.mxu0 0.0
          %1752 = vmatpush2.msra.mxu0 0.0
          %1753 = vmatprep.subr.mxu0 0.0
          %1754 = vmatpush2.msra.mxu0 0.0
          %1755 = vmatprep.subr.mxu0 0.0
          %1756 = vmatpush2.msra.mxu0 0.0
          %1757 = vmatprep.subr.mxu0 0.0
          %1758 = vmatpush2.msra.mxu0 0.0
          %1759 = vmatprep.subr.mxu0 0.0
          %1760 = vmatpush2.msra.mxu0 0.0
          %1761 = vmatprep.subr.mxu0 0.0
          %1762 = vmatpush2.msra.mxu0 0.0
          %1763 = vmatprep.subr.mxu0 0.0
          %1764 = vmatpush2.msra.mxu0 0.0
          %1765 = vmatprep.subr.mxu0 0.0
          %1766 = vmatpush2.msra.mxu0 0.0
          %1767 = vmatprep.subr.mxu0 0.0
          %1768 = vmatpush2.msra.mxu0 0.0
          %1769 = vmatprep.subr.mxu0 0.0
          %1770 = vmatpush2.msra.mxu0 0.0
          %1771 = vmatprep.subr.mxu0 0.0
          %1772 = vmatpush2.msra.mxu0 0.0
          %1773 = vmatprep.subr.mxu0 0.0
          %1774 = vmatpush2.msra.mxu0 0.0
          %1775 = vmatprep.subr.mxu0 0.0
          %1776 = vmatpush2.msra.mxu0 0.0
          %1777 = vmatprep.subr.mxu0 0.0
          %1778 = vmatpush2.msra.mxu0 0.0
          %1779 = vmatprep.mubr.f32.mxu0 0.0
          %1780 = vmatmul.mubr.f32.gmra.mxu0 %v1665
          %v1781 = vpop.f32.mrf.mxu0
          %v1782 = vadd.f32 %v1708, %v1781
          %v1783 = vpop.f32.mrf.mxu0
          %v1784 = vadd.f32 %v1712, %v1783
          %1785 = vmatprep.mubr.f32.mxu0 0.0
          %1786 = vmatmul.mubr.f32.gmra.mxu0 %v1666
          %v1787 = vpop.f32.mrf.mxu0
          %v1788 = vadd.f32 %v1708, %v1787
          %v1789 = vpop.f32.mrf.mxu0
          %v1790 = vadd.f32 %v1712, %v1789
          %1791 = vmatprep.mubr.f32.mxu0 0.0
          %1792 = vmatmul.mubr.f32.gmra.mxu0 %v1667
          %v1793 = vpop.f32.mrf.mxu0
          %v1794 = vadd.f32 %v1708, %v1793
          %v1795 = vpop.f32.mrf.mxu0
          %v1796 = vadd.f32 %v1712, %v1795
          %1797 = vmatprep.mubr.f32.mxu0 0.0
          %1798 = vmatmul.mubr.f32.gmra.mxu0 %v1668
          %v1799 = vpop.f32.mrf.mxu0
          %v1800 = vadd.f32 %v1708, %v1799
          %v1801 = vpop.f32.mrf.mxu0
          %v1802 = vadd.f32 %v1712, %v1801
          %1803 = vdwg.mxu0
          %v1804 = vxor.u32 %v1784, 2147483648
          %v1805 = vxor.u32 %v1790, 2147483648
          %v1806 = vxor.u32 %v1796, 2147483648
          %v1807 = vxor.u32 %v1802, 2147483648
          %v1808 = vmul.f32 %v1804, 1.442695
          %v1809 = vpow.pop %v1808
          %v1810 = vmul.f32 %v1805, 1.442695
          %v1811 = vpow.pop %v1810
          %v1812 = vmul.f32 %v1806, 1.442695
          %v1813 = vpow.pop %v1812
          %v1814 = vmul.f32 %v1807, 1.442695
          %v1815 = vpow.pop %v1814
          %v1816 = vadd.f32 %v1809, 1.0
          %v1817 = vadd.f32 %v1811, 1.0
          %v1818 = vadd.f32 %v1813, 1.0
          %v1819 = vadd.f32 %v1815, 1.0
          %v1820 = vrcp.pop %v1816
          %v1821 = vmul.f32 1.0, %v1820
          %v1822 = vrcp.pop %v1817
          %v1823 = vmul.f32 1.0, %v1822
          %v1824 = vrcp.pop %v1818
          %v1825 = vmul.f32 1.0, %v1824
          %v1826 = vrcp.pop %v1819
          %v1827 = vmul.f32 1.0, %v1826
          %v1828 = vmul.f32 %v1782, %v1821
          %v1829 = vmul.f32 %v1788, %v1823
          %v1830 = vmul.f32 %v1794, %v1825
          %v1831 = vmul.f32 %v1800, %v1827
          %v1832 = vadd.f32 %v1828, %v1611
          %v1833 = vadd.f32 %v1829, %v1612
          %v1834 = vadd.f32 %v1830, %v1613
          %v1835 = vadd.f32 %v1831, %v1614
          %1836 = vadd.xlane.f32.xlu0 %v1832
          %v1837 = vpop.xlane.xlu0 %1836
          %1838 = vadd.xlane.f32.xlu0 %v1833
          %v1839 = vpop.xlane.xlu0 %1838
          %1840 = vadd.xlane.f32.xlu0 %v1834
          %v1841 = vpop.xlane.xlu0 %1840
          %1842 = vadd.xlane.f32.xlu0 %v1835
          %v1843 = vpop.xlane.xlu0 %1842
          %v1844 = vmul.f32 %v1837, 0.03125
          %v1845 = vmul.f32 %v1839, 0.03125
          %v1846 = vmul.f32 %v1841, 0.03125
          %v1847 = vmul.f32 %v1843, 0.03125
          %v1848 = vmul.f32 %v1832, %v1832
          %v1849 = vmul.f32 %v1833, %v1833
          %v1850 = vmul.f32 %v1834, %v1834
          %v1851 = vmul.f32 %v1835, %v1835
          %1852 = vadd.xlane.f32.xlu0 %v1848
          %v1853 = vpop.xlane.xlu0 %1852
          %1854 = vadd.xlane.f32.xlu0 %v1849
          %v1855 = vpop.xlane.xlu0 %1854
          %1856 = vadd.xlane.f32.xlu0 %v1850
          %v1857 = vpop.xlane.xlu0 %1856
          %1858 = vadd.xlane.f32.xlu0 %v1851
          %v1859 = vpop.xlane.xlu0 %1858
          %v1860 = vmul.f32 %v1853, 0.03125
          %v1861 = vmul.f32 %v1855, 0.03125
          %v1862 = vmul.f32 %v1857, 0.03125
          %v1863 = vmul.f32 %v1859, 0.03125
          %v1864 = vmul.f32 %v1844, %v1844
          %v1865 = vmul.f32 %v1845, %v1845
          %v1866 = vmul.f32 %v1846, %v1846
          %v1867 = vmul.f32 %v1847, %v1847
          %v1868 = vsub.f32 %v1860, %v1864
          %v1869 = vsub.f32 %v1861, %v1865
          %v1870 = vsub.f32 %v1862, %v1866
          %v1871 = vsub.f32 %v1863, %v1867
          %v1872 = vmax.f32 %v1868, 0.0
          %v1873 = vmax.f32 %v1869, 0.0
          %v1874 = vmax.f32 %v1870, 0.0
          %v1875 = vmax.f32 %v1871, 0.0
          %v1876 = vsub.f32 %v1832, %v1844
          %v1877 = vsub.f32 %v1833, %v1845
          %v1878 = vsub.f32 %v1834, %v1846
          %v1879 = vsub.f32 %v1835, %v1847
          %v1880 = vadd.f32 %v1872, 1e-05
          %v1881 = vadd.f32 %v1873, 1e-05
          %v1882 = vadd.f32 %v1874, 1e-05
          %v1883 = vadd.f32 %v1875, 1e-05
          %v1884 = vrsqrt.pop %v1880
          %v1885 = vrsqrt.pop %v1881
          %v1886 = vrsqrt.pop %v1882
          %v1887 = vrsqrt.pop %v1883
          %v1888 = vmul.f32 %v1876, %v1884
          %v1889 = vmul.f32 %v1877, %v1885
          %v1890 = vmul.f32 %v1878, %v1886
          %v1891 = vmul.f32 %v1879, %v1887
          %v1893 = vlaneseq
          %v1894 = vshrl.u32 %v1893, 7
          %v1895 = vsub.s32 0, %v1894
          %v1896 = vrot.slane %v1608, %v1895
          %v1898 = vmul.f32 %v1888, %v1896
          %v1899 = vmul.f32 %v1889, %v1896
          %v1900 = vmul.f32 %v1890, %v1896
          %v1901 = vmul.f32 %v1891, %v1896
          %v1903 = vlaneseq
          %v1904 = vshrl.u32 %v1903, 7
          %v1905 = vsub.s32 0, %v1904
          %v1906 = vrot.slane %v1610, %v1905
          %v1908 = vadd.f32 %v1898, %v1906
          %v1909 = vadd.f32 %v1899, %v1906
          %v1910 = vadd.f32 %v1900, %v1906
          %v1911 = vadd.f32 %v1901, %v1906
          %1912 = vst [vmem:[#allocation2] sm:$0xff] %v1908
          %1913 = vst [vmem:[#allocation2 + $0x8] sm:$0xff] %v1909
          %1914 = vst [vmem:[#allocation2 + $0x10] sm:$0xff] %v1910
          %1915 = vst [vmem:[#allocation2 + $0x18] sm:$0xff] %v1911
        $region145: #{tpu_custom_call.1} parent=87 // loop_footer
          %s869 = sadd.s32 1, %s865
        $region146: #{tpu_custom_call.1} parent=87 // loop_footer_branch
          %864 = sbr.rel target = $region142
        $region147: #{tpu_custom_call.1} parent=87 // loop_exit
          _
        %v1916 = vld [vmem:[#allocation2] sm:$0xff]
        %v1917 = vld [vmem:[#allocation2 + $0x8] sm:$0xff]
        %v1918 = vld [vmem:[#allocation2 + $0x10] sm:$0xff]
        %v1919 = vld [vmem:[#allocation2 + $0x18] sm:$0xff]
        %v1920 = vld [vmem:[#allocation10] sm:$0xff]
        %v1921 = vld [vmem:[#allocation10 + $0x8] sm:$0xff]
        %v1922 = vld [vmem:[#allocation10 + $0x10] sm:$0xff]
        %v1923 = vld [vmem:[#allocation10 + $0x18] sm:$0xff]
        %v1924 = vld [vmem:[#allocation10 + $0x20] sm:$0xff]
        %v1925 = vld [vmem:[#allocation10 + $0x28] sm:$0xff]
        %v1926 = vld [vmem:[#allocation10 + $0x30] sm:$0xff]
        %v1927 = vld [vmem:[#allocation10 + $0x38] sm:$0xff]
        %v1928 = vld [vmem:[#allocation10 + $0x40] sm:$0xff]
        %v1929 = vld [vmem:[#allocation10 + $0x48] sm:$0xff]
        %v1930 = vld [vmem:[#allocation10 + $0x50] sm:$0xff]
        %v1931 = vld [vmem:[#allocation10 + $0x58] sm:$0xff]
        %v1932 = vld [vmem:[#allocation10 + $0x60] sm:$0xff]
        %v1933 = vld [vmem:[#allocation10 + $0x68] sm:$0xff]
        %v1934 = vld [vmem:[#allocation10 + $0x70] sm:$0xff]
        %v1935 = vld [vmem:[#allocation10 + $0x78] sm:$0xff]
        %v1936 = vld [vmem:[#allocation12] sm:$0x1]
        %v1938 = vlaneseq
        %v1939 = vshrl.u32 %v1938, 7
        %v1940 = vsub.s32 0, %v1939
        %v1941 = vrot.slane %v1936, %v1940
        %1943 = vmatprep.subr.mxu0 0.0
        %1944 = vmatpush1.msra.mxu0 %v1935
        %1945 = vmatprep.subr.mxu0 0.0
        %1946 = vmatpush1.msra.mxu0 %v1934
        %1947 = vmatprep.subr.mxu0 0.0
        %1948 = vmatpush1.msra.mxu0 %v1933
        %1949 = vmatprep.subr.mxu0 0.0
        %1950 = vmatpush1.msra.mxu0 %v1932
        %1951 = vmatprep.subr.mxu0 0.0
        %1952 = vmatpush1.msra.mxu0 %v1931
        %1953 = vmatprep.subr.mxu0 0.0
        %1954 = vmatpush1.msra.mxu0 %v1930
        %1955 = vmatprep.subr.mxu0 0.0
        %1956 = vmatpush1.msra.mxu0 %v1929
        %1957 = vmatprep.subr.mxu0 0.0
        %1958 = vmatpush1.msra.mxu0 %v1928
        %1959 = vmatprep.subr.mxu0 0.0
        %1960 = vmatpush1.msra.mxu0 %v1927
        %1961 = vmatprep.subr.mxu0 0.0
        %1962 = vmatpush1.msra.mxu0 %v1926
        %1963 = vmatprep.subr.mxu0 0.0
        %1964 = vmatpush1.msra.mxu0 %v1925
        %1965 = vmatprep.subr.mxu0 0.0
        %1966 = vmatpush1.msra.mxu0 %v1924
        %1967 = vmatprep.subr.mxu0 0.0
        %1968 = vmatpush1.msra.mxu0 %v1923
        %1969 = vmatprep.subr.mxu0 0.0
        %1970 = vmatpush1.msra.mxu0 %v1922
        %1971 = vmatprep.subr.mxu0 0.0
        %1972 = vmatpush1.msra.mxu0 %v1921
        %1973 = vmatprep.subr.mxu0 0.0
        %1974 = vmatpush1.msra.mxu0 %v1920
        %1975 = vmatprep.subr.mxu0 0.0
        %1976 = vmatpush2.msra.mxu0 0.0
        %1977 = vmatprep.subr.mxu0 0.0
        %1978 = vmatpush2.msra.mxu0 0.0
        %1979 = vmatprep.subr.mxu0 0.0
        %1980 = vmatpush2.msra.mxu0 0.0
        %1981 = vmatprep.subr.mxu0 0.0
        %1982 = vmatpush2.msra.mxu0 0.0
        %1983 = vmatprep.subr.mxu0 0.0
        %1984 = vmatpush2.msra.mxu0 0.0
        %1985 = vmatprep.subr.mxu0 0.0
        %1986 = vmatpush2.msra.mxu0 0.0
        %1987 = vmatprep.subr.mxu0 0.0
        %1988 = vmatpush2.msra.mxu0 0.0
        %1989 = vmatprep.subr.mxu0 0.0
        %1990 = vmatpush2.msra.mxu0 0.0
        %1991 = vmatprep.subr.mxu0 0.0
        %1992 = vmatpush2.msra.mxu0 0.0
        %1993 = vmatprep.subr.mxu0 0.0
        %1994 = vmatpush2.msra.mxu0 0.0
        %1995 = vmatprep.subr.mxu0 0.0
        %1996 = vmatpush2.msra.mxu0 0.0
        %1997 = vmatprep.subr.mxu0 0.0
        %1998 = vmatpush2.msra.mxu0 0.0
        %1999 = vmatprep.subr.mxu0 0.0
        %2000 = vmatpush2.msra.mxu0 0.0
        %2001 = vmatprep.subr.mxu0 0.0
        %2002 = vmatpush2.msra.mxu0 0.0
        %2003 = vmatprep.subr.mxu0 0.0
        %2004 = vmatpush2.msra.mxu0 0.0
        %2005 = vmatprep.subr.mxu0 0.0
        %2006 = vmatpush2.msra.mxu0 0.0
        %2007 = vmatprep.mubr.f32.mxu0 0.0
        %2008 = vmatmul.mubr.f32.gmra.mxu0 %v1916
        %v2009 = vpop.f32.mrf.mxu0
        %v2010 = vadd.f32 %v1941, %v2009
        %v2011 = vpop.f32.mrf.mxu0
        %2012 = vmatprep.mubr.f32.mxu0 0.0
        %2013 = vmatmul.mubr.f32.gmra.mxu0 %v1917
        %v2014 = vpop.f32.mrf.mxu0
        %v2015 = vadd.f32 %v1941, %v2014
        %v2016 = vpop.f32.mrf.mxu0
        %2017 = vmatprep.mubr.f32.mxu0 0.0
        %2018 = vmatmul.mubr.f32.gmra.mxu0 %v1918
        %v2019 = vpop.f32.mrf.mxu0
        %v2020 = vadd.f32 %v1941, %v2019
        %v2021 = vpop.f32.mrf.mxu0
        %2022 = vmatprep.mubr.f32.mxu0 0.0
        %2023 = vmatmul.mubr.f32.gmra.mxu0 %v1919
        %v2024 = vpop.f32.mrf.mxu0
        %v2025 = vadd.f32 %v1941, %v2024
        %v2026 = vpop.f32.mrf.mxu0
        %2027 = vdwg.mxu0
        %2028 = vst [vmem:[%s736] sm:$0xff] %v2010
        %2029 = vst [vmem:[%s736 + $0x8] sm:$0xff] %v2015
        %2030 = vst [vmem:[%s736 + $0x10] sm:$0xff] %v2020
        %2031 = vst [vmem:[%s736 + $0x18] sm:$0xff] %v2025
        %s2032 = sand.u32 %s410, 1
        %s2033 = scalar_lea.sflag [#allocation6], %s2032
        %s2034 = sand.u32 %s410, 1
        %s2035 = smul.addr %s2034, 32
        %s2036 = scalar_lea.vmem [#allocation25], %s2035
        // Predicated region
        $region155: #{tpu_custom_call.1} parent=87 // pred_check
          %p2037 = pneg %p420
        $region156: #{tpu_custom_call.1} parent=87 // pred_check_branch
          %2039 = sbr.rel (%p2037) target = $region158
        $region157: #{tpu_custom_call.1} parent=87 // pred_region
          %s2041 = ssub.s32 512, 512
          %2042 = vsyncadd %s2033, %s2041
          %s2043 = smul.addr %s40, 4
          %s2044 = smul.addr %s2043, 128
          %s2045 = scalar_lea.hbm %s17, %s2044
          %s2046 = sshll.u32 %s2036, 4
          %s2047 = int_to_ptr.vmem [resolvable:$true] %s2046
          %2052 = dma.vmem_to_hbm [thread:$0]  %s2047, 512, %s2045, %s2033, 128, 128, 8
        $region158: #{tpu_custom_call.1} parent=87 // pred_fallthru
          _
      $region88: #{tpu_custom_call.1} parent=5 // pred_fallthru
        _
      %p2053 = scmp.le.s32.totalorder 2, %s35
      // Predicated region
      $region159: #{tpu_custom_call.1} parent=5 // pred_check
        %p2054 = pneg %p2053
      $region160: #{tpu_custom_call.1} parent=5 // pred_check_branch
        %2056 = sbr.rel (%p2054) target = $region162
      $region161: #{tpu_custom_call.1} parent=5 // pred_region
        %s2057 = ssub.s32 %s35, 2
        // Predicated region
        $region163: #{tpu_custom_call.1} parent=161 // pred_check
          %p2058 = pneg %p426
        $region164: #{tpu_custom_call.1} parent=161 // pred_check_branch
          %2060 = sbr.rel (%p2058) target = $region166
        $region165: #{tpu_custom_call.1} parent=161 // pred_region
          %s2061 = sand.u32 %s411, 1
          %s2062 = scalar_lea.sflag [#allocation6], %s2061
          %s2063 = sand.u32 %s411, 1
          %s2064 = smul.addr %s2063, 32
          %s2065 = scalar_lea.vmem [#allocation25], %s2064
          %2066 = dma.done %s2062, 512
        $region166: #{tpu_custom_call.1} parent=161 // pred_fallthru
          _
      $region162: #{tpu_custom_call.1} parent=5 // pred_fallthru
        _
    $region6: #{tpu_custom_call.1} parent=1 // loop_footer
      %s39 = sadd.s32 1, %s35
    $region7: #{tpu_custom_call.1} parent=1 // loop_footer_branch
      %34 = sbr.rel target = $region3
    $region8: #{tpu_custom_call.1} parent=1 // loop_exit
      _
    %2067 = vsyncpa [#allocation5], 1
    %s2068 = scalar_lea.sflag [#allocation5], 1
    %2069 = vsyncpa %s2068, 1
    %2070 = vsyncpa [#allocation8], 1
    %2071 = vsyncpa [#allocation11], 1
    %2072 = vsyncpa [#allocation14], 1
    %2073 = vsyncpa [#allocation17], 1
    %2074 = vsyncpa [#allocation20], 1
    %2075 = vsyncpa [#allocation23], 1
    %2076 = vsyncpa [#allocation6], 1
    %s2077 = scalar_lea.sflag [#allocation6], 1
    %2078 = vsyncpa %s2077, 1

</llo_original>
